<compile_context>
chip_gen: v7x
topology: tpu7x:2x2x1
jax: 0.10.0
libtpu: 0.0.40
codegen_flags: <defaults>
</compile_context>

<pallas_src>
import functools
import math

import jax
import jax.numpy as jnp
from jax.experimental import pallas as pl
from jax.experimental.pallas import tpu as pltpu

EPS = 1e-6
NEG_INF = -1e9


# --------------------------------------------------------------------------- #
# In-kernel helpers (pure jnp, traced inside the Pallas bodies)
# --------------------------------------------------------------------------- #
def _ln(x, alpha, bias, eps):
    """Scalar-parameter LayerNorm: alpha*(x-mean)/(std_unbiased+eps)+bias."""
    d = x.shape[-1]
    mean = jnp.mean(x, axis=-1, keepdims=True)
    var = jnp.sum((x - mean) ** 2, axis=-1, keepdims=True) / (d - 1)
    std = jnp.sqrt(var)
    return alpha * (x - mean) / (std + eps) + bias


def _mha_core(q, k, v, mask, h):
    """q:(Sq,D) k,v:(Sk,D) mask:(Sq,Sk) 1.0=keep.  Returns (Sq,D).

    Heads are split with static lane slices (no reshapes/transposes, everything
    stays resident in VMEM); result is re-merged lane-dense with a concat.
    """
    D = q.shape[-1]
    dk = D // h
    scale = 1.0 / math.sqrt(dk)
    keep = mask > 0
    outs = []
    for i in range(h):
        sl = slice(i * dk, (i + 1) * dk)
        s = jnp.einsum("qd,kd->qk", q[:, sl], k[:, sl],
                       preferred_element_type=jnp.float32) * scale
        s = jnp.where(keep, s, NEG_INF)
        s = s - jnp.max(s, axis=-1, keepdims=True)
        p = jnp.exp(s)
        p = p * pl.reciprocal(jnp.sum(p, axis=-1, keepdims=True), approx=True)
        outs.append(jnp.dot(p, v[:, sl], preferred_element_type=jnp.float32))
    return jnp.concatenate(outs, axis=-1)


# --------------------------------------------------------------------------- #
# Fused Pallas kernels (one grid step = one batch element)
# --------------------------------------------------------------------------- #
def _self_attn_block_kernel(lna_ref, lnb_ref, x_ref, mask_ref,
                            wqkv_ref, bqkv_ref, wo_ref, bo_ref, o_ref,
                            *, h, eps):
    x = x_ref[...].astype(jnp.float32)                               # (S, D)
    D = x.shape[-1]
    xn = _ln(x, lna_ref[0], lnb_ref[0], eps)
    qkv = jnp.dot(xn, wqkv_ref[...],
                  preferred_element_type=jnp.float32) + bqkv_ref[...]  # (S, 3D)
    q, k, v = qkv[:, :D], qkv[:, D:2 * D], qkv[:, 2 * D:]
    ctx = _mha_core(q, k, v, mask_ref[...].astype(jnp.float32), h)     # (S, D)
    out = jnp.dot(ctx, wo_ref[...],
                  preferred_element_type=jnp.float32) + bo_ref[...] + x
    o_ref[...] = out.astype(o_ref.dtype)


def _cross_attn_block_kernel(lna_ref, lnb_ref, x_ref, enc_ref, mask_ref,
                             wq_ref, bq_ref, wkv_ref, bkv_ref, wo_ref, bo_ref,
                             o_ref, *, h, eps):
    x = x_ref[...].astype(jnp.float32)                               # (Sq, D)
    enc = enc_ref[...].astype(jnp.float32)                           # (Sk, D)
    D = x.shape[-1]
    xn = _ln(x, lna_ref[0], lnb_ref[0], eps)
    q = jnp.dot(xn, wq_ref[...],
                preferred_element_type=jnp.float32) + bq_ref[...]      # (Sq, D)
    kv = jnp.dot(enc, wkv_ref[...],
                 preferred_element_type=jnp.float32) + bkv_ref[...]    # (Sk, 2D)
    k, v = kv[:, :D], kv[:, D:]
    ctx = _mha_core(q, k, v, mask_ref[...].astype(jnp.float32), h)
    out = jnp.dot(ctx, wo_ref[...],
                  preferred_element_type=jnp.float32) + bo_ref[...] + x
    o_ref[...] = out.astype(o_ref.dtype)


def _ffn_block_kernel(lna_ref, lnb_ref, x_ref, w1_ref, b1_ref, w2_ref, b2_ref,
                      o_ref, *, eps):
    x = x_ref[...].astype(jnp.float32)                               # (S, D)
    xn = _ln(x, lna_ref[0], lnb_ref[0], eps)
    hid = jnp.maximum(
        jnp.dot(xn, w1_ref[...], preferred_element_type=jnp.float32) + b1_ref[...],
        0.0)
    out = jnp.dot(hid, w2_ref[...],
                  preferred_element_type=jnp.float32) + b2_ref[...] + x
    o_ref[...] = out.astype(o_ref.dtype)


def _final_ln_kernel(lna_ref, lnb_ref, x_ref, o_ref, *, eps):
    x = x_ref[...].astype(jnp.float32)
    o_ref[...] = _ln(x, lna_ref[0], lnb_ref[0], eps).astype(o_ref.dtype)


# --------------------------------------------------------------------------- #
# pallas_call wrappers
# --------------------------------------------------------------------------- #
_SMEM_SPEC = pl.BlockSpec(memory_space=pltpu.MemorySpace.SMEM)
_PARALLEL = pltpu.CompilerParams(dimension_semantics=("parallel",))


def self_attn_block(x, mask, p, h, eps=EPS):
    B, S, D = x.shape
    return pl.pallas_call(
        functools.partial(_self_attn_block_kernel, h=h, eps=eps),
        out_shape=jax.ShapeDtypeStruct((B, S, D), x.dtype),
        grid=(B,),
        in_specs=[
            _SMEM_SPEC,                                              # ln alpha
            _SMEM_SPEC,                                              # ln bias
            pl.BlockSpec((None, S, D), lambda b: (b, 0, 0)),         # x
            pl.BlockSpec((None, S, S), lambda b: (b, 0, 0)),         # tgt mask
            pl.BlockSpec((D, 3 * D), lambda b: (0, 0)),              # wqkv
            pl.BlockSpec((1, 3 * D), lambda b: (0, 0)),              # bqkv
            pl.BlockSpec((D, D), lambda b: (0, 0)),                  # wo
            pl.BlockSpec((1, D), lambda b: (0, 0)),                  # bo
        ],
        out_specs=pl.BlockSpec((None, S, D), lambda b: (b, 0, 0)),
        compiler_params=_PARALLEL,
    )(p["ln_a"], p["ln_b"], x, mask, p["wqkv"], p["bqkv"], p["wo"], p["bo"])


def cross_attn_block(x, enc, mask, p, h, eps=EPS):
    B, Sq, D = x.shape
    Sk = enc.shape[1]
    return pl.pallas_call(
        functools.partial(_cross_attn_block_kernel, h=h, eps=eps),
        out_shape=jax.ShapeDtypeStruct((B, Sq, D), x.dtype),
        grid=(B,),
        in_specs=[
            _SMEM_SPEC,                                              # ln alpha
            _SMEM_SPEC,                                              # ln bias
            pl.BlockSpec((None, Sq, D), lambda b: (b, 0, 0)),        # x
            pl.BlockSpec((None, Sk, D), lambda b: (b, 0, 0)),        # encoder out
            pl.BlockSpec((None, Sq, Sk), lambda b: (b, 0, 0)),       # src mask
            pl.BlockSpec((D, D), lambda b: (0, 0)),                  # wq
            pl.BlockSpec((1, D), lambda b: (0, 0)),                  # bq
            pl.BlockSpec((D, 2 * D), lambda b: (0, 0)),              # wkv
            pl.BlockSpec((1, 2 * D), lambda b: (0, 0)),              # bkv
            pl.BlockSpec((D, D), lambda b: (0, 0)),                  # wo
            pl.BlockSpec((1, D), lambda b: (0, 0)),                  # bo
        ],
        out_specs=pl.BlockSpec((None, Sq, D), lambda b: (b, 0, 0)),
        compiler_params=_PARALLEL,
    )(p["ln_a"], p["ln_b"], x, enc, mask,
      p["wq"], p["bq"], p["wkv"], p["bkv"], p["wo"], p["bo"])


def ffn_block(x, p, eps=EPS):
    B, S, D = x.shape
    F = p["w1"].shape[1]
    return pl.pallas_call(
        functools.partial(_ffn_block_kernel, eps=eps),
        out_shape=jax.ShapeDtypeStruct((B, S, D), x.dtype),
        grid=(B,),
        in_specs=[
            _SMEM_SPEC,                                              # ln alpha
            _SMEM_SPEC,                                              # ln bias
            pl.BlockSpec((None, S, D), lambda b: (b, 0, 0)),         # x
            pl.BlockSpec((D, F), lambda b: (0, 0)),                  # w1
            pl.BlockSpec((1, F), lambda b: (0, 0)),                  # b1
            pl.BlockSpec((F, D), lambda b: (0, 0)),                  # w2
            pl.BlockSpec((1, D), lambda b: (0, 0)),                  # b2
        ],
        out_specs=pl.BlockSpec((None, S, D), lambda b: (b, 0, 0)),
        compiler_params=_PARALLEL,
    )(p["ln_a"], p["ln_b"], x, p["w1"], p["b1"], p["w2"], p["b2"])


def final_layernorm(x, alpha, bias, eps=EPS):
    B, S, D = x.shape
    return pl.pallas_call(
        functools.partial(_final_ln_kernel, eps=eps),
        out_shape=jax.ShapeDtypeStruct((B, S, D), x.dtype),
        grid=(B,),
        in_specs=[
            _SMEM_SPEC,
            _SMEM_SPEC,
            pl.BlockSpec((None, S, D), lambda b: (b, 0, 0)),
        ],
        out_specs=pl.BlockSpec((None, S, D), lambda b: (b, 0, 0)),
        compiler_params=_PARALLEL,
    )(alpha, bias, x)


# --------------------------------------------------------------------------- #
# Decoder forward (3 fused pallas_calls per layer + final LN)
# --------------------------------------------------------------------------- #
def decoder_forward(x, enc, src_mask, tgt_mask, params, h):
    for lp in params["layers"]:
        x = self_attn_block(x, tgt_mask, lp["self_attn"], h)
        x = cross_attn_block(x, enc, src_mask, lp["cross_attn"], h)
        x = ffn_block(x, lp["ffn"])
    return final_layernorm(x, params["norm_a"], params["norm_b"])


# --------------------------------------------------------------------------- #
# Deterministic parameter init (shapes implied by Decoder.__init__); the four
# per-attention linears are fused into wqkv / wkv at init time.
# --------------------------------------------------------------------------- #
def _dense_init(key, din, dout):
    kw, kb = jax.random.split(key)
    w = jax.random.normal(kw, (din, dout), jnp.float32) * (1.0 / math.sqrt(din))
    b = jax.random.normal(kb, (dout,), jnp.float32) * 0.02
    return w, b


def _ln_params():
    return jnp.ones((1,), jnp.float32), jnp.zeros((1,), jnp.float32)


def init_params(key, num_layers, d_model, h, d_ff):
    layers = []
    keys = jax.random.split(key, num_layers)
    for lk in keys:
        ks = jax.random.split(lk, 10)
        # self-attention (fused QKV)
        wq, bq = _dense_init(ks[0], d_model, d_model)
        wk, bk = _dense_init(ks[1], d_model, d_model)
        wv, bv = _dense_init(ks[2], d_model, d_model)
        wo, bo = _dense_init(ks[3], d_model, d_model)
        ln1a, ln1b = _ln_params()
        self_attn = dict(
            wqkv=jnp.concatenate([wq, wk, wv], axis=1),
            bqkv=jnp.concatenate([bq, bk, bv]).reshape(1, 3 * d_model),
            wo=wo, bo=bo.reshape(1, d_model), ln_a=ln1a, ln_b=ln1b)
        # cross-attention (fused KV over encoder output)
        wq2, bq2 = _dense_init(ks[4], d_model, d_model)
        wk2, bk2 = _dense_init(ks[5], d_model, d_model)
        wv2, bv2 = _dense_init(ks[6], d_model, d_model)
        wo2, bo2 = _dense_init(ks[7], d_model, d_model)
        ln2a, ln2b = _ln_params()
        cross_attn = dict(
            wq=wq2, bq=bq2.reshape(1, d_model),
            wkv=jnp.concatenate([wk2, wv2], axis=1),
            bkv=jnp.concatenate([bk2, bv2]).reshape(1, 2 * d_model),
            wo=wo2, bo=bo2.reshape(1, d_model), ln_a=ln2a, ln_b=ln2b)
        # feed-forward
        w1, b1 = _dense_init(ks[8], d_model, d_ff)
        w2, b2 = _dense_init(ks[9], d_ff, d_model)
        ln3a, ln3b = _ln_params()
        ffn = dict(w1=w1, b1=b1.reshape(1, d_ff),
                   w2=w2, b2=b2.reshape(1, d_model), ln_a=ln3a, ln_b=ln3b)
        layers.append(dict(self_attn=self_attn, cross_attn=cross_attn, ffn=ffn))
    na, nb = _ln_params()
    return dict(layers=layers, norm_a=na, norm_b=nb)


# --------------------------------------------------------------------------- #
# Pure-JAX reference (for a sanity check of the fused kernels)
# --------------------------------------------------------------------------- #
def _ln_ref(x, a, b, eps=EPS):
    d = x.shape[-1]
    mean = jnp.mean(x, axis=-1, keepdims=True)
    var = jnp.sum((x - mean) ** 2, axis=-1, keepdims=True) / (d - 1)
    return a * (x - mean) / (jnp.sqrt(var) + eps) + b


def _mha_ref(q, k, v, mask, h):
    B, Sq, D = q.shape
    Sk = k.shape[1]
    dk = D // h
    qh = q.reshape(B, Sq, h, dk).transpose(0, 2, 1, 3)
    kh = k.reshape(B, Sk, h, dk).transpose(0, 2, 1, 3)
    vh = v.reshape(B, Sk, h, dk).transpose(0, 2, 1, 3)
    s = jnp.einsum("bhqd,bhkd->bhqk", qh, kh, precision="highest") / math.sqrt(dk)
    s = jnp.where(mask[:, None] > 0, s, NEG_INF)
    p = jax.nn.softmax(s, axis=-1)
    ctx = jnp.einsum("bhqk,bhkd->bhqd", p, vh, precision="highest")
    return ctx.transpose(0, 2, 1, 3).reshape(B, Sq, D)


def decoder_forward_ref(x, enc, src_mask, tgt_mask, params, h):
    dot = functools.partial(jnp.matmul, precision="highest")
    D = x.shape[-1]
    for lp in params["layers"]:
        sa = lp["self_attn"]
        xn = _ln_ref(x, sa["ln_a"][0], sa["ln_b"][0])
        qkv = dot(xn, sa["wqkv"]) + sa["bqkv"]
        q, k, v = qkv[..., :D], qkv[..., D:2 * D], qkv[..., 2 * D:]
        x = x + dot(_mha_ref(q, k, v, tgt_mask, h), sa["wo"]) + sa["bo"]
        ca = lp["cross_attn"]
        xn = _ln_ref(x, ca["ln_a"][0], ca["ln_b"][0])
        q = dot(xn, ca["wq"]) + ca["bq"]
        kv = dot(enc, ca["wkv"]) + ca["bkv"]
        k, v = kv[..., :D], kv[..., D:]
        x = x + dot(_mha_ref(q, k, v, src_mask, h), ca["wo"]) + ca["bo"]
        ff = lp["ffn"]
        xn = _ln_ref(x, ff["ln_a"][0], ff["ln_b"][0])
        x = x + dot(jnp.maximum(dot(xn, ff["w1"]) + ff["b1"], 0.0), ff["w2"]) + ff["b2"]
    return _ln_ref(x, params["norm_a"][0], params["norm_b"][0])


# --------------------------------------------------------------------------- #
if __name__ == "__main__":
    num_layers, d_model, h, d_ff, dropout = 2, 32, 4, 64, 0.1
    B, S_tgt, S_src = 2, 8, 12

    key = jax.random.PRNGKey(0)
    k_x, k_enc, k_p = jax.random.split(key, 3)

    x = jax.random.normal(k_x, (B, S_tgt, d_model), jnp.float32)
    encoder_output = jax.random.normal(k_enc, (B, S_src, d_model), jnp.float32)

    # tgt_mask: causal; src_mask: attend to all encoder positions (1.0 = keep)
    tgt_mask = jnp.broadcast_to(
        jnp.tril(jnp.ones((S_tgt, S_tgt), jnp.float32)), (B, S_tgt, S_tgt))
    src_mask = jnp.ones((B, S_tgt, S_src), jnp.float32)

    params = init_params(k_p, num_layers, d_model, h, d_ff)

    fwd = jax.jit(decoder_forward, static_argnums=(5,))
    out = jax.block_until_ready(fwd(x, encoder_output, src_mask, tgt_mask, params, h))

    assert out.shape == (B, S_tgt, d_model)
    assert bool(jnp.all(jnp.isfinite(out)))

    # sanity check against a pure-JAX reference (loose tol: approx-reciprocal softmax)
    ref = decoder_forward_ref(x, encoder_output, src_mask, tgt_mask, params, h)
    assert bool(jnp.allclose(out, ref, atol=5e-2, rtol=5e-2)), \
        f"max abs diff {float(jnp.max(jnp.abs(out - ref)))}"

    print("KERNEL_OK")
</pallas_src>

<mosaic_0001>
module attributes {stable_mosaic.version = 11 : i64} {
  func.func @_self_attn_block_kernel(%arg0: i32, %arg1: memref<1xf32, #tpu.memory_space<smem>>, %arg2: memref<1xf32, #tpu.memory_space<smem>>, %arg3: memref<1x8x32xf32, #tpu.memory_space<vmem>>, %arg4: memref<1x8x8xf32, #tpu.memory_space<vmem>>, %arg5: memref<32x96xf32, #tpu.memory_space<vmem>>, %arg6: memref<1x96xf32, #tpu.memory_space<vmem>>, %arg7: memref<32x32xf32, #tpu.memory_space<vmem>>, %arg8: memref<1x32xf32, #tpu.memory_space<vmem>>, %arg9: memref<1x8x32xf32, #tpu.memory_space<vmem>>) attributes {dimension_semantics = [#tpu.dimension_semantics<parallel>], iteration_bounds = array<i64: 2>, scalar_prefetch = 0 : i64, scratch_operands = 0 : i64, tpu.core_type = #tpu.core_type<tc>, window_params = [{transform_indices = @transform_0, window_bounds = array<i64: 1>}, {transform_indices = @transform_1, window_bounds = array<i64: 1>}, {transform_indices = @transform_2, window_bounds = array<i64: 1, 8, 32>}, {transform_indices = @transform_3, window_bounds = array<i64: 1, 8, 8>}, {pipeline_mode = #tpu.pipeline_mode<synchronous>, transform_indices = @transform_4, window_bounds = array<i64: 32, 96>}, {pipeline_mode = #tpu.pipeline_mode<synchronous>, transform_indices = @transform_5, window_bounds = array<i64: 1, 96>}, {pipeline_mode = #tpu.pipeline_mode<synchronous>, transform_indices = @transform_6, window_bounds = array<i64: 32, 32>}, {pipeline_mode = #tpu.pipeline_mode<synchronous>, transform_indices = @transform_7, window_bounds = array<i64: 1, 32>}, {transform_indices = @transform_8, window_bounds = array<i64: 1, 8, 32>}]} {
    %c0 = arith.constant 0 : index
    %c0_0 = arith.constant 0 : index
    %c0_1 = arith.constant 0 : index
    %0 = vector.load %arg3[%c0, %c0_0, %c0_1] : memref<1x8x32xf32, #tpu.memory_space<vmem>>, vector<1x8x32xf32>
    %1 = vector.shape_cast %0 : vector<1x8x32xf32> to vector<8x32xf32>
    %c0_2 = arith.constant 0 : index
    %2 = memref.load %arg1[%c0_2] : memref<1xf32, #tpu.memory_space<smem>>
    %c0_3 = arith.constant 0 : index
    %3 = memref.load %arg2[%c0_3] : memref<1xf32, #tpu.memory_space<smem>>
    %cst = arith.constant dense<0.000000e+00> : vector<8xf32>
    %4 = vector.multi_reduction <add>, %1, %cst [1] : vector<8x32xf32> to vector<8xf32>
    %5 = vector.shape_cast %4 : vector<8xf32> to vector<8x1xf32>
    %cst_4 = arith.constant 3.200000e+01 : f32
    %6 = vector.broadcast %cst_4 : f32 to vector<8x1xf32>
    %7 = arith.divf %5, %6 : vector<8x1xf32>
    %8 = vector.broadcast %7 : vector<8x1xf32> to vector<8x32xf32>
    %9 = arith.subf %1, %8 : vector<8x32xf32>
    %10 = arith.mulf %9, %9 : vector<8x32xf32>
    %cst_5 = arith.constant dense<0.000000e+00> : vector<8xf32>
    %11 = vector.multi_reduction <add>, %10, %cst_5 [1] : vector<8x32xf32> to vector<8xf32>
    %12 = vector.shape_cast %11 : vector<8xf32> to vector<8x1xf32>
    %cst_6 = arith.constant 3.100000e+01 : f32
    %13 = vector.broadcast %cst_6 : f32 to vector<8x1xf32>
    %14 = arith.divf %12, %13 : vector<8x1xf32>
    %15 = math.sqrt %14 : vector<8x1xf32>
    %16 = vector.broadcast %7 : vector<8x1xf32> to vector<8x32xf32>
    %17 = arith.subf %1, %16 : vector<8x32xf32>
    %18 = vector.broadcast %2 : f32 to vector<8x32xf32>
    %19 = arith.mulf %18, %17 : vector<8x32xf32>
    %cst_7 = arith.constant 9.99999997E-7 : f32
    %20 = vector.broadcast %cst_7 : f32 to vector<8x1xf32>
    %21 = arith.addf %15, %20 : vector<8x1xf32>
    %22 = vector.broadcast %21 : vector<8x1xf32> to vector<8x32xf32>
    %23 = arith.divf %19, %22 : vector<8x32xf32>
    %24 = vector.broadcast %3 : f32 to vector<8x32xf32>
    %25 = arith.addf %23, %24 : vector<8x32xf32>
    %c0_8 = arith.constant 0 : index
    %c0_9 = arith.constant 0 : index
    %26 = vector.load %arg5[%c0_8, %c0_9] : memref<32x96xf32, #tpu.memory_space<vmem>>, vector<32x96xf32>
    %cst_10 = arith.constant dense<0.000000e+00> : vector<8x96xf32>
    %27 = tpu.matmul %25, %26, %cst_10 {dimension_numbers = #tpu.dot_dimension_numbers<[1], [0], [0], [1], [0, 0, 1, 1], [], []>} : vector<8x32xf32>, vector<32x96xf32>, vector<8x96xf32> -> vector<8x96xf32>
    %c0_11 = arith.constant 0 : index
    %c0_12 = arith.constant 0 : index
    %28 = vector.load %arg6[%c0_11, %c0_12] : memref<1x96xf32, #tpu.memory_space<vmem>>, vector<1x96xf32>
    %29 = vector.broadcast %28 : vector<1x96xf32> to vector<8x96xf32>
    %30 = arith.addf %27, %29 : vector<8x96xf32>
    %31 = vector.extract_strided_slice %30 {offsets = [0, 0], sizes = [8, 32], strides = [1, 1]} : vector<8x96xf32> to vector<8x32xf32>
    %32 = vector.extract_strided_slice %30 {offsets = [0, 32], sizes = [8, 32], strides = [1, 1]} : vector<8x96xf32> to vector<8x32xf32>
    %33 = vector.extract_strided_slice %30 {offsets = [0, 64], sizes = [8, 32], strides = [1, 1]} : vector<8x96xf32> to vector<8x32xf32>
    %c0_13 = arith.constant 0 : index
    %c0_14 = arith.constant 0 : index
    %c0_15 = arith.constant 0 : index
    %34 = vector.load %arg4[%c0_13, %c0_14, %c0_15] : memref<1x8x8xf32, #tpu.memory_space<vmem>>, vector<1x8x8xf32>
    %35 = vector.shape_cast %34 : vector<1x8x8xf32> to vector<8x8xf32>
    %cst_16 = arith.constant 0.000000e+00 : f32
    %36 = vector.broadcast %cst_16 : f32 to vector<8x8xf32>
    %37 = arith.cmpf ogt, %35, %36 : vector<8x8xf32>
    %38 = vector.extract_strided_slice %31 {offsets = [0, 0], sizes = [8, 8], strides = [1, 1]} : vector<8x32xf32> to vector<8x8xf32>
    %39 = vector.extract_strided_slice %32 {offsets = [0, 0], sizes = [8, 8], strides = [1, 1]} : vector<8x32xf32> to vector<8x8xf32>
    "tpu.trace_start"() <{level = 10 : i32, message = "qd,kd->qk"}> : () -> ()
    %cst_17 = arith.constant dense<0.000000e+00> : vector<8x8xf32>
    %40 = tpu.matmul %38, %39, %cst_17 {dimension_numbers = #tpu.dot_dimension_numbers<[1], [1], [0], [0], [0, 0, 1, 0], [], []>} : vector<8x8xf32>, vector<8x8xf32>, vector<8x8xf32> -> vector<8x8xf32>
    "tpu.trace_stop"() : () -> ()
    %cst_18 = arith.constant 0.353553385 : f32
    %41 = vector.broadcast %cst_18 : f32 to vector<8x8xf32>
    %42 = arith.mulf %40, %41 : vector<8x8xf32>
    %cst_19 = arith.constant -1.000000e+09 : f32
    %43 = vector.broadcast %cst_19 : f32 to vector<8x8xf32>
    %44 = arith.select %37, %42, %43 : vector<8x8xi1>, vector<8x8xf32>
    %cst_20 = arith.constant dense<0xFF800000> : vector<8xf32>
    %45 = vector.multi_reduction <maximumf>, %44, %cst_20 [1] : vector<8x8xf32> to vector<8xf32>
    %46 = vector.shape_cast %45 : vector<8xf32> to vector<8x1xf32>
    %47 = vector.broadcast %46 : vector<8x1xf32> to vector<8x8xf32>
    %48 = arith.subf %44, %47 : vector<8x8xf32>
    %49 = math.exp %48 : vector<8x8xf32>
    %cst_21 = arith.constant dense<0.000000e+00> : vector<8xf32>
    %50 = vector.multi_reduction <add>, %49, %cst_21 [1] : vector<8x8xf32> to vector<8xf32>
    %51 = vector.shape_cast %50 : vector<8xf32> to vector<8x1xf32>
    %52 = tpu.reciprocal %51 {approx = true} : vector<8x1xf32> -> vector<8x1xf32>
    %53 = vector.broadcast %52 : vector<8x1xf32> to vector<8x8xf32>
    %54 = arith.mulf %49, %53 : vector<8x8xf32>
    %55 = vector.extract_strided_slice %33 {offsets = [0, 0], sizes = [8, 8], strides = [1, 1]} : vector<8x32xf32> to vector<8x8xf32>
    %cst_22 = arith.constant dense<0.000000e+00> : vector<8x8xf32>
    %56 = tpu.matmul %54, %55, %cst_22 {dimension_numbers = #tpu.dot_dimension_numbers<[1], [0], [0], [1], [0, 0, 1, 1], [], []>} : vector<8x8xf32>, vector<8x8xf32>, vector<8x8xf32> -> vector<8x8xf32>
    %57 = vector.extract_strided_slice %31 {offsets = [0, 8], sizes = [8, 8], strides = [1, 1]} : vector<8x32xf32> to vector<8x8xf32>
    %58 = vector.extract_strided_slice %32 {offsets = [0, 8], sizes = [8, 8], strides = [1, 1]} : vector<8x32xf32> to vector<8x8xf32>
    "tpu.trace_start"() <{level = 10 : i32, message = "qd,kd->qk"}> : () -> ()
    %cst_23 = arith.constant dense<0.000000e+00> : vector<8x8xf32>
    %59 = tpu.matmul %57, %58, %cst_23 {dimension_numbers = #tpu.dot_dimension_numbers<[1], [1], [0], [0], [0, 0, 1, 0], [], []>} : vector<8x8xf32>, vector<8x8xf32>, vector<8x8xf32> -> vector<8x8xf32>
    "tpu.trace_stop"() : () -> ()
    %cst_24 = arith.constant 0.353553385 : f32
    %60 = vector.broadcast %cst_24 : f32 to vector<8x8xf32>
    %61 = arith.mulf %59, %60 : vector<8x8xf32>
    %cst_25 = arith.constant -1.000000e+09 : f32
    %62 = vector.broadcast %cst_25 : f32 to vector<8x8xf32>
    %63 = arith.select %37, %61, %62 : vector<8x8xi1>, vector<8x8xf32>
    %cst_26 = arith.constant dense<0xFF800000> : vector<8xf32>
    %64 = vector.multi_reduction <maximumf>, %63, %cst_26 [1] : vector<8x8xf32> to vector<8xf32>
    %65 = vector.shape_cast %64 : vector<8xf32> to vector<8x1xf32>
    %66 = vector.broadcast %65 : vector<8x1xf32> to vector<8x8xf32>
    %67 = arith.subf %63, %66 : vector<8x8xf32>
    %68 = math.exp %67 : vector<8x8xf32>
    %cst_27 = arith.constant dense<0.000000e+00> : vector<8xf32>
    %69 = vector.multi_reduction <add>, %68, %cst_27 [1] : vector<8x8xf32> to vector<8xf32>
    %70 = vector.shape_cast %69 : vector<8xf32> to vector<8x1xf32>
    %71 = tpu.reciprocal %70 {approx = true} : vector<8x1xf32> -> vector<8x1xf32>
    %72 = vector.broadcast %71 : vector<8x1xf32> to vector<8x8xf32>
    %73 = arith.mulf %68, %72 : vector<8x8xf32>
    %74 = vector.extract_strided_slice %33 {offsets = [0, 8], sizes = [8, 8], strides = [1, 1]} : vector<8x32xf32> to vector<8x8xf32>
    %cst_28 = arith.constant dense<0.000000e+00> : vector<8x8xf32>
    %75 = tpu.matmul %73, %74, %cst_28 {dimension_numbers = #tpu.dot_dimension_numbers<[1], [0], [0], [1], [0, 0, 1, 1], [], []>} : vector<8x8xf32>, vector<8x8xf32>, vector<8x8xf32> -> vector<8x8xf32>
    %76 = vector.extract_strided_slice %31 {offsets = [0, 16], sizes = [8, 8], strides = [1, 1]} : vector<8x32xf32> to vector<8x8xf32>
    %77 = vector.extract_strided_slice %32 {offsets = [0, 16], sizes = [8, 8], strides = [1, 1]} : vector<8x32xf32> to vector<8x8xf32>
    "tpu.trace_start"() <{level = 10 : i32, message = "qd,kd->qk"}> : () -> ()
    %cst_29 = arith.constant dense<0.000000e+00> : vector<8x8xf32>
    %78 = tpu.matmul %76, %77, %cst_29 {dimension_numbers = #tpu.dot_dimension_numbers<[1], [1], [0], [0], [0, 0, 1, 0], [], []>} : vector<8x8xf32>, vector<8x8xf32>, vector<8x8xf32> -> vector<8x8xf32>
    "tpu.trace_stop"() : () -> ()
    %cst_30 = arith.constant 0.353553385 : f32
    %79 = vector.broadcast %cst_30 : f32 to vector<8x8xf32>
    %80 = arith.mulf %78, %79 : vector<8x8xf32>
    %cst_31 = arith.constant -1.000000e+09 : f32
    %81 = vector.broadcast %cst_31 : f32 to vector<8x8xf32>
    %82 = arith.select %37, %80, %81 : vector<8x8xi1>, vector<8x8xf32>
    %cst_32 = arith.constant dense<0xFF800000> : vector<8xf32>
    %83 = vector.multi_reduction <maximumf>, %82, %cst_32 [1] : vector<8x8xf32> to vector<8xf32>
    %84 = vector.shape_cast %83 : vector<8xf32> to vector<8x1xf32>
    %85 = vector.broadcast %84 : vector<8x1xf32> to vector<8x8xf32>
    %86 = arith.subf %82, %85 : vector<8x8xf32>
    %87 = math.exp %86 : vector<8x8xf32>
    %cst_33 = arith.constant dense<0.000000e+00> : vector<8xf32>
    %88 = vector.multi_reduction <add>, %87, %cst_33 [1] : vector<8x8xf32> to vector<8xf32>
    %89 = vector.shape_cast %88 : vector<8xf32> to vector<8x1xf32>
    %90 = tpu.reciprocal %89 {approx = true} : vector<8x1xf32> -> vector<8x1xf32>
    %91 = vector.broadcast %90 : vector<8x1xf32> to vector<8x8xf32>
    %92 = arith.mulf %87, %91 : vector<8x8xf32>
    %93 = vector.extract_strided_slice %33 {offsets = [0, 16], sizes = [8, 8], strides = [1, 1]} : vector<8x32xf32> to vector<8x8xf32>
    %cst_34 = arith.constant dense<0.000000e+00> : vector<8x8xf32>
    %94 = tpu.matmul %92, %93, %cst_34 {dimension_numbers = #tpu.dot_dimension_numbers<[1], [0], [0], [1], [0, 0, 1, 1], [], []>} : vector<8x8xf32>, vector<8x8xf32>, vector<8x8xf32> -> vector<8x8xf32>
    %95 = vector.extract_strided_slice %31 {offsets = [0, 24], sizes = [8, 8], strides = [1, 1]} : vector<8x32xf32> to vector<8x8xf32>
    %96 = vector.extract_strided_slice %32 {offsets = [0, 24], sizes = [8, 8], strides = [1, 1]} : vector<8x32xf32> to vector<8x8xf32>
    "tpu.trace_start"() <{level = 10 : i32, message = "qd,kd->qk"}> : () -> ()
    %cst_35 = arith.constant dense<0.000000e+00> : vector<8x8xf32>
    %97 = tpu.matmul %95, %96, %cst_35 {dimension_numbers = #tpu.dot_dimension_numbers<[1], [1], [0], [0], [0, 0, 1, 0], [], []>} : vector<8x8xf32>, vector<8x8xf32>, vector<8x8xf32> -> vector<8x8xf32>
    "tpu.trace_stop"() : () -> ()
    %cst_36 = arith.constant 0.353553385 : f32
    %98 = vector.broadcast %cst_36 : f32 to vector<8x8xf32>
    %99 = arith.mulf %97, %98 : vector<8x8xf32>
    %cst_37 = arith.constant -1.000000e+09 : f32
    %100 = vector.broadcast %cst_37 : f32 to vector<8x8xf32>
    %101 = arith.select %37, %99, %100 : vector<8x8xi1>, vector<8x8xf32>
    %cst_38 = arith.constant dense<0xFF800000> : vector<8xf32>
    %102 = vector.multi_reduction <maximumf>, %101, %cst_38 [1] : vector<8x8xf32> to vector<8xf32>
    %103 = vector.shape_cast %102 : vector<8xf32> to vector<8x1xf32>
    %104 = vector.broadcast %103 : vector<8x1xf32> to vector<8x8xf32>
    %105 = arith.subf %101, %104 : vector<8x8xf32>
    %106 = math.exp %105 : vector<8x8xf32>
    %cst_39 = arith.constant dense<0.000000e+00> : vector<8xf32>
    %107 = vector.multi_reduction <add>, %106, %cst_39 [1] : vector<8x8xf32> to vector<8xf32>
    %108 = vector.shape_cast %107 : vector<8xf32> to vector<8x1xf32>
    %109 = tpu.reciprocal %108 {approx = true} : vector<8x1xf32> -> vector<8x1xf32>
    %110 = vector.broadcast %109 : vector<8x1xf32> to vector<8x8xf32>
    %111 = arith.mulf %106, %110 : vector<8x8xf32>
    %112 = vector.extract_strided_slice %33 {offsets = [0, 24], sizes = [8, 8], strides = [1, 1]} : vector<8x32xf32> to vector<8x8xf32>
    %cst_40 = arith.constant dense<0.000000e+00> : vector<8x8xf32>
    %113 = tpu.matmul %111, %112, %cst_40 {dimension_numbers = #tpu.dot_dimension_numbers<[1], [0], [0], [1], [0, 0, 1, 1], [], []>} : vector<8x8xf32>, vector<8x8xf32>, vector<8x8xf32> -> vector<8x8xf32>
    %114 = tpu.concatenate %56, %75, %94, %113 in 1 : vector<8x8xf32>, vector<8x8xf32>, vector<8x8xf32>, vector<8x8xf32> -> vector<8x32xf32>
    %c0_41 = arith.constant 0 : index
    %c0_42 = arith.constant 0 : index
    %115 = vector.load %arg7[%c0_41, %c0_42] : memref<32x32xf32, #tpu.memory_space<vmem>>, vector<32x32xf32>
    %cst_43 = arith.constant dense<0.000000e+00> : vector<8x32xf32>
    %116 = tpu.matmul %114, %115, %cst_43 {dimension_numbers = #tpu.dot_dimension_numbers<[1], [0], [0], [1], [0, 0, 1, 1], [], []>} : vector<8x32xf32>, vector<32x32xf32>, vector<8x32xf32> -> vector<8x32xf32>
    %c0_44 = arith.constant 0 : index
    %c0_45 = arith.constant 0 : index
    %117 = vector.load %arg8[%c0_44, %c0_45] : memref<1x32xf32, #tpu.memory_space<vmem>>, vector<1x32xf32>
    %118 = vector.broadcast %117 : vector<1x32xf32> to vector<8x32xf32>
    %119 = arith.addf %116, %118 : vector<8x32xf32>
    %120 = arith.addf %119, %1 : vector<8x32xf32>
    %c0_46 = arith.constant 0 : index
    %c0_47 = arith.constant 0 : index
    %c0_48 = arith.constant 0 : index
    %121 = vector.load %arg9[%c0_46, %c0_47, %c0_48] : memref<1x8x32xf32, #tpu.memory_space<vmem>>, vector<1x8x32xf32>
    %122 = vector.shape_cast %121 : vector<1x8x32xf32> to vector<8x32xf32>
    %123 = vector.shape_cast %120 : vector<8x32xf32> to vector<1x8x32xf32>
    tpu.vector_store %arg9[%c0_46, %c0_47, %c0_48], %123 {strides = array<i32>} : memref<1x8x32xf32, #tpu.memory_space<vmem>>, vector<1x8x32xf32>,
    return
  }
  func.func @transform_0(%arg0: i32) -> i32 {
    %c0_i32 = arith.constant 0 : i32
    %c0_i32_0 = arith.constant 0 : i32
    return %c0_i32 : i32
  }
  func.func @transform_1(%arg0: i32) -> i32 {
    %c0_i32 = arith.constant 0 : i32
    %c0_i32_0 = arith.constant 0 : i32
    return %c0_i32 : i32
  }
  func.func @transform_2(%arg0: i32) -> (i32, i32, i32) {
    %c0_i32 = arith.constant 0 : i32
    %c0_i32_0 = arith.constant 0 : i32
    %c0_i32_1 = arith.constant 0 : i32
    return %arg0, %c0_i32, %c0_i32_0 : i32, i32, i32
  }
  func.func @transform_3(%arg0: i32) -> (i32, i32, i32) {
    %c0_i32 = arith.constant 0 : i32
    %c0_i32_0 = arith.constant 0 : i32
    %c0_i32_1 = arith.constant 0 : i32
    return %arg0, %c0_i32, %c0_i32_0 : i32, i32, i32
  }
  func.func @transform_4(%arg0: i32) -> (i32, i32) {
    %c0_i32 = arith.constant 0 : i32
    %c0_i32_0 = arith.constant 0 : i32
    %c0_i32_1 = arith.constant 0 : i32
    return %c0_i32, %c0_i32_0 : i32, i32
  }
  func.func @transform_5(%arg0: i32) -> (i32, i32) {
    %c0_i32 = arith.constant 0 : i32
    %c0_i32_0 = arith.constant 0 : i32
    %c0_i32_1 = arith.constant 0 : i32
    return %c0_i32, %c0_i32_0 : i32, i32
  }
  func.func @transform_6(%arg0: i32) -> (i32, i32) {
    %c0_i32 = arith.constant 0 : i32
    %c0_i32_0 = arith.constant 0 : i32
    %c0_i32_1 = arith.constant 0 : i32
    return %c0_i32, %c0_i32_0 : i32, i32
  }
  func.func @transform_7(%arg0: i32) -> (i32, i32) {
    %c0_i32 = arith.constant 0 : i32
    %c0_i32_0 = arith.constant 0 : i32
    %c0_i32_1 = arith.constant 0 : i32
    return %c0_i32, %c0_i32_0 : i32, i32
  }
  func.func @transform_8(%arg0: i32) -> (i32, i32, i32) {
    %c0_i32 = arith.constant 0 : i32
    %c0_i32_0 = arith.constant 0 : i32
    %c0_i32_1 = arith.constant 0 : i32
    return %arg0, %c0_i32, %c0_i32_0 : i32, i32, i32
  }
}

module attributes {stable_mosaic.version = 11 : i64} {
  func.func @_cross_attn_block_kernel(%arg0: i32, %arg1: memref<1xf32, #tpu.memory_space<smem>>, %arg2: memref<1xf32, #tpu.memory_space<smem>>, %arg3: memref<1x8x32xf32, #tpu.memory_space<vmem>>, %arg4: memref<1x12x32xf32, #tpu.memory_space<vmem>>, %arg5: memref<1x8x12xf32, #tpu.memory_space<vmem>>, %arg6: memref<32x32xf32, #tpu.memory_space<vmem>>, %arg7: memref<1x32xf32, #tpu.memory_space<vmem>>, %arg8: memref<32x64xf32, #tpu.memory_space<vmem>>, %arg9: memref<1x64xf32, #tpu.memory_space<vmem>>, %arg10: memref<32x32xf32, #tpu.memory_space<vmem>>, %arg11: memref<1x32xf32, #tpu.memory_space<vmem>>, %arg12: memref<1x8x32xf32, #tpu.memory_space<vmem>>) attributes {dimension_semantics = [#tpu.dimension_semantics<parallel>], iteration_bounds = array<i64: 2>, scalar_prefetch = 0 : i64, scratch_operands = 0 : i64, tpu.core_type = #tpu.core_type<tc>, window_params = [{transform_indices = @transform_0, window_bounds = array<i64: 1>}, {transform_indices = @transform_1, window_bounds = array<i64: 1>}, {transform_indices = @transform_2, window_bounds = array<i64: 1, 8, 32>}, {transform_indices = @transform_3, window_bounds = array<i64: 1, 12, 32>}, {transform_indices = @transform_4, window_bounds = array<i64: 1, 8, 12>}, {pipeline_mode = #tpu.pipeline_mode<synchronous>, transform_indices = @transform_5, window_bounds = array<i64: 32, 32>}, {pipeline_mode = #tpu.pipeline_mode<synchronous>, transform_indices = @transform_6, window_bounds = array<i64: 1, 32>}, {pipeline_mode = #tpu.pipeline_mode<synchronous>, transform_indices = @transform_7, window_bounds = array<i64: 32, 64>}, {pipeline_mode = #tpu.pipeline_mode<synchronous>, transform_indices = @transform_8, window_bounds = array<i64: 1, 64>}, {pipeline_mode = #tpu.pipeline_mode<synchronous>, transform_indices = @transform_9, window_bounds = array<i64: 32, 32>}, {pipeline_mode = #tpu.pipeline_mode<synchronous>, transform_indices = @transform_10, window_bounds = array<i64: 1, 32>}, {transform_indices = @transform_11, window_bounds = array<i64: 1, 8, 32>}]} {
    %c0 = arith.constant 0 : index
    %c0_0 = arith.constant 0 : index
    %c0_1 = arith.constant 0 : index
    %0 = vector.load %arg3[%c0, %c0_0, %c0_1] : memref<1x8x32xf32, #tpu.memory_space<vmem>>, vector<1x8x32xf32>
    %1 = vector.shape_cast %0 : vector<1x8x32xf32> to vector<8x32xf32>
    %c0_2 = arith.constant 0 : index
    %c0_3 = arith.constant 0 : index
    %c0_4 = arith.constant 0 : index
    %2 = vector.load %arg4[%c0_2, %c0_3, %c0_4] : memref<1x12x32xf32, #tpu.memory_space<vmem>>, vector<1x12x32xf32>
    %3 = vector.shape_cast %2 : vector<1x12x32xf32> to vector<12x32xf32>
    %c0_5 = arith.constant 0 : index
    %4 = memref.load %arg1[%c0_5] : memref<1xf32, #tpu.memory_space<smem>>
    %c0_6 = arith.constant 0 : index
    %5 = memref.load %arg2[%c0_6] : memref<1xf32, #tpu.memory_space<smem>>
    %cst = arith.constant dense<0.000000e+00> : vector<8xf32>
    %6 = vector.multi_reduction <add>, %1, %cst [1] : vector<8x32xf32> to vector<8xf32>
    %7 = vector.shape_cast %6 : vector<8xf32> to vector<8x1xf32>
    %cst_7 = arith.constant 3.200000e+01 : f32
    %8 = vector.broadcast %cst_7 : f32 to vector<8x1xf32>
    %9 = arith.divf %7, %8 : vector<8x1xf32>
    %10 = vector.broadcast %9 : vector<8x1xf32> to vector<8x32xf32>
    %11 = arith.subf %1, %10 : vector<8x32xf32>
    %12 = arith.mulf %11, %11 : vector<8x32xf32>
    %cst_8 = arith.constant dense<0.000000e+00> : vector<8xf32>
    %13 = vector.multi_reduction <add>, %12, %cst_8 [1] : vector<8x32xf32> to vector<8xf32>
    %14 = vector.shape_cast %13 : vector<8xf32> to vector<8x1xf32>
    %cst_9 = arith.constant 3.100000e+01 : f32
    %15 = vector.broadcast %cst_9 : f32 to vector<8x1xf32>
    %16 = arith.divf %14, %15 : vector<8x1xf32>
    %17 = math.sqrt %16 : vector<8x1xf32>
    %18 = vector.broadcast %9 : vector<8x1xf32> to vector<8x32xf32>
    %19 = arith.subf %1, %18 : vector<8x32xf32>
    %20 = vector.broadcast %4 : f32 to vector<8x32xf32>
    %21 = arith.mulf %20, %19 : vector<8x32xf32>
    %cst_10 = arith.constant 9.99999997E-7 : f32
    %22 = vector.broadcast %cst_10 : f32 to vector<8x1xf32>
    %23 = arith.addf %17, %22 : vector<8x1xf32>
    %24 = vector.broadcast %23 : vector<8x1xf32> to vector<8x32xf32>
    %25 = arith.divf %21, %24 : vector<8x32xf32>
    %26 = vector.broadcast %5 : f32 to vector<8x32xf32>
    %27 = arith.addf %25, %26 : vector<8x32xf32>
    %c0_11 = arith.constant 0 : index
    %c0_12 = arith.constant 0 : index
    %28 = vector.load %arg6[%c0_11, %c0_12] : memref<32x32xf32, #tpu.memory_space<vmem>>, vector<32x32xf32>
    %cst_13 = arith.constant dense<0.000000e+00> : vector<8x32xf32>
    %29 = tpu.matmul %27, %28, %cst_13 {dimension_numbers = #tpu.dot_dimension_numbers<[1], [0], [0], [1], [0, 0, 1, 1], [], []>} : vector<8x32xf32>, vector<32x32xf32>, vector<8x32xf32> -> vector<8x32xf32>
    %c0_14 = arith.constant 0 : index
    %c0_15 = arith.constant 0 : index
    %30 = vector.load %arg7[%c0_14, %c0_15] : memref<1x32xf32, #tpu.memory_space<vmem>>, vector<1x32xf32>
    %31 = vector.broadcast %30 : vector<1x32xf32> to vector<8x32xf32>
    %32 = arith.addf %29, %31 : vector<8x32xf32>
    %c0_16 = arith.constant 0 : index
    %c0_17 = arith.constant 0 : index
    %33 = vector.load %arg8[%c0_16, %c0_17] : memref<32x64xf32, #tpu.memory_space<vmem>>, vector<32x64xf32>
    %cst_18 = arith.constant dense<0.000000e+00> : vector<12x64xf32>
    %34 = tpu.matmul %3, %33, %cst_18 {dimension_numbers = #tpu.dot_dimension_numbers<[1], [0], [0], [1], [0, 0, 1, 1], [], []>} : vector<12x32xf32>, vector<32x64xf32>, vector<12x64xf32> -> vector<12x64xf32>
    %c0_19 = arith.constant 0 : index
    %c0_20 = arith.constant 0 : index
    %35 = vector.load %arg9[%c0_19, %c0_20] : memref<1x64xf32, #tpu.memory_space<vmem>>, vector<1x64xf32>
    %36 = vector.broadcast %35 : vector<1x64xf32> to vector<12x64xf32>
    %37 = arith.addf %34, %36 : vector<12x64xf32>
    %38 = vector.extract_strided_slice %37 {offsets = [0, 0], sizes = [12, 32], strides = [1, 1]} : vector<12x64xf32> to vector<12x32xf32>
    %39 = vector.extract_strided_slice %37 {offsets = [0, 32], sizes = [12, 32], strides = [1, 1]} : vector<12x64xf32> to vector<12x32xf32>
    %c0_21 = arith.constant 0 : index
    %c0_22 = arith.constant 0 : index
    %c0_23 = arith.constant 0 : index
    %40 = vector.load %arg5[%c0_21, %c0_22, %c0_23] : memref<1x8x12xf32, #tpu.memory_space<vmem>>, vector<1x8x12xf32>
    %41 = vector.shape_cast %40 : vector<1x8x12xf32> to vector<8x12xf32>
    %cst_24 = arith.constant 0.000000e+00 : f32
    %42 = vector.broadcast %cst_24 : f32 to vector<8x12xf32>
    %43 = arith.cmpf ogt, %41, %42 : vector<8x12xf32>
    %44 = vector.extract_strided_slice %32 {offsets = [0, 0], sizes = [8, 8], strides = [1, 1]} : vector<8x32xf32> to vector<8x8xf32>
    %45 = vector.extract_strided_slice %38 {offsets = [0, 0], sizes = [12, 8], strides = [1, 1]} : vector<12x32xf32> to vector<12x8xf32>
    "tpu.trace_start"() <{level = 10 : i32, message = "qd,kd->qk"}> : () -> ()
    %cst_25 = arith.constant dense<0.000000e+00> : vector<8x12xf32>
    %46 = tpu.matmul %44, %45, %cst_25 {dimension_numbers = #tpu.dot_dimension_numbers<[1], [1], [0], [0], [0, 0, 1, 0], [], []>} : vector<8x8xf32>, vector<12x8xf32>, vector<8x12xf32> -> vector<8x12xf32>
    "tpu.trace_stop"() : () -> ()
    %cst_26 = arith.constant 0.353553385 : f32
    %47 = vector.broadcast %cst_26 : f32 to vector<8x12xf32>
    %48 = arith.mulf %46, %47 : vector<8x12xf32>
    %cst_27 = arith.constant -1.000000e+09 : f32
    %49 = vector.broadcast %cst_27 : f32 to vector<8x12xf32>
    %50 = arith.select %43, %48, %49 : vector<8x12xi1>, vector<8x12xf32>
    %cst_28 = arith.constant dense<0xFF800000> : vector<8xf32>
    %51 = vector.multi_reduction <maximumf>, %50, %cst_28 [1] : vector<8x12xf32> to vector<8xf32>
    %52 = vector.shape_cast %51 : vector<8xf32> to vector<8x1xf32>
    %53 = vector.broadcast %52 : vector<8x1xf32> to vector<8x12xf32>
    %54 = arith.subf %50, %53 : vector<8x12xf32>
    %55 = math.exp %54 : vector<8x12xf32>
    %cst_29 = arith.constant dense<0.000000e+00> : vector<8xf32>
    %56 = vector.multi_reduction <add>, %55, %cst_29 [1] : vector<8x12xf32> to vector<8xf32>
    %57 = vector.shape_cast %56 : vector<8xf32> to vector<8x1xf32>
    %58 = tpu.reciprocal %57 {approx = true} : vector<8x1xf32> -> vector<8x1xf32>
    %59 = vector.broadcast %58 : vector<8x1xf32> to vector<8x12xf32>
    %60 = arith.mulf %55, %59 : vector<8x12xf32>
    %61 = vector.extract_strided_slice %39 {offsets = [0, 0], sizes = [12, 8], strides = [1, 1]} : vector<12x32xf32> to vector<12x8xf32>
    %cst_30 = arith.constant dense<0.000000e+00> : vector<8x8xf32>
    %62 = tpu.matmul %60, %61, %cst_30 {dimension_numbers = #tpu.dot_dimension_numbers<[1], [0], [0], [1], [0, 0, 1, 1], [], []>} : vector<8x12xf32>, vector<12x8xf32>, vector<8x8xf32> -> vector<8x8xf32>
    %63 = vector.extract_strided_slice %32 {offsets = [0, 8], sizes = [8, 8], strides = [1, 1]} : vector<8x32xf32> to vector<8x8xf32>
    %64 = vector.extract_strided_slice %38 {offsets = [0, 8], sizes = [12, 8], strides = [1, 1]} : vector<12x32xf32> to vector<12x8xf32>
    "tpu.trace_start"() <{level = 10 : i32, message = "qd,kd->qk"}> : () -> ()
    %cst_31 = arith.constant dense<0.000000e+00> : vector<8x12xf32>
    %65 = tpu.matmul %63, %64, %cst_31 {dimension_numbers = #tpu.dot_dimension_numbers<[1], [1], [0], [0], [0, 0, 1, 0], [], []>} : vector<8x8xf32>, vector<12x8xf32>, vector<8x12xf32> -> vector<8x12xf32>
    "tpu.trace_stop"() : () -> ()
    %cst_32 = arith.constant 0.353553385 : f32
    %66 = vector.broadcast %cst_32 : f32 to vector<8x12xf32>
    %67 = arith.mulf %65, %66 : vector<8x12xf32>
    %cst_33 = arith.constant -1.000000e+09 : f32
    %68 = vector.broadcast %cst_33 : f32 to vector<8x12xf32>
    %69 = arith.select %43, %67, %68 : vector<8x12xi1>, vector<8x12xf32>
    %cst_34 = arith.constant dense<0xFF800000> : vector<8xf32>
    %70 = vector.multi_reduction <maximumf>, %69, %cst_34 [1] : vector<8x12xf32> to vector<8xf32>
    %71 = vector.shape_cast %70 : vector<8xf32> to vector<8x1xf32>
    %72 = vector.broadcast %71 : vector<8x1xf32> to vector<8x12xf32>
    %73 = arith.subf %69, %72 : vector<8x12xf32>
    %74 = math.exp %73 : vector<8x12xf32>
    %cst_35 = arith.constant dense<0.000000e+00> : vector<8xf32>
    %75 = vector.multi_reduction <add>, %74, %cst_35 [1] : vector<8x12xf32> to vector<8xf32>
    %76 = vector.shape_cast %75 : vector<8xf32> to vector<8x1xf32>
    %77 = tpu.reciprocal %76 {approx = true} : vector<8x1xf32> -> vector<8x1xf32>
    %78 = vector.broadcast %77 : vector<8x1xf32> to vector<8x12xf32>
    %79 = arith.mulf %74, %78 : vector<8x12xf32>
    %80 = vector.extract_strided_slice %39 {offsets = [0, 8], sizes = [12, 8], strides = [1, 1]} : vector<12x32xf32> to vector<12x8xf32>
    %cst_36 = arith.constant dense<0.000000e+00> : vector<8x8xf32>
    %81 = tpu.matmul %79, %80, %cst_36 {dimension_numbers = #tpu.dot_dimension_numbers<[1], [0], [0], [1], [0, 0, 1, 1], [], []>} : vector<8x12xf32>, vector<12x8xf32>, vector<8x8xf32> -> vector<8x8xf32>
    %82 = vector.extract_strided_slice %32 {offsets = [0, 16], sizes = [8, 8], strides = [1, 1]} : vector<8x32xf32> to vector<8x8xf32>
    %83 = vector.extract_strided_slice %38 {offsets = [0, 16], sizes = [12, 8], strides = [1, 1]} : vector<12x32xf32> to vector<12x8xf32>
    "tpu.trace_start"() <{level = 10 : i32, message = "qd,kd->qk"}> : () -> ()
    %cst_37 = arith.constant dense<0.000000e+00> : vector<8x12xf32>
    %84 = tpu.matmul %82, %83, %cst_37 {dimension_numbers = #tpu.dot_dimension_numbers<[1], [1], [0], [0], [0, 0, 1, 0], [], []>} : vector<8x8xf32>, vector<12x8xf32>, vector<8x12xf32> -> vector<8x12xf32>
    "tpu.trace_stop"() : () -> ()
    %cst_38 = arith.constant 0.353553385 : f32
    %85 = vector.broadcast %cst_38 : f32 to vector<8x12xf32>
    %86 = arith.mulf %84, %85 : vector<8x12xf32>
    %cst_39 = arith.constant -1.000000e+09 : f32
    %87 = vector.broadcast %cst_39 : f32 to vector<8x12xf32>
    %88 = arith.select %43, %86, %87 : vector<8x12xi1>, vector<8x12xf32>
    %cst_40 = arith.constant dense<0xFF800000> : vector<8xf32>
    %89 = vector.multi_reduction <maximumf>, %88, %cst_40 [1] : vector<8x12xf32> to vector<8xf32>
    %90 = vector.shape_cast %89 : vector<8xf32> to vector<8x1xf32>
    %91 = vector.broadcast %90 : vector<8x1xf32> to vector<8x12xf32>
    %92 = arith.subf %88, %91 : vector<8x12xf32>
    %93 = math.exp %92 : vector<8x12xf32>
    %cst_41 = arith.constant dense<0.000000e+00> : vector<8xf32>
    %94 = vector.multi_reduction <add>, %93, %cst_41 [1] : vector<8x12xf32> to vector<8xf32>
    %95 = vector.shape_cast %94 : vector<8xf32> to vector<8x1xf32>
    %96 = tpu.reciprocal %95 {approx = true} : vector<8x1xf32> -> vector<8x1xf32>
    %97 = vector.broadcast %96 : vector<8x1xf32> to vector<8x12xf32>
    %98 = arith.mulf %93, %97 : vector<8x12xf32>
    %99 = vector.extract_strided_slice %39 {offsets = [0, 16], sizes = [12, 8], strides = [1, 1]} : vector<12x32xf32> to vector<12x8xf32>
    %cst_42 = arith.constant dense<0.000000e+00> : vector<8x8xf32>
    %100 = tpu.matmul %98, %99, %cst_42 {dimension_numbers = #tpu.dot_dimension_numbers<[1], [0], [0], [1], [0, 0, 1, 1], [], []>} : vector<8x12xf32>, vector<12x8xf32>, vector<8x8xf32> -> vector<8x8xf32>
    %101 = vector.extract_strided_slice %32 {offsets = [0, 24], sizes = [8, 8], strides = [1, 1]} : vector<8x32xf32> to vector<8x8xf32>
    %102 = vector.extract_strided_slice %38 {offsets = [0, 24], sizes = [12, 8], strides = [1, 1]} : vector<12x32xf32> to vector<12x8xf32>
    "tpu.trace_start"() <{level = 10 : i32, message = "qd,kd->qk"}> : () -> ()
    %cst_43 = arith.constant dense<0.000000e+00> : vector<8x12xf32>
    %103 = tpu.matmul %101, %102, %cst_43 {dimension_numbers = #tpu.dot_dimension_numbers<[1], [1], [0], [0], [0, 0, 1, 0], [], []>} : vector<8x8xf32>, vector<12x8xf32>, vector<8x12xf32> -> vector<8x12xf32>
    "tpu.trace_stop"() : () -> ()
    %cst_44 = arith.constant 0.353553385 : f32
    %104 = vector.broadcast %cst_44 : f32 to vector<8x12xf32>
    %105 = arith.mulf %103, %104 : vector<8x12xf32>
    %cst_45 = arith.constant -1.000000e+09 : f32
    %106 = vector.broadcast %cst_45 : f32 to vector<8x12xf32>
    %107 = arith.select %43, %105, %106 : vector<8x12xi1>, vector<8x12xf32>
    %cst_46 = arith.constant dense<0xFF800000> : vector<8xf32>
    %108 = vector.multi_reduction <maximumf>, %107, %cst_46 [1] : vector<8x12xf32> to vector<8xf32>
    %109 = vector.shape_cast %108 : vector<8xf32> to vector<8x1xf32>
    %110 = vector.broadcast %109 : vector<8x1xf32> to vector<8x12xf32>
    %111 = arith.subf %107, %110 : vector<8x12xf32>
    %112 = math.exp %111 : vector<8x12xf32>
    %cst_47 = arith.constant dense<0.000000e+00> : vector<8xf32>
    %113 = vector.multi_reduction <add>, %112, %cst_47 [1] : vector<8x12xf32> to vector<8xf32>
    %114 = vector.shape_cast %113 : vector<8xf32> to vector<8x1xf32>
    %115 = tpu.reciprocal %114 {approx = true} : vector<8x1xf32> -> vector<8x1xf32>
    %116 = vector.broadcast %115 : vector<8x1xf32> to vector<8x12xf32>
    %117 = arith.mulf %112, %116 : vector<8x12xf32>
    %118 = vector.extract_strided_slice %39 {offsets = [0, 24], sizes = [12, 8], strides = [1, 1]} : vector<12x32xf32> to vector<12x8xf32>
    %cst_48 = arith.constant dense<0.000000e+00> : vector<8x8xf32>
    %119 = tpu.matmul %117, %118, %cst_48 {dimension_numbers = #tpu.dot_dimension_numbers<[1], [0], [0], [1], [0, 0, 1, 1], [], []>} : vector<8x12xf32>, vector<12x8xf32>, vector<8x8xf32> -> vector<8x8xf32>
    %120 = tpu.concatenate %62, %81, %100, %119 in 1 : vector<8x8xf32>, vector<8x8xf32>, vector<8x8xf32>, vector<8x8xf32> -> vector<8x32xf32>
    %c0_49 = arith.constant 0 : index
    %c0_50 = arith.constant 0 : index
    %121 = vector.load %arg10[%c0_49, %c0_50] : memref<32x32xf32, #tpu.memory_space<vmem>>, vector<32x32xf32>
    %cst_51 = arith.constant dense<0.000000e+00> : vector<8x32xf32>
    %122 = tpu.matmul %120, %121, %cst_51 {dimension_numbers = #tpu.dot_dimension_numbers<[1], [0], [0], [1], [0, 0, 1, 1], [], []>} : vector<8x32xf32>, vector<32x32xf32>, vector<8x32xf32> -> vector<8x32xf32>
    %c0_52 = arith.constant 0 : index
    %c0_53 = arith.constant 0 : index
    %123 = vector.load %arg11[%c0_52, %c0_53] : memref<1x32xf32, #tpu.memory_space<vmem>>, vector<1x32xf32>
    %124 = vector.broadcast %123 : vector<1x32xf32> to vector<8x32xf32>
    %125 = arith.addf %122, %124 : vector<8x32xf32>
    %126 = arith.addf %125, %1 : vector<8x32xf32>
    %c0_54 = arith.constant 0 : index
    %c0_55 = arith.constant 0 : index
    %c0_56 = arith.constant 0 : index
    %127 = vector.load %arg12[%c0_54, %c0_55, %c0_56] : memref<1x8x32xf32, #tpu.memory_space<vmem>>, vector<1x8x32xf32>
    %128 = vector.shape_cast %127 : vector<1x8x32xf32> to vector<8x32xf32>
    %129 = vector.shape_cast %126 : vector<8x32xf32> to vector<1x8x32xf32>
    tpu.vector_store %arg12[%c0_54, %c0_55, %c0_56], %129 {strides = array<i32>} : memref<1x8x32xf32, #tpu.memory_space<vmem>>, vector<1x8x32xf32>,
    return
  }
  func.func @transform_0(%arg0: i32) -> i32 {
    %c0_i32 = arith.constant 0 : i32
    %c0_i32_0 = arith.constant 0 : i32
    return %c0_i32 : i32
  }
  func.func @transform_1(%arg0: i32) -> i32 {
    %c0_i32 = arith.constant 0 : i32
    %c0_i32_0 = arith.constant 0 : i32
    return %c0_i32 : i32
  }
  func.func @transform_2(%arg0: i32) -> (i32, i32, i32) {
    %c0_i32 = arith.constant 0 : i32
    %c0_i32_0 = arith.constant 0 : i32
    %c0_i32_1 = arith.constant 0 : i32
    return %arg0, %c0_i32, %c0_i32_0 : i32, i32, i32
  }
  func.func @transform_3(%arg0: i32) -> (i32, i32, i32) {
    %c0_i32 = arith.constant 0 : i32
    %c0_i32_0 = arith.constant 0 : i32
    %c0_i32_1 = arith.constant 0 : i32
    return %arg0, %c0_i32, %c0_i32_0 : i32, i32, i32
  }
  func.func @transform_4(%arg0: i32) -> (i32, i32, i32) {
    %c0_i32 = arith.constant 0 : i32
    %c0_i32_0 = arith.constant 0 : i32
    %c0_i32_1 = arith.constant 0 : i32
    return %arg0, %c0_i32, %c0_i32_0 : i32, i32, i32
  }
  func.func @transform_5(%arg0: i32) -> (i32, i32) {
    %c0_i32 = arith.constant 0 : i32
    %c0_i32_0 = arith.constant 0 : i32
    %c0_i32_1 = arith.constant 0 : i32
    return %c0_i32, %c0_i32_0 : i32, i32
  }
  func.func @transform_6(%arg0: i32) -> (i32, i32) {
    %c0_i32 = arith.constant 0 : i32
    %c0_i32_0 = arith.constant 0 : i32
    %c0_i32_1 = arith.constant 0 : i32
    return %c0_i32, %c0_i32_0 : i32, i32
  }
  func.func @transform_7(%arg0: i32) -> (i32, i32) {
    %c0_i32 = arith.constant 0 : i32
    %c0_i32_0 = arith.constant 0 : i32
    %c0_i32_1 = arith.constant 0 : i32
    return %c0_i32, %c0_i32_0 : i32, i32
  }
  func.func @transform_8(%arg0: i32) -> (i32, i32) {
    %c0_i32 = arith.constant 0 : i32
    %c0_i32_0 = arith.constant 0 : i32
    %c0_i32_1 = arith.constant 0 : i32
    return %c0_i32, %c0_i32_0 : i32, i32
  }
  func.func @transform_9(%arg0: i32) -> (i32, i32) {
    %c0_i32 = arith.constant 0 : i32
    %c0_i32_0 = arith.constant 0 : i32
    %c0_i32_1 = arith.constant 0 : i32
    return %c0_i32, %c0_i32_0 : i32, i32
  }
  func.func @transform_10(%arg0: i32) -> (i32, i32) {
    %c0_i32 = arith.constant 0 : i32
    %c0_i32_0 = arith.constant 0 : i32
    %c0_i32_1 = arith.constant 0 : i32
    return %c0_i32, %c0_i32_0 : i32, i32
  }
  func.func @transform_11(%arg0: i32) -> (i32, i32, i32) {
    %c0_i32 = arith.constant 0 : i32
    %c0_i32_0 = arith.constant 0 : i32
    %c0_i32_1 = arith.constant 0 : i32
    return %arg0, %c0_i32, %c0_i32_0 : i32, i32, i32
  }
}

module attributes {stable_mosaic.version = 11 : i64} {
  func.func @_final_ln_kernel(%arg0: i32, %arg1: memref<1xf32, #tpu.memory_space<smem>>, %arg2: memref<1xf32, #tpu.memory_space<smem>>, %arg3: memref<1x8x32xf32, #tpu.memory_space<vmem>>, %arg4: memref<1x8x32xf32, #tpu.memory_space<vmem>>) attributes {dimension_semantics = [#tpu.dimension_semantics<parallel>], iteration_bounds = array<i64: 2>, scalar_prefetch = 0 : i64, scratch_operands = 0 : i64, tpu.core_type = #tpu.core_type<tc>, window_params = [{transform_indices = @transform_0, window_bounds = array<i64: 1>}, {transform_indices = @transform_1, window_bounds = array<i64: 1>}, {transform_indices = @transform_2, window_bounds = array<i64: 1, 8, 32>}, {transform_indices = @transform_3, window_bounds = array<i64: 1, 8, 32>}]} {
    %c0 = arith.constant 0 : index
    %c0_0 = arith.constant 0 : index
    %c0_1 = arith.constant 0 : index
    %0 = vector.load %arg3[%c0, %c0_0, %c0_1] : memref<1x8x32xf32, #tpu.memory_space<vmem>>, vector<1x8x32xf32>
    %1 = vector.shape_cast %0 : vector<1x8x32xf32> to vector<8x32xf32>
    %c0_2 = arith.constant 0 : index
    %2 = memref.load %arg1[%c0_2] : memref<1xf32, #tpu.memory_space<smem>>
    %c0_3 = arith.constant 0 : index
    %3 = memref.load %arg2[%c0_3] : memref<1xf32, #tpu.memory_space<smem>>
    %cst = arith.constant dense<0.000000e+00> : vector<8xf32>
    %4 = vector.multi_reduction <add>, %1, %cst [1] : vector<8x32xf32> to vector<8xf32>
    %5 = vector.shape_cast %4 : vector<8xf32> to vector<8x1xf32>
    %cst_4 = arith.constant 3.200000e+01 : f32
    %6 = vector.broadcast %cst_4 : f32 to vector<8x1xf32>
    %7 = arith.divf %5, %6 : vector<8x1xf32>
    %8 = vector.broadcast %7 : vector<8x1xf32> to vector<8x32xf32>
    %9 = arith.subf %1, %8 : vector<8x32xf32>
    %10 = arith.mulf %9, %9 : vector<8x32xf32>
    %cst_5 = arith.constant dense<0.000000e+00> : vector<8xf32>
    %11 = vector.multi_reduction <add>, %10, %cst_5 [1] : vector<8x32xf32> to vector<8xf32>
    %12 = vector.shape_cast %11 : vector<8xf32> to vector<8x1xf32>
    %cst_6 = arith.constant 3.100000e+01 : f32
    %13 = vector.broadcast %cst_6 : f32 to vector<8x1xf32>
    %14 = arith.divf %12, %13 : vector<8x1xf32>
    %15 = math.sqrt %14 : vector<8x1xf32>
    %16 = vector.broadcast %7 : vector<8x1xf32> to vector<8x32xf32>
    %17 = arith.subf %1, %16 : vector<8x32xf32>
    %18 = vector.broadcast %2 : f32 to vector<8x32xf32>
    %19 = arith.mulf %18, %17 : vector<8x32xf32>
    %cst_7 = arith.constant 9.99999997E-7 : f32
    %20 = vector.broadcast %cst_7 : f32 to vector<8x1xf32>
    %21 = arith.addf %15, %20 : vector<8x1xf32>
    %22 = vector.broadcast %21 : vector<8x1xf32> to vector<8x32xf32>
    %23 = arith.divf %19, %22 : vector<8x32xf32>
    %24 = vector.broadcast %3 : f32 to vector<8x32xf32>
    %25 = arith.addf %23, %24 : vector<8x32xf32>
    %c0_8 = arith.constant 0 : index
    %c0_9 = arith.constant 0 : index
    %c0_10 = arith.constant 0 : index
    %26 = vector.load %arg4[%c0_8, %c0_9, %c0_10] : memref<1x8x32xf32, #tpu.memory_space<vmem>>, vector<1x8x32xf32>
    %27 = vector.shape_cast %26 : vector<1x8x32xf32> to vector<8x32xf32>
    %28 = vector.shape_cast %25 : vector<8x32xf32> to vector<1x8x32xf32>
    tpu.vector_store %arg4[%c0_8, %c0_9, %c0_10], %28 {strides = array<i32>} : memref<1x8x32xf32, #tpu.memory_space<vmem>>, vector<1x8x32xf32>,
    return
  }
  func.func @transform_0(%arg0: i32) -> i32 {
    %c0_i32 = arith.constant 0 : i32
    %c0_i32_0 = arith.constant 0 : i32
    return %c0_i32 : i32
  }
  func.func @transform_1(%arg0: i32) -> i32 {
    %c0_i32 = arith.constant 0 : i32
    %c0_i32_0 = arith.constant 0 : i32
    return %c0_i32 : i32
  }
  func.func @transform_2(%arg0: i32) -> (i32, i32, i32) {
    %c0_i32 = arith.constant 0 : i32
    %c0_i32_0 = arith.constant 0 : i32
    %c0_i32_1 = arith.constant 0 : i32
    return %arg0, %c0_i32, %c0_i32_0 : i32, i32, i32
  }
  func.func @transform_3(%arg0: i32) -> (i32, i32, i32) {
    %c0_i32 = arith.constant 0 : i32
    %c0_i32_0 = arith.constant 0 : i32
    %c0_i32_1 = arith.constant 0 : i32
    return %arg0, %c0_i32, %c0_i32_0 : i32, i32, i32
  }
}

module attributes {stable_mosaic.version = 11 : i64} {
  func.func @_ffn_block_kernel(%arg0: i32, %arg1: memref<1xf32, #tpu.memory_space<smem>>, %arg2: memref<1xf32, #tpu.memory_space<smem>>, %arg3: memref<1x8x32xf32, #tpu.memory_space<vmem>>, %arg4: memref<32x64xf32, #tpu.memory_space<vmem>>, %arg5: memref<1x64xf32, #tpu.memory_space<vmem>>, %arg6: memref<64x32xf32, #tpu.memory_space<vmem>>, %arg7: memref<1x32xf32, #tpu.memory_space<vmem>>, %arg8: memref<1x8x32xf32, #tpu.memory_space<vmem>>) attributes {dimension_semantics = [#tpu.dimension_semantics<parallel>], iteration_bounds = array<i64: 2>, scalar_prefetch = 0 : i64, scratch_operands = 0 : i64, tpu.core_type = #tpu.core_type<tc>, window_params = [{transform_indices = @transform_0, window_bounds = array<i64: 1>}, {transform_indices = @transform_1, window_bounds = array<i64: 1>}, {transform_indices = @transform_2, window_bounds = array<i64: 1, 8, 32>}, {pipeline_mode = #tpu.pipeline_mode<synchronous>, transform_indices = @transform_3, window_bounds = array<i64: 32, 64>}, {pipeline_mode = #tpu.pipeline_mode<synchronous>, transform_indices = @transform_4, window_bounds = array<i64: 1, 64>}, {pipeline_mode = #tpu.pipeline_mode<synchronous>, transform_indices = @transform_5, window_bounds = array<i64: 64, 32>}, {pipeline_mode = #tpu.pipeline_mode<synchronous>, transform_indices = @transform_6, window_bounds = array<i64: 1, 32>}, {transform_indices = @transform_7, window_bounds = array<i64: 1, 8, 32>}]} {
    %c0 = arith.constant 0 : index
    %c0_0 = arith.constant 0 : index
    %c0_1 = arith.constant 0 : index
    %0 = vector.load %arg3[%c0, %c0_0, %c0_1] : memref<1x8x32xf32, #tpu.memory_space<vmem>>, vector<1x8x32xf32>
    %1 = vector.shape_cast %0 : vector<1x8x32xf32> to vector<8x32xf32>
    %c0_2 = arith.constant 0 : index
    %2 = memref.load %arg1[%c0_2] : memref<1xf32, #tpu.memory_space<smem>>
    %c0_3 = arith.constant 0 : index
    %3 = memref.load %arg2[%c0_3] : memref<1xf32, #tpu.memory_space<smem>>
    %cst = arith.constant dense<0.000000e+00> : vector<8xf32>
    %4 = vector.multi_reduction <add>, %1, %cst [1] : vector<8x32xf32> to vector<8xf32>
    %5 = vector.shape_cast %4 : vector<8xf32> to vector<8x1xf32>
    %cst_4 = arith.constant 3.200000e+01 : f32
    %6 = vector.broadcast %cst_4 : f32 to vector<8x1xf32>
    %7 = arith.divf %5, %6 : vector<8x1xf32>
    %8 = vector.broadcast %7 : vector<8x1xf32> to vector<8x32xf32>
    %9 = arith.subf %1, %8 : vector<8x32xf32>
    %10 = arith.mulf %9, %9 : vector<8x32xf32>
    %cst_5 = arith.constant dense<0.000000e+00> : vector<8xf32>
    %11 = vector.multi_reduction <add>, %10, %cst_5 [1] : vector<8x32xf32> to vector<8xf32>
    %12 = vector.shape_cast %11 : vector<8xf32> to vector<8x1xf32>
    %cst_6 = arith.constant 3.100000e+01 : f32
    %13 = vector.broadcast %cst_6 : f32 to vector<8x1xf32>
    %14 = arith.divf %12, %13 : vector<8x1xf32>
    %15 = math.sqrt %14 : vector<8x1xf32>
    %16 = vector.broadcast %7 : vector<8x1xf32> to vector<8x32xf32>
    %17 = arith.subf %1, %16 : vector<8x32xf32>
    %18 = vector.broadcast %2 : f32 to vector<8x32xf32>
    %19 = arith.mulf %18, %17 : vector<8x32xf32>
    %cst_7 = arith.constant 9.99999997E-7 : f32
    %20 = vector.broadcast %cst_7 : f32 to vector<8x1xf32>
    %21 = arith.addf %15, %20 : vector<8x1xf32>
    %22 = vector.broadcast %21 : vector<8x1xf32> to vector<8x32xf32>
    %23 = arith.divf %19, %22 : vector<8x32xf32>
    %24 = vector.broadcast %3 : f32 to vector<8x32xf32>
    %25 = arith.addf %23, %24 : vector<8x32xf32>
    %c0_8 = arith.constant 0 : index
    %c0_9 = arith.constant 0 : index
    %26 = vector.load %arg4[%c0_8, %c0_9] : memref<32x64xf32, #tpu.memory_space<vmem>>, vector<32x64xf32>
    %cst_10 = arith.constant dense<0.000000e+00> : vector<8x64xf32>
    %27 = tpu.matmul %25, %26, %cst_10 {dimension_numbers = #tpu.dot_dimension_numbers<[1], [0], [0], [1], [0, 0, 1, 1], [], []>} : vector<8x32xf32>, vector<32x64xf32>, vector<8x64xf32> -> vector<8x64xf32>
    %c0_11 = arith.constant 0 : index
    %c0_12 = arith.constant 0 : index
    %28 = vector.load %arg5[%c0_11, %c0_12] : memref<1x64xf32, #tpu.memory_space<vmem>>, vector<1x64xf32>
    %29 = vector.broadcast %28 : vector<1x64xf32> to vector<8x64xf32>
    %30 = arith.addf %27, %29 : vector<8x64xf32>
    %cst_13 = arith.constant 0.000000e+00 : f32
    %31 = vector.broadcast %cst_13 : f32 to vector<8x64xf32>
    %32 = arith.maximumf %30, %31 : vector<8x64xf32>
    %c0_14 = arith.constant 0 : index
    %c0_15 = arith.constant 0 : index
    %33 = vector.load %arg6[%c0_14, %c0_15] : memref<64x32xf32, #tpu.memory_space<vmem>>, vector<64x32xf32>
    %cst_16 = arith.constant dense<0.000000e+00> : vector<8x32xf32>
    %34 = tpu.matmul %32, %33, %cst_16 {dimension_numbers = #tpu.dot_dimension_numbers<[1], [0], [0], [1], [0, 0, 1, 1], [], []>} : vector<8x64xf32>, vector<64x32xf32>, vector<8x32xf32> -> vector<8x32xf32>
    %c0_17 = arith.constant 0 : index
    %c0_18 = arith.constant 0 : index
    %35 = vector.load %arg7[%c0_17, %c0_18] : memref<1x32xf32, #tpu.memory_space<vmem>>, vector<1x32xf32>
    %36 = vector.broadcast %35 : vector<1x32xf32> to vector<8x32xf32>
    %37 = arith.addf %34, %36 : vector<8x32xf32>
    %38 = arith.addf %37, %1 : vector<8x32xf32>
    %c0_19 = arith.constant 0 : index
    %c0_20 = arith.constant 0 : index
    %c0_21 = arith.constant 0 : index
    %39 = vector.load %arg8[%c0_19, %c0_20, %c0_21] : memref<1x8x32xf32, #tpu.memory_space<vmem>>, vector<1x8x32xf32>
    %40 = vector.shape_cast %39 : vector<1x8x32xf32> to vector<8x32xf32>
    %41 = vector.shape_cast %38 : vector<8x32xf32> to vector<1x8x32xf32>
    tpu.vector_store %arg8[%c0_19, %c0_20, %c0_21], %41 {strides = array<i32>} : memref<1x8x32xf32, #tpu.memory_space<vmem>>, vector<1x8x32xf32>,
    return
  }
  func.func @transform_0(%arg0: i32) -> i32 {
    %c0_i32 = arith.constant 0 : i32
    %c0_i32_0 = arith.constant 0 : i32
    return %c0_i32 : i32
  }
  func.func @transform_1(%arg0: i32) -> i32 {
    %c0_i32 = arith.constant 0 : i32
    %c0_i32_0 = arith.constant 0 : i32
    return %c0_i32 : i32
  }
  func.func @transform_2(%arg0: i32) -> (i32, i32, i32) {
    %c0_i32 = arith.constant 0 : i32
    %c0_i32_0 = arith.constant 0 : i32
    %c0_i32_1 = arith.constant 0 : i32
    return %arg0, %c0_i32, %c0_i32_0 : i32, i32, i32
  }
  func.func @transform_3(%arg0: i32) -> (i32, i32) {
    %c0_i32 = arith.constant 0 : i32
    %c0_i32_0 = arith.constant 0 : i32
    %c0_i32_1 = arith.constant 0 : i32
    return %c0_i32, %c0_i32_0 : i32, i32
  }
  func.func @transform_4(%arg0: i32) -> (i32, i32) {
    %c0_i32 = arith.constant 0 : i32
    %c0_i32_0 = arith.constant 0 : i32
    %c0_i32_1 = arith.constant 0 : i32
    return %c0_i32, %c0_i32_0 : i32, i32
  }
  func.func @transform_5(%arg0: i32) -> (i32, i32) {
    %c0_i32 = arith.constant 0 : i32
    %c0_i32_0 = arith.constant 0 : i32
    %c0_i32_1 = arith.constant 0 : i32
    return %c0_i32, %c0_i32_0 : i32, i32
  }
  func.func @transform_6(%arg0: i32) -> (i32, i32) {
    %c0_i32 = arith.constant 0 : i32
    %c0_i32_0 = arith.constant 0 : i32
    %c0_i32_1 = arith.constant 0 : i32
    return %c0_i32, %c0_i32_0 : i32, i32
  }
  func.func @transform_7(%arg0: i32) -> (i32, i32, i32) {
    %c0_i32 = arith.constant 0 : i32
    %c0_i32_0 = arith.constant 0 : i32
    %c0_i32_1 = arith.constant 0 : i32
    return %arg0, %c0_i32, %c0_i32_0 : i32, i32, i32
  }
}

</mosaic_0001>

<llo_original>
// kernel: decoder_forward.13
$region0: #{decoder_forward.13}
  #allocation0 [shape = 'u32[]', space=smem, size = 0x4, offset = 0x4, fixed_abs, tag = 'smem constant byte address 0x4 - core index']
  #allocation1 [shape = 'u32[144,128]{1,0:T(1,128)}', space=vmem, size = 0x12000, scoped, tag = 'internal scratch']
  #allocation2 [shape = 'f32[1]{0:T(128)S(6)}', space=smem, size = 0x200, scoped, tag = 'scoped memory for decoder_forward.13']
  #allocation3 [shape = 'f32[1]{0:T(128)S(6)}', space=smem, size = 0x200, scoped, tag = 'scoped memory for decoder_forward.13']
  %s0 = inlined_call_operand.<no memory space> [shape: f32[1], index: 0, kind: input, shape index: {}]
  %s1 = inlined_call_operand.<no memory space> [shape: f32[1], index: 1, kind: input, shape index: {}]
  %s2 = inlined_call_operand.vmem [shape: f32[2,8,32], index: 2, kind: input, shape index: {}]
  %s3 = inlined_call_operand.hbm [shape: f32[2,8,32], index: 3, kind: output, shape index: {}]
  %s4 = sld [smem:[#allocation0]]
  $region45: #{decoder_forward.13} parent=0
    _
  %s6 = ssub.s32 1, %s4
  %s7 = scalar_select 0, %s6, %s4
  %8 = sst [smem:[#allocation2]] %s0
  %9 = sst [smem:[#allocation3]] %s1
  $region1: #{decoder_forward.13} parent=0
    #allocation4 [shape = 'u8[8192]{0}', space=vmem, size = 0x2000, scoped, tag = 'output window, operand 0']
    #allocation5 [shape = 's32[2]{0}', space=sflag, size = 0x8, scoped, tag = 'scoped memory for decoder_forward.13']
    %10 = vsyncpa [#allocation5], 0
    %s11 = scalar_lea.sflag [#allocation5], 1
    %12 = vsyncpa %s11, 0
    loop: start=0, step=1, limit=4
    $region2: #{decoder_forward.13} parent=1 // loop_pre_header
      _
    $region3: #{decoder_forward.13} parent=1 // loop_header
      %s14 = sphi 0, %s18
      %p15 = scmp.ge.s32.totalorder %s14, 4
      %s22 = sphi 0, %s22
      %s24 = sphi 0, %s22
      %s25 = sphi 0, %s24
      %s39 = sphi 0, %s25
      %s43 = sphi 0, %s43
      %s45 = sphi 0, %s43
      %s46 = sphi 0, %s45
      %s60 = sphi 0, %s46
      %s66 = sphi 0, %s68
      %s69 = sphi 0, %s66
      %s70 = sphi 0, %s69
      %s86 = sphi 0, %s70
      %s92 = sphi 0, %s94
      %s95 = sphi 0, %s92
      %s96 = sphi 0, %s95
      %s112 = sphi 0, %s96
    $region4: #{decoder_forward.13} parent=1 // loop_header_branch
      %17 = sbr.rel (%p15) target = $region8
    $region5: #{decoder_forward.13} parent=1 // loop_body
      %s19 = ssub.s32 %s14, 1
      %s20 = ssub.s32 %s14, 2
      %s21 = sadd.s32 %s14, 1
      %s23 = sadd.s32 %s22, 1
      %p26 = scmp.eq.s32.totalorder %s14, 1
      %p27 = scmp.ne.s32.totalorder %s22, %s24
      %p28 = scmp.eq.s32.totalorder %s14, 0
      %p29 = por %p27, %p28
      %p30 = scmp.ne.s32.totalorder %s22, %s24
      %p31 = scmp.eq.s32.totalorder %s19, 1
      %p32 = por %p30, %p31
      %p33 = scmp.ne.s32.totalorder %s24, %s25
      %p34 = scmp.eq.s32.totalorder %s19, 0
      %p35 = por %p33, %p34
      %p36 = scmp.ne.s32.totalorder %s24, %s25
      %p37 = scmp.eq.s32.totalorder %s20, 1
      %p38 = por %p36, %p37
      %p40 = scmp.ne.s32.totalorder %s25, %s39
      %p41 = scmp.eq.s32.totalorder %s20, 0
      %p42 = por %p40, %p41
      %s44 = sadd.s32 %s43, 1
      %p47 = scmp.eq.s32.totalorder %s14, 1
      %p48 = scmp.ne.s32.totalorder %s43, %s45
      %p49 = scmp.eq.s32.totalorder %s14, 0
      %p50 = por %p48, %p49
      %p51 = scmp.ne.s32.totalorder %s43, %s45
      %p52 = scmp.eq.s32.totalorder %s19, 1
      %p53 = por %p51, %p52
      %p54 = scmp.ne.s32.totalorder %s45, %s46
      %p55 = scmp.eq.s32.totalorder %s19, 0
      %p56 = por %p54, %p55
      %p57 = scmp.ne.s32.totalorder %s45, %s46
      %p58 = scmp.eq.s32.totalorder %s20, 1
      %p59 = por %p57, %p58
      %p61 = scmp.ne.s32.totalorder %s46, %s60
      %p62 = scmp.eq.s32.totalorder %s20, 0
      %p63 = por %p61, %p62
      %s64 = ssub.s32 %s14, %s21
      %p65 = scmp.eq.s32.totalorder %s64, 0
      %s67 = sadd.s32 %s66, 1
      %s68 = scalar_select %p65, %s66, %s67
      %p71 = pneg %p65
      %p72 = scmp.eq.s32.totalorder %s14, 1
      %p73 = por %p71, %p72
      %p74 = scmp.ne.s32.totalorder %s66, %s69
      %p75 = scmp.eq.s32.totalorder %s14, 0
      %p76 = por %p74, %p75
      %p77 = scmp.ne.s32.totalorder %s66, %s69
      %p78 = scmp.eq.s32.totalorder %s19, 1
      %p79 = por %p77, %p78
      %p80 = scmp.ne.s32.totalorder %s69, %s70
      %p81 = scmp.eq.s32.totalorder %s19, 0
      %p82 = por %p80, %p81
      %p83 = scmp.ne.s32.totalorder %s69, %s70
      %p84 = scmp.eq.s32.totalorder %s20, 1
      %p85 = por %p83, %p84
      %p87 = scmp.ne.s32.totalorder %s70, %s86
      %p88 = scmp.eq.s32.totalorder %s20, 0
      %p89 = por %p87, %p88
      %s90 = ssub.s32 %s14, %s21
      %p91 = scmp.eq.s32.totalorder %s90, 0
      %s93 = sadd.s32 %s92, 1
      %s94 = scalar_select %p91, %s92, %s93
      %p97 = pneg %p91
      %p98 = scmp.eq.s32.totalorder %s14, 1
      %p99 = por %p97, %p98
      %p100 = scmp.ne.s32.totalorder %s92, %s95
      %p101 = scmp.eq.s32.totalorder %s14, 0
      %p102 = por %p100, %p101
      %p103 = scmp.ne.s32.totalorder %s92, %s95
      %p104 = scmp.eq.s32.totalorder %s19, 1
      %p105 = por %p103, %p104
      %p106 = scmp.ne.s32.totalorder %s95, %s96
      %p107 = scmp.eq.s32.totalorder %s19, 0
      %p108 = por %p106, %p107
      %p109 = scmp.ne.s32.totalorder %s95, %s96
      %p110 = scmp.eq.s32.totalorder %s20, 1
      %p111 = por %p109, %p110
      %p113 = scmp.ne.s32.totalorder %s96, %s112
      %p114 = scmp.eq.s32.totalorder %s20, 0
      %p115 = por %p113, %p114
      %p116 = scmp.le.s32.totalorder 1, %s14
      %p117 = scmp.lt.s32.totalorder %s14, 3
      %p118 = pnand %p116, %p117
      %p119 = pneg %p118
      // Predicated region
      $region9: #{decoder_forward.13} parent=5 // pred_check
        _
      $region10: #{decoder_forward.13} parent=5 // pred_check_branch
        %121 = sbr.rel (%p118) target = $region12
      $region11: #{decoder_forward.13} parent=5 // pred_region
        %s122 = ssub.s32 %s14, 1
        // Predicated region
        $region13: #{decoder_forward.13} parent=11 // pred_check
          %p123 = pneg %p35
        $region14: #{decoder_forward.13} parent=11 // pred_check_branch
          %125 = sbr.rel (%p123) target = $region16
        $region15: #{decoder_forward.13} parent=11 // pred_region
          _
        $region16: #{decoder_forward.13} parent=11 // pred_fallthru
          _
        // Predicated region
        $region17: #{decoder_forward.13} parent=11 // pred_check
          %p126 = pneg %p56
        $region18: #{decoder_forward.13} parent=11 // pred_check_branch
          %128 = sbr.rel (%p126) target = $region20
        $region19: #{decoder_forward.13} parent=11 // pred_region
          _
        $region20: #{decoder_forward.13} parent=11 // pred_fallthru
          _
      $region12: #{decoder_forward.13} parent=5 // pred_fallthru
        _
      %p129 = scmp.lt.s32.totalorder %s14, 2
      // Predicated region
      $region21: #{decoder_forward.13} parent=5 // pred_check
        %p130 = pneg %p129
      $region22: #{decoder_forward.13} parent=5 // pred_check_branch
        %132 = sbr.rel (%p130) target = $region24
      $region23: #{decoder_forward.13} parent=5 // pred_region
        // Predicated region
        $region25: #{decoder_forward.13} parent=23 // pred_check
          %p133 = pneg %p76
        $region26: #{decoder_forward.13} parent=23 // pred_check_branch
          %135 = sbr.rel (%p133) target = $region28
        $region27: #{decoder_forward.13} parent=23 // pred_region
          %p136 = scmp.lt.s32.totalorder %s14, 1
          %s137 = scalar_select %p136, %s14, 1
          %s138 = smul.addr %s137, 8
          %s139 = scalar_lea.vmem %s2, %s138
        $region28: #{decoder_forward.13} parent=23 // pred_fallthru
          _
      $region24: #{decoder_forward.13} parent=5 // pred_fallthru
        _
      %p140 = scmp.le.s32.totalorder 1, %s14
      %p141 = scmp.lt.s32.totalorder %s14, 3
      %p142 = pnand %p140, %p141
      %p143 = pneg %p142
      // Predicated region
      $region29: #{decoder_forward.13} parent=5 // pred_check
        _
      $region30: #{decoder_forward.13} parent=5 // pred_check_branch
        %145 = sbr.rel (%p142) target = $region32
      $region31: #{decoder_forward.13} parent=5 // pred_region
        %s146 = ssub.s32 %s14, 1
        %p147 = pneg %p35
        %p148 = pneg %p32
        %p149 = pneg %p56
        %p150 = pneg %p53
        %p151 = scmp.lt.s32.totalorder %s19, 1
        %s152 = scalar_select %p151, %s19, 1
        %s153 = smul.addr %s152, 8
        %s154 = scalar_lea.vmem %s2, %s153
        %p155 = pneg %p82
        %p156 = pneg %p79
        %p157 = pneg %p108
        %p158 = pneg %p105
        %s159 = sand.u32 %s95, 1
        %s160 = scalar_lea.sflag [#allocation5], %s159
        %s161 = sand.u32 %s95, 1
        %s162 = smul.addr %s161, 8
        %s163 = scalar_lea.vmem [#allocation4], %s162
        %p164 = scmp.lt.s32.totalorder %s19, 1
        %s165 = scalar_select %p164, %s19, 1
        %s166 = smul.addr %s165, 8
        %s167 = scalar_lea.vmem %s2, %s166
        %v168 = vld [vmem:[%s167] sm:$0xff]
        %s169 = sld [smem:[#allocation2]]
        %s170 = sld [smem:[#allocation3]]
        %vm171 = vcmask 261120
        %v172 = vsel %vm171, %v168, 0.0
        %173 = vadd.xlane.f32.xlu0 %v172
        %v174 = vpop.xlane.xlu0 %173
        %v175 = vrcp.pop 32.0
        %v176 = vmul.f32 %v174, %v175
        %v177 = vsub.f32 %v168, %v176
        %v178 = vmul.f32 %v177, %v177
        %v179 = vsel %vm171, %v178, 0.0
        %180 = vadd.xlane.f32.xlu0 %v179
        %v181 = vpop.xlane.xlu0 %180
        %v182 = vrcp.pop 31.0
        %v183 = vmul.f32 %v181, %v182
        %v184 = vrsqrt.pop %v183
        %v185 = vmul.f32 %v183, %v184
        %vm186 = vcmp.eq.f32.partialorder %v183, inf
        %v187 = vsel %vm186, %v183, %v185
        %vm188 = vcmp.eq.f32.partialorder %v183, 0.0
        %v189 = vand.u32 %v183, 2147483648
        %v190 = vsel %vm188, %v189, %v187
        %v191 = vstv %s169
        %v192 = vmul.f32 %v191, %v177
        %v193 = vadd.f32 %v190, 1e-06
        %v194 = vrcp.pop %v193
        %v195 = vmul.f32 %v192, %v194
        %v196 = vstv %s170
        %v197 = vadd.f32 %v195, %v196
        %198 = vst.msk [vmem:[%s163] sm:$0xff] %vm171, %v197
        %s199 = sand.u32 %s95, 1
        %s200 = scalar_lea.sflag [#allocation5], %s199
        %s201 = sand.u32 %s95, 1
        %s202 = smul.addr %s201, 8
        %s203 = scalar_lea.vmem [#allocation4], %s202
        // Predicated region
        $region33: #{decoder_forward.13} parent=31 // pred_check
          %p204 = pneg %p105
        $region34: #{decoder_forward.13} parent=31 // pred_check_branch
          %206 = sbr.rel (%p204) target = $region36
        $region35: #{decoder_forward.13} parent=31 // pred_region
          %s208 = ssub.s32 128, 128
          %209 = vsyncadd %s200, %s208
          %s210 = smul.addr %s19, 128
          %s211 = scalar_lea.hbm %s3, %s210
          %s213 = sshll.u32 %s203, 4
          %s214 = int_to_ptr.vmem [resolvable:$true] %s213
          %216 = dma.vmem_to_hbm [thread:$0]  %s214, 128, %s211, %s200
        $region36: #{decoder_forward.13} parent=31 // pred_fallthru
          _
      $region32: #{decoder_forward.13} parent=5 // pred_fallthru
        _
      %p217 = scmp.le.s32.totalorder 2, %s14
      // Predicated region
      $region37: #{decoder_forward.13} parent=5 // pred_check
        %p218 = pneg %p217
      $region38: #{decoder_forward.13} parent=5 // pred_check_branch
        %220 = sbr.rel (%p218) target = $region40
      $region39: #{decoder_forward.13} parent=5 // pred_region
        %s221 = ssub.s32 %s14, 2
        // Predicated region
        $region41: #{decoder_forward.13} parent=39 // pred_check
          %p222 = pneg %p111
        $region42: #{decoder_forward.13} parent=39 // pred_check_branch
          %224 = sbr.rel (%p222) target = $region44
        $region43: #{decoder_forward.13} parent=39 // pred_region
          %s225 = sand.u32 %s96, 1
          %s226 = scalar_lea.sflag [#allocation5], %s225
          %s227 = sand.u32 %s96, 1
          %s228 = smul.addr %s227, 8
          %s229 = scalar_lea.vmem [#allocation4], %s228
          %230 = dma.done %s226, 128
        $region44: #{decoder_forward.13} parent=39 // pred_fallthru
          _
      $region40: #{decoder_forward.13} parent=5 // pred_fallthru
        _
    $region6: #{decoder_forward.13} parent=1 // loop_footer
      %s18 = sadd.s32 1, %s14
    $region7: #{decoder_forward.13} parent=1 // loop_footer_branch
      %13 = sbr.rel target = $region3
    $region8: #{decoder_forward.13} parent=1 // loop_exit
      _
    %231 = vsyncpa [#allocation5], 1
    %s232 = scalar_lea.sflag [#allocation5], 1
    %233 = vsyncpa %s232, 1

// kernel: decoder_forward.9
$region0: #{decoder_forward.9}
  #allocation0 [shape = 'u32[]', space=smem, size = 0x4, offset = 0x4, fixed_abs, tag = 'smem constant byte address 0x4 - core index']
  #allocation1 [shape = 'u32[144,128]{1,0:T(1,128)}', space=vmem, size = 0x12000, scoped, tag = 'internal scratch']
  #allocation2 [shape = 'f32[1]{0:T(128)S(6)}', space=smem, size = 0x200, scoped, tag = 'scoped memory for decoder_forward.9']
  #allocation3 [shape = 'f32[1]{0:T(128)S(6)}', space=smem, size = 0x200, scoped, tag = 'scoped memory for decoder_forward.9']
  %s0 = inlined_call_operand.<no memory space> [shape: f32[1], index: 0, kind: input, shape index: {}]
  %s1 = inlined_call_operand.<no memory space> [shape: f32[1], index: 1, kind: input, shape index: {}]
  %s2 = inlined_call_operand.vmem [shape: f32[2,8,32], index: 2, kind: input, shape index: {}]
  %s3 = inlined_call_operand.vmem [shape: f32[32,64], index: 3, kind: input, shape index: {}]
  %s4 = inlined_call_operand.vmem [shape: f32[1,64], index: 4, kind: input, shape index: {}]
  %s5 = inlined_call_operand.vmem [shape: f32[64,32], index: 5, kind: input, shape index: {}]
  %s6 = inlined_call_operand.vmem [shape: f32[1,32], index: 6, kind: input, shape index: {}]
  %s7 = inlined_call_operand.vmem [shape: f32[2,8,32], index: 7, kind: output, shape index: {}]
  %s8 = sld [smem:[#allocation0]]
  $region61: #{decoder_forward.9} parent=0
    _
  %s10 = ssub.s32 1, %s8
  %s11 = scalar_select 0, %s10, %s8
  %12 = sst [smem:[#allocation2]] %s0
  %13 = sst [smem:[#allocation3]] %s1
  loop: start=0, step=1, limit=4
  $region2: #{decoder_forward.9} parent=0 // loop_pre_header
    _
  $region3: #{decoder_forward.9} parent=0 // loop_header
    %s15 = sphi 0, %s19
    %p16 = scmp.ge.s32.totalorder %s15, 4
    %s23 = sphi 0, %s23
    %s25 = sphi 0, %s23
    %s26 = sphi 0, %s25
    %s40 = sphi 0, %s26
    %s44 = sphi 0, %s44
    %s46 = sphi 0, %s44
    %s47 = sphi 0, %s46
    %s61 = sphi 0, %s47
    %s67 = sphi 0, %s69
    %s70 = sphi 0, %s67
    %s71 = sphi 0, %s70
    %s87 = sphi 0, %s71
    %s91 = sphi 0, %s91
    %s93 = sphi 0, %s91
    %s94 = sphi 0, %s93
    %s108 = sphi 0, %s94
    %s112 = sphi 0, %s112
    %s114 = sphi 0, %s112
    %s115 = sphi 0, %s114
    %s129 = sphi 0, %s115
    %s133 = sphi 0, %s133
    %s135 = sphi 0, %s133
    %s136 = sphi 0, %s135
    %s150 = sphi 0, %s136
    %s154 = sphi 0, %s154
    %s156 = sphi 0, %s154
    %s157 = sphi 0, %s156
    %s171 = sphi 0, %s157
    %s177 = sphi 0, %s179
    %s180 = sphi 0, %s177
    %s181 = sphi 0, %s180
    %s197 = sphi 0, %s181
  $region4: #{decoder_forward.9} parent=0 // loop_header_branch
    %18 = sbr.rel (%p16) target = $region8
  $region5: #{decoder_forward.9} parent=0 // loop_body
    %s20 = ssub.s32 %s15, 1
    %s21 = ssub.s32 %s15, 2
    %s22 = sadd.s32 %s15, 1
    %s24 = sadd.s32 %s23, 1
    %p27 = scmp.eq.s32.totalorder %s15, 1
    %p28 = scmp.ne.s32.totalorder %s23, %s25
    %p29 = scmp.eq.s32.totalorder %s15, 0
    %p30 = por %p28, %p29
    %p31 = scmp.ne.s32.totalorder %s23, %s25
    %p32 = scmp.eq.s32.totalorder %s20, 1
    %p33 = por %p31, %p32
    %p34 = scmp.ne.s32.totalorder %s25, %s26
    %p35 = scmp.eq.s32.totalorder %s20, 0
    %p36 = por %p34, %p35
    %p37 = scmp.ne.s32.totalorder %s25, %s26
    %p38 = scmp.eq.s32.totalorder %s21, 1
    %p39 = por %p37, %p38
    %p41 = scmp.ne.s32.totalorder %s26, %s40
    %p42 = scmp.eq.s32.totalorder %s21, 0
    %p43 = por %p41, %p42
    %s45 = sadd.s32 %s44, 1
    %p48 = scmp.eq.s32.totalorder %s15, 1
    %p49 = scmp.ne.s32.totalorder %s44, %s46
    %p50 = scmp.eq.s32.totalorder %s15, 0
    %p51 = por %p49, %p50
    %p52 = scmp.ne.s32.totalorder %s44, %s46
    %p53 = scmp.eq.s32.totalorder %s20, 1
    %p54 = por %p52, %p53
    %p55 = scmp.ne.s32.totalorder %s46, %s47
    %p56 = scmp.eq.s32.totalorder %s20, 0
    %p57 = por %p55, %p56
    %p58 = scmp.ne.s32.totalorder %s46, %s47
    %p59 = scmp.eq.s32.totalorder %s21, 1
    %p60 = por %p58, %p59
    %p62 = scmp.ne.s32.totalorder %s47, %s61
    %p63 = scmp.eq.s32.totalorder %s21, 0
    %p64 = por %p62, %p63
    %s65 = ssub.s32 %s15, %s22
    %p66 = scmp.eq.s32.totalorder %s65, 0
    %s68 = sadd.s32 %s67, 1
    %s69 = scalar_select %p66, %s67, %s68
    %p72 = pneg %p66
    %p73 = scmp.eq.s32.totalorder %s15, 1
    %p74 = por %p72, %p73
    %p75 = scmp.ne.s32.totalorder %s67, %s70
    %p76 = scmp.eq.s32.totalorder %s15, 0
    %p77 = por %p75, %p76
    %p78 = scmp.ne.s32.totalorder %s67, %s70
    %p79 = scmp.eq.s32.totalorder %s20, 1
    %p80 = por %p78, %p79
    %p81 = scmp.ne.s32.totalorder %s70, %s71
    %p82 = scmp.eq.s32.totalorder %s20, 0
    %p83 = por %p81, %p82
    %p84 = scmp.ne.s32.totalorder %s70, %s71
    %p85 = scmp.eq.s32.totalorder %s21, 1
    %p86 = por %p84, %p85
    %p88 = scmp.ne.s32.totalorder %s71, %s87
    %p89 = scmp.eq.s32.totalorder %s21, 0
    %p90 = por %p88, %p89
    %s92 = sadd.s32 %s91, 1
    %p95 = scmp.eq.s32.totalorder %s15, 1
    %p96 = scmp.ne.s32.totalorder %s91, %s93
    %p97 = scmp.eq.s32.totalorder %s15, 0
    %p98 = por %p96, %p97
    %p99 = scmp.ne.s32.totalorder %s91, %s93
    %p100 = scmp.eq.s32.totalorder %s20, 1
    %p101 = por %p99, %p100
    %p102 = scmp.ne.s32.totalorder %s93, %s94
    %p103 = scmp.eq.s32.totalorder %s20, 0
    %p104 = por %p102, %p103
    %p105 = scmp.ne.s32.totalorder %s93, %s94
    %p106 = scmp.eq.s32.totalorder %s21, 1
    %p107 = por %p105, %p106
    %p109 = scmp.ne.s32.totalorder %s94, %s108
    %p110 = scmp.eq.s32.totalorder %s21, 0
    %p111 = por %p109, %p110
    %s113 = sadd.s32 %s112, 1
    %p116 = scmp.eq.s32.totalorder %s15, 1
    %p117 = scmp.ne.s32.totalorder %s112, %s114
    %p118 = scmp.eq.s32.totalorder %s15, 0
    %p119 = por %p117, %p118
    %p120 = scmp.ne.s32.totalorder %s112, %s114
    %p121 = scmp.eq.s32.totalorder %s20, 1
    %p122 = por %p120, %p121
    %p123 = scmp.ne.s32.totalorder %s114, %s115
    %p124 = scmp.eq.s32.totalorder %s20, 0
    %p125 = por %p123, %p124
    %p126 = scmp.ne.s32.totalorder %s114, %s115
    %p127 = scmp.eq.s32.totalorder %s21, 1
    %p128 = por %p126, %p127
    %p130 = scmp.ne.s32.totalorder %s115, %s129
    %p131 = scmp.eq.s32.totalorder %s21, 0
    %p132 = por %p130, %p131
    %s134 = sadd.s32 %s133, 1
    %p137 = scmp.eq.s32.totalorder %s15, 1
    %p138 = scmp.ne.s32.totalorder %s133, %s135
    %p139 = scmp.eq.s32.totalorder %s15, 0
    %p140 = por %p138, %p139
    %p141 = scmp.ne.s32.totalorder %s133, %s135
    %p142 = scmp.eq.s32.totalorder %s20, 1
    %p143 = por %p141, %p142
    %p144 = scmp.ne.s32.totalorder %s135, %s136
    %p145 = scmp.eq.s32.totalorder %s20, 0
    %p146 = por %p144, %p145
    %p147 = scmp.ne.s32.totalorder %s135, %s136
    %p148 = scmp.eq.s32.totalorder %s21, 1
    %p149 = por %p147, %p148
    %p151 = scmp.ne.s32.totalorder %s136, %s150
    %p152 = scmp.eq.s32.totalorder %s21, 0
    %p153 = por %p151, %p152
    %s155 = sadd.s32 %s154, 1
    %p158 = scmp.eq.s32.totalorder %s15, 1
    %p159 = scmp.ne.s32.totalorder %s154, %s156
    %p160 = scmp.eq.s32.totalorder %s15, 0
    %p161 = por %p159, %p160
    %p162 = scmp.ne.s32.totalorder %s154, %s156
    %p163 = scmp.eq.s32.totalorder %s20, 1
    %p164 = por %p162, %p163
    %p165 = scmp.ne.s32.totalorder %s156, %s157
    %p166 = scmp.eq.s32.totalorder %s20, 0
    %p167 = por %p165, %p166
    %p168 = scmp.ne.s32.totalorder %s156, %s157
    %p169 = scmp.eq.s32.totalorder %s21, 1
    %p170 = por %p168, %p169
    %p172 = scmp.ne.s32.totalorder %s157, %s171
    %p173 = scmp.eq.s32.totalorder %s21, 0
    %p174 = por %p172, %p173
    %s175 = ssub.s32 %s15, %s22
    %p176 = scmp.eq.s32.totalorder %s175, 0
    %s178 = sadd.s32 %s177, 1
    %s179 = scalar_select %p176, %s177, %s178
    %p182 = pneg %p176
    %p183 = scmp.eq.s32.totalorder %s15, 1
    %p184 = por %p182, %p183
    %p185 = scmp.ne.s32.totalorder %s177, %s180
    %p186 = scmp.eq.s32.totalorder %s15, 0
    %p187 = por %p185, %p186
    %p188 = scmp.ne.s32.totalorder %s177, %s180
    %p189 = scmp.eq.s32.totalorder %s20, 1
    %p190 = por %p188, %p189
    %p191 = scmp.ne.s32.totalorder %s180, %s181
    %p192 = scmp.eq.s32.totalorder %s20, 0
    %p193 = por %p191, %p192
    %p194 = scmp.ne.s32.totalorder %s180, %s181
    %p195 = scmp.eq.s32.totalorder %s21, 1
    %p196 = por %p194, %p195
    %p198 = scmp.ne.s32.totalorder %s181, %s197
    %p199 = scmp.eq.s32.totalorder %s21, 0
    %p200 = por %p198, %p199
    %p201 = scmp.le.s32.totalorder 1, %s15
    %p202 = scmp.lt.s32.totalorder %s15, 3
    %p203 = pnand %p201, %p202
    %p204 = pneg %p203
    // Predicated region
    $region9: #{decoder_forward.9} parent=5 // pred_check
      _
    $region10: #{decoder_forward.9} parent=5 // pred_check_branch
      %206 = sbr.rel (%p203) target = $region12
    $region11: #{decoder_forward.9} parent=5 // pred_region
      %s207 = ssub.s32 %s15, 1
      // Predicated region
      $region13: #{decoder_forward.9} parent=11 // pred_check
        %p208 = pneg %p36
      $region14: #{decoder_forward.9} parent=11 // pred_check_branch
        %210 = sbr.rel (%p208) target = $region16
      $region15: #{decoder_forward.9} parent=11 // pred_region
        _
      $region16: #{decoder_forward.9} parent=11 // pred_fallthru
        _
      // Predicated region
      $region17: #{decoder_forward.9} parent=11 // pred_check
        %p211 = pneg %p57
      $region18: #{decoder_forward.9} parent=11 // pred_check_branch
        %213 = sbr.rel (%p211) target = $region20
      $region19: #{decoder_forward.9} parent=11 // pred_region
        _
      $region20: #{decoder_forward.9} parent=11 // pred_fallthru
        _
      // Predicated region
      $region21: #{decoder_forward.9} parent=11 // pred_check
        %p214 = pneg %p104
      $region22: #{decoder_forward.9} parent=11 // pred_check_branch
        %216 = sbr.rel (%p214) target = $region24
      $region23: #{decoder_forward.9} parent=11 // pred_region
        _
      $region24: #{decoder_forward.9} parent=11 // pred_fallthru
        _
      // Predicated region
      $region25: #{decoder_forward.9} parent=11 // pred_check
        %p217 = pneg %p125
      $region26: #{decoder_forward.9} parent=11 // pred_check_branch
        %219 = sbr.rel (%p217) target = $region28
      $region27: #{decoder_forward.9} parent=11 // pred_region
        _
      $region28: #{decoder_forward.9} parent=11 // pred_fallthru
        _
      // Predicated region
      $region29: #{decoder_forward.9} parent=11 // pred_check
        %p220 = pneg %p146
      $region30: #{decoder_forward.9} parent=11 // pred_check_branch
        %222 = sbr.rel (%p220) target = $region32
      $region31: #{decoder_forward.9} parent=11 // pred_region
        _
      $region32: #{decoder_forward.9} parent=11 // pred_fallthru
        _
      // Predicated region
      $region33: #{decoder_forward.9} parent=11 // pred_check
        %p223 = pneg %p167
      $region34: #{decoder_forward.9} parent=11 // pred_check_branch
        %225 = sbr.rel (%p223) target = $region36
      $region35: #{decoder_forward.9} parent=11 // pred_region
        _
      $region36: #{decoder_forward.9} parent=11 // pred_fallthru
        _
    $region12: #{decoder_forward.9} parent=5 // pred_fallthru
      _
    %p226 = scmp.lt.s32.totalorder %s15, 2
    // Predicated region
    $region37: #{decoder_forward.9} parent=5 // pred_check
      %p227 = pneg %p226
    $region38: #{decoder_forward.9} parent=5 // pred_check_branch
      %229 = sbr.rel (%p227) target = $region40
    $region39: #{decoder_forward.9} parent=5 // pred_region
      // Predicated region
      $region41: #{decoder_forward.9} parent=39 // pred_check
        %p230 = pneg %p77
      $region42: #{decoder_forward.9} parent=39 // pred_check_branch
        %232 = sbr.rel (%p230) target = $region44
      $region43: #{decoder_forward.9} parent=39 // pred_region
        %p233 = scmp.lt.s32.totalorder %s15, 1
        %s234 = scalar_select %p233, %s15, 1
        %s235 = smul.addr %s234, 8
        %s236 = scalar_lea.vmem %s2, %s235
      $region44: #{decoder_forward.9} parent=39 // pred_fallthru
        _
    $region40: #{decoder_forward.9} parent=5 // pred_fallthru
      _
    %p237 = scmp.le.s32.totalorder 1, %s15
    %p238 = scmp.lt.s32.totalorder %s15, 3
    %p239 = pnand %p237, %p238
    %p240 = pneg %p239
    // Predicated region
    $region45: #{decoder_forward.9} parent=5 // pred_check
      _
    $region46: #{decoder_forward.9} parent=5 // pred_check_branch
      %242 = sbr.rel (%p239) target = $region48
    $region47: #{decoder_forward.9} parent=5 // pred_region
      %s243 = ssub.s32 %s15, 1
      %p244 = pneg %p36
      %p245 = pneg %p33
      %p246 = pneg %p57
      %p247 = pneg %p54
      %p248 = scmp.lt.s32.totalorder %s20, 1
      %s249 = scalar_select %p248, %s20, 1
      %s250 = smul.addr %s249, 8
      %s251 = scalar_lea.vmem %s2, %s250
      %p252 = pneg %p83
      %p253 = pneg %p80
      %p254 = pneg %p104
      %p255 = pneg %p101
      %p256 = pneg %p125
      %p257 = pneg %p122
      %p258 = pneg %p146
      %p259 = pneg %p143
      %p260 = pneg %p167
      %p261 = pneg %p164
      %p262 = pneg %p193
      %p263 = pneg %p190
      %p264 = scmp.lt.s32.totalorder %s20, 1
      %s265 = scalar_select %p264, %s20, 1
      %s266 = smul.addr %s265, 8
      %s267 = scalar_lea.vmem %s7, %s266
      %p268 = scmp.lt.s32.totalorder %s20, 1
      %s269 = scalar_select %p268, %s20, 1
      %s270 = smul.addr %s269, 8
      %s271 = scalar_lea.vmem %s2, %s270
      %p272 = scmp.lt.s32.totalorder %s20, 1
      %s273 = scalar_select %p272, %s20, 1
      %s274 = smul.addr %s273, 8
      %s275 = scalar_lea.vmem %s7, %s274
      %v276 = vld [vmem:[%s271] sm:$0xff]
      %s277 = sld [smem:[#allocation2]]
      %s278 = sld [smem:[#allocation3]]
      %vm279 = vcmask 261120
      %v280 = vsel %vm279, %v276, 0.0
      %281 = vadd.xlane.f32.xlu0 %v280
      %v282 = vpop.xlane.xlu0 %281
      %v283 = vrcp.pop 32.0
      %v284 = vmul.f32 %v282, %v283
      %v285 = vsub.f32 %v276, %v284
      %v286 = vmul.f32 %v285, %v285
      %v287 = vsel %vm279, %v286, 0.0
      %288 = vadd.xlane.f32.xlu0 %v287
      %v289 = vpop.xlane.xlu0 %288
      %v290 = vrcp.pop 31.0
      %v291 = vmul.f32 %v289, %v290
      %v292 = vrsqrt.pop %v291
      %v293 = vmul.f32 %v291, %v292
      %vm294 = vcmp.eq.f32.partialorder %v291, inf
      %v295 = vsel %vm294, %v291, %v293
      %vm296 = vcmp.eq.f32.partialorder %v291, 0.0
      %v297 = vand.u32 %v291, 2147483648
      %v298 = vsel %vm296, %v297, %v295
      %v299 = vstv %s277
      %v300 = vmul.f32 %v299, %v285
      %v301 = vadd.f32 %v298, 1e-06
      %v302 = vrcp.pop %v301
      %v303 = vmul.f32 %v300, %v302
      %v304 = vstv %s278
      %v305 = vadd.f32 %v303, %v304
      %v306 = vld [vmem:[%s3] sm:$0xff]
      %v307 = vld [vmem:[%s3 + $0x8] sm:$0xff]
      %v308 = vld [vmem:[%s3 + $0x10] sm:$0xff]
      %v309 = vld [vmem:[%s3 + $0x18] sm:$0xff]
      %v310 = vld [vmem:[%s4] sm:$0x1]
      %v312 = vlaneseq
      %v313 = vshrl.u32 %v312, 7
      %v314 = vsub.s32 0, %v313
      %v315 = vrot.slane %v310, %v314
      %v318 = vsel %vm279, %v305, 0
      %320 = vmatprep.subr.mxu0 0.0
      %321 = vmatpush1.msra.mxu0 %v306
      %322 = vmatprep.subr.mxu0 0.0
      %323 = vmatpush1.msra.mxu0 %v307
      %324 = vmatprep.subr.mxu0 0.0
      %325 = vmatpush1.msra.mxu0 %v308
      %326 = vmatprep.subr.mxu0 0.0
      %327 = vmatpush1.msra.mxu0 %v309
      %328 = vmatprep.subr.mxu0 0.0
      %329 = vmatpush1.msra.mxu0 0.0
      %330 = vmatprep.subr.mxu0 0.0
      %331 = vmatpush1.msra.mxu0 0.0
      %332 = vmatprep.subr.mxu0 0.0
      %333 = vmatpush1.msra.mxu0 0.0
      %334 = vmatprep.subr.mxu0 0.0
      %335 = vmatpush1.msra.mxu0 0.0
      %336 = vmatprep.subr.mxu0 0.0
      %337 = vmatpush1.msra.mxu0 0.0
      %338 = vmatprep.subr.mxu0 0.0
      %339 = vmatpush1.msra.mxu0 0.0
      %340 = vmatprep.subr.mxu0 0.0
      %341 = vmatpush1.msra.mxu0 0.0
      %342 = vmatprep.subr.mxu0 0.0
      %343 = vmatpush1.msra.mxu0 0.0
      %344 = vmatprep.subr.mxu0 0.0
      %345 = vmatpush1.msra.mxu0 0.0
      %346 = vmatprep.subr.mxu0 0.0
      %347 = vmatpush1.msra.mxu0 0.0
      %348 = vmatprep.subr.mxu0 0.0
      %349 = vmatpush1.msra.mxu0 0.0
      %350 = vmatprep.subr.mxu0 0.0
      %351 = vmatpush1.msra.mxu0 0.0
      %352 = vmatprep.subr.mxu0 0.0
      %353 = vmatpush1.msra.mxu0 0.0
      %354 = vmatprep.subr.mxu0 0.0
      %355 = vmatpush1.msra.mxu0 0.0
      %356 = vmatprep.subr.mxu0 0.0
      %357 = vmatpush1.msra.mxu0 0.0
      %358 = vmatprep.subr.mxu0 0.0
      %359 = vmatpush1.msra.mxu0 0.0
      %360 = vmatprep.subr.mxu0 0.0
      %361 = vmatpush1.msra.mxu0 0.0
      %362 = vmatprep.subr.mxu0 0.0
      %363 = vmatpush1.msra.mxu0 0.0
      %364 = vmatprep.subr.mxu0 0.0
      %365 = vmatpush1.msra.mxu0 0.0
      %366 = vmatprep.subr.mxu0 0.0
      %367 = vmatpush1.msra.mxu0 0.0
      %368 = vmatprep.subr.mxu0 0.0
      %369 = vmatpush1.msra.mxu0 0.0
      %370 = vmatprep.subr.mxu0 0.0
      %371 = vmatpush1.msra.mxu0 0.0
      %372 = vmatprep.subr.mxu0 0.0
      %373 = vmatpush1.msra.mxu0 0.0
      %374 = vmatprep.subr.mxu0 0.0
      %375 = vmatpush1.msra.mxu0 0.0
      %376 = vmatprep.subr.mxu0 0.0
      %377 = vmatpush1.msra.mxu0 0.0
      %378 = vmatprep.subr.mxu0 0.0
      %379 = vmatpush1.msra.mxu0 0.0
      %380 = vmatprep.subr.mxu0 0.0
      %381 = vmatpush1.msra.mxu0 0.0
      %382 = vmatprep.subr.mxu0 0.0
      %383 = vmatpush1.msra.mxu0 0.0
      %384 = vmatprep.mubr.f32.mxu0 0.0
      %385 = vmatmul.mubr.f32.gmra.mrb[0].mxu0 %v318
      %v386 = vpop.f32.mrb[0].mxu0
      %v387 = vadd.f32 %v315, %v386
      %v388 = vpop.f32.mrb[0].mxu0
      %389 = vdwg.mxu0
      %v390 = vmax.f32 %v387, 0.0
      %v391 = vld [vmem:[%s5] sm:$0xff]
      %v392 = vld [vmem:[%s5 + $0x8] sm:$0xff]
      %v393 = vld [vmem:[%s5 + $0x10] sm:$0xff]
      %v394 = vld [vmem:[%s5 + $0x18] sm:$0xff]
      %v395 = vld [vmem:[%s5 + $0x20] sm:$0xff]
      %v396 = vld [vmem:[%s5 + $0x28] sm:$0xff]
      %v397 = vld [vmem:[%s5 + $0x30] sm:$0xff]
      %v398 = vld [vmem:[%s5 + $0x38] sm:$0xff]
      %v399 = vld [vmem:[%s6] sm:$0x1]
      %v401 = vlaneseq
      %v402 = vshrl.u32 %v401, 7
      %v403 = vsub.s32 0, %v402
      %v404 = vrot.slane %v399, %v403
      %vm406 = vcmask 523264
      %v408 = vsel %vm406, %v390, 0
      %410 = vmatprep.subr.mxu0 0.0
      %411 = vmatpush1.msra.mxu0 %v391
      %412 = vmatprep.subr.mxu0 0.0
      %413 = vmatpush1.msra.mxu0 %v392
      %414 = vmatprep.subr.mxu0 0.0
      %415 = vmatpush1.msra.mxu0 %v393
      %416 = vmatprep.subr.mxu0 0.0
      %417 = vmatpush1.msra.mxu0 %v394
      %418 = vmatprep.subr.mxu0 0.0
      %419 = vmatpush1.msra.mxu0 %v395
      %420 = vmatprep.subr.mxu0 0.0
      %421 = vmatpush1.msra.mxu0 %v396
      %422 = vmatprep.subr.mxu0 0.0
      %423 = vmatpush1.msra.mxu0 %v397
      %424 = vmatprep.subr.mxu0 0.0
      %425 = vmatpush1.msra.mxu0 %v398
      %426 = vmatprep.subr.mxu0 0.0
      %427 = vmatpush1.msra.mxu0 0.0
      %428 = vmatprep.subr.mxu0 0.0
      %429 = vmatpush1.msra.mxu0 0.0
      %430 = vmatprep.subr.mxu0 0.0
      %431 = vmatpush1.msra.mxu0 0.0
      %432 = vmatprep.subr.mxu0 0.0
      %433 = vmatpush1.msra.mxu0 0.0
      %434 = vmatprep.subr.mxu0 0.0
      %435 = vmatpush1.msra.mxu0 0.0
      %436 = vmatprep.subr.mxu0 0.0
      %437 = vmatpush1.msra.mxu0 0.0
      %438 = vmatprep.subr.mxu0 0.0
      %439 = vmatpush1.msra.mxu0 0.0
      %440 = vmatprep.subr.mxu0 0.0
      %441 = vmatpush1.msra.mxu0 0.0
      %442 = vmatprep.subr.mxu0 0.0
      %443 = vmatpush1.msra.mxu0 0.0
      %444 = vmatprep.subr.mxu0 0.0
      %445 = vmatpush1.msra.mxu0 0.0
      %446 = vmatprep.subr.mxu0 0.0
      %447 = vmatpush1.msra.mxu0 0.0
      %448 = vmatprep.subr.mxu0 0.0
      %449 = vmatpush1.msra.mxu0 0.0
      %450 = vmatprep.subr.mxu0 0.0
      %451 = vmatpush1.msra.mxu0 0.0
      %452 = vmatprep.subr.mxu0 0.0
      %453 = vmatpush1.msra.mxu0 0.0
      %454 = vmatprep.subr.mxu0 0.0
      %455 = vmatpush1.msra.mxu0 0.0
      %456 = vmatprep.subr.mxu0 0.0
      %457 = vmatpush1.msra.mxu0 0.0
      %458 = vmatprep.subr.mxu0 0.0
      %459 = vmatpush1.msra.mxu0 0.0
      %460 = vmatprep.subr.mxu0 0.0
      %461 = vmatpush1.msra.mxu0 0.0
      %462 = vmatprep.subr.mxu0 0.0
      %463 = vmatpush1.msra.mxu0 0.0
      %464 = vmatprep.subr.mxu0 0.0
      %465 = vmatpush1.msra.mxu0 0.0
      %466 = vmatprep.subr.mxu0 0.0
      %467 = vmatpush1.msra.mxu0 0.0
      %468 = vmatprep.subr.mxu0 0.0
      %469 = vmatpush1.msra.mxu0 0.0
      %470 = vmatprep.subr.mxu0 0.0
      %471 = vmatpush1.msra.mxu0 0.0
      %472 = vmatprep.subr.mxu0 0.0
      %473 = vmatpush1.msra.mxu0 0.0
      %474 = vmatprep.mubr.f32.mxu0 0.0
      %475 = vmatmul.mubr.f32.gmra.mrb[0].mxu0 %v408
      %v476 = vpop.f32.mrb[0].mxu0
      %v477 = vadd.f32 %v404, %v476
      %v478 = vpop.f32.mrb[0].mxu0
      %479 = vdwg.mxu0
      %v480 = vadd.f32 %v477, %v276
      %481 = vst.msk [vmem:[%s275] sm:$0xff] %vm279, %v480
      %p482 = scmp.lt.s32.totalorder %s20, 1
      %s483 = scalar_select %p482, %s20, 1
      %s484 = smul.addr %s483, 8
      %s485 = scalar_lea.vmem %s7, %s484
      // Predicated region
      $region49: #{decoder_forward.9} parent=47 // pred_check
        %p486 = pneg %p190
      $region50: #{decoder_forward.9} parent=47 // pred_check_branch
        %488 = sbr.rel (%p486) target = $region52
      $region51: #{decoder_forward.9} parent=47 // pred_region
        _
      $region52: #{decoder_forward.9} parent=47 // pred_fallthru
        _
    $region48: #{decoder_forward.9} parent=5 // pred_fallthru
      _
    %p489 = scmp.le.s32.totalorder 2, %s15
    // Predicated region
    $region53: #{decoder_forward.9} parent=5 // pred_check
      %p490 = pneg %p489
    $region54: #{decoder_forward.9} parent=5 // pred_check_branch
      %492 = sbr.rel (%p490) target = $region56
    $region55: #{decoder_forward.9} parent=5 // pred_region
      %s493 = ssub.s32 %s15, 2
      // Predicated region
      $region57: #{decoder_forward.9} parent=55 // pred_check
        %p494 = pneg %p196
      $region58: #{decoder_forward.9} parent=55 // pred_check_branch
        %496 = sbr.rel (%p494) target = $region60
      $region59: #{decoder_forward.9} parent=55 // pred_region
        %p497 = scmp.lt.s32.totalorder %s21, 1
        %s498 = scalar_select %p497, %s21, 1
        %s499 = smul.addr %s498, 8
        %s500 = scalar_lea.vmem %s7, %s499
      $region60: #{decoder_forward.9} parent=55 // pred_fallthru
        _
    $region56: #{decoder_forward.9} parent=5 // pred_fallthru
      _
  $region6: #{decoder_forward.9} parent=0 // loop_footer
    %s19 = sadd.s32 1, %s15
  $region7: #{decoder_forward.9} parent=0 // loop_footer_branch
    %14 = sbr.rel target = $region3
  $region8: #{decoder_forward.9} parent=0 // loop_exit
    _

// kernel: decoder_forward.7
$region0: #{decoder_forward.7}
  #allocation0 [shape = 'u32[]', space=smem, size = 0x4, offset = 0x4, fixed_abs, tag = 'smem constant byte address 0x4 - core index']
  #allocation1 [shape = 'u32[144,128]{1,0:T(1,128)}', space=vmem, size = 0x12000, scoped, tag = 'internal scratch']
  #allocation2 [shape = 'f32[1]{0:T(128)S(6)}', space=smem, size = 0x200, scoped, tag = 'scoped memory for decoder_forward.7']
  #allocation3 [shape = 'f32[1]{0:T(128)S(6)}', space=smem, size = 0x200, scoped, tag = 'scoped memory for decoder_forward.7']
  %s0 = inlined_call_operand.<no memory space> [shape: f32[1], index: 0, kind: input, shape index: {}]
  %s1 = inlined_call_operand.<no memory space> [shape: f32[1], index: 1, kind: input, shape index: {}]
  %s2 = inlined_call_operand.vmem [shape: f32[2,8,32], index: 2, kind: input, shape index: {}]
  %s3 = inlined_call_operand.vmem [shape: f32[2,8,8], index: 3, kind: input, shape index: {}]
  %s4 = inlined_call_operand.vmem [shape: f32[32,96], index: 4, kind: input, shape index: {}]
  %s5 = inlined_call_operand.vmem [shape: f32[1,96], index: 5, kind: input, shape index: {}]
  %s6 = inlined_call_operand.vmem [shape: f32[32,32], index: 6, kind: input, shape index: {}]
  %s7 = inlined_call_operand.vmem [shape: f32[1,32], index: 7, kind: input, shape index: {}]
  %s8 = inlined_call_operand.vmem [shape: f32[2,8,32], index: 8, kind: output, shape index: {}]
  %s9 = sld [smem:[#allocation0]]
  $region65: #{decoder_forward.7} parent=0
    _
  %s11 = ssub.s32 1, %s9
  %s12 = scalar_select 0, %s11, %s9
  %13 = sst [smem:[#allocation2]] %s0
  %14 = sst [smem:[#allocation3]] %s1
  loop: start=0, step=1, limit=4
  $region2: #{decoder_forward.7} parent=0 // loop_pre_header
    _
  $region3: #{decoder_forward.7} parent=0 // loop_header
    %s16 = sphi 0, %s20
    %p17 = scmp.ge.s32.totalorder %s16, 4
    %s24 = sphi 0, %s24
    %s26 = sphi 0, %s24
    %s27 = sphi 0, %s26
    %s41 = sphi 0, %s27
    %s45 = sphi 0, %s45
    %s47 = sphi 0, %s45
    %s48 = sphi 0, %s47
    %s62 = sphi 0, %s48
    %s68 = sphi 0, %s70
    %s71 = sphi 0, %s68
    %s72 = sphi 0, %s71
    %s88 = sphi 0, %s72
    %s94 = sphi 0, %s96
    %s97 = sphi 0, %s94
    %s98 = sphi 0, %s97
    %s114 = sphi 0, %s98
    %s118 = sphi 0, %s118
    %s120 = sphi 0, %s118
    %s121 = sphi 0, %s120
    %s135 = sphi 0, %s121
    %s139 = sphi 0, %s139
    %s141 = sphi 0, %s139
    %s142 = sphi 0, %s141
    %s156 = sphi 0, %s142
    %s160 = sphi 0, %s160
    %s162 = sphi 0, %s160
    %s163 = sphi 0, %s162
    %s177 = sphi 0, %s163
    %s181 = sphi 0, %s181
    %s183 = sphi 0, %s181
    %s184 = sphi 0, %s183
    %s198 = sphi 0, %s184
    %s204 = sphi 0, %s206
    %s207 = sphi 0, %s204
    %s208 = sphi 0, %s207
    %s224 = sphi 0, %s208
  $region4: #{decoder_forward.7} parent=0 // loop_header_branch
    %19 = sbr.rel (%p17) target = $region8
  $region5: #{decoder_forward.7} parent=0 // loop_body
    %s21 = ssub.s32 %s16, 1
    %s22 = ssub.s32 %s16, 2
    %s23 = sadd.s32 %s16, 1
    %s25 = sadd.s32 %s24, 1
    %p28 = scmp.eq.s32.totalorder %s16, 1
    %p29 = scmp.ne.s32.totalorder %s24, %s26
    %p30 = scmp.eq.s32.totalorder %s16, 0
    %p31 = por %p29, %p30
    %p32 = scmp.ne.s32.totalorder %s24, %s26
    %p33 = scmp.eq.s32.totalorder %s21, 1
    %p34 = por %p32, %p33
    %p35 = scmp.ne.s32.totalorder %s26, %s27
    %p36 = scmp.eq.s32.totalorder %s21, 0
    %p37 = por %p35, %p36
    %p38 = scmp.ne.s32.totalorder %s26, %s27
    %p39 = scmp.eq.s32.totalorder %s22, 1
    %p40 = por %p38, %p39
    %p42 = scmp.ne.s32.totalorder %s27, %s41
    %p43 = scmp.eq.s32.totalorder %s22, 0
    %p44 = por %p42, %p43
    %s46 = sadd.s32 %s45, 1
    %p49 = scmp.eq.s32.totalorder %s16, 1
    %p50 = scmp.ne.s32.totalorder %s45, %s47
    %p51 = scmp.eq.s32.totalorder %s16, 0
    %p52 = por %p50, %p51
    %p53 = scmp.ne.s32.totalorder %s45, %s47
    %p54 = scmp.eq.s32.totalorder %s21, 1
    %p55 = por %p53, %p54
    %p56 = scmp.ne.s32.totalorder %s47, %s48
    %p57 = scmp.eq.s32.totalorder %s21, 0
    %p58 = por %p56, %p57
    %p59 = scmp.ne.s32.totalorder %s47, %s48
    %p60 = scmp.eq.s32.totalorder %s22, 1
    %p61 = por %p59, %p60
    %p63 = scmp.ne.s32.totalorder %s48, %s62
    %p64 = scmp.eq.s32.totalorder %s22, 0
    %p65 = por %p63, %p64
    %s66 = ssub.s32 %s16, %s23
    %p67 = scmp.eq.s32.totalorder %s66, 0
    %s69 = sadd.s32 %s68, 1
    %s70 = scalar_select %p67, %s68, %s69
    %p73 = pneg %p67
    %p74 = scmp.eq.s32.totalorder %s16, 1
    %p75 = por %p73, %p74
    %p76 = scmp.ne.s32.totalorder %s68, %s71
    %p77 = scmp.eq.s32.totalorder %s16, 0
    %p78 = por %p76, %p77
    %p79 = scmp.ne.s32.totalorder %s68, %s71
    %p80 = scmp.eq.s32.totalorder %s21, 1
    %p81 = por %p79, %p80
    %p82 = scmp.ne.s32.totalorder %s71, %s72
    %p83 = scmp.eq.s32.totalorder %s21, 0
    %p84 = por %p82, %p83
    %p85 = scmp.ne.s32.totalorder %s71, %s72
    %p86 = scmp.eq.s32.totalorder %s22, 1
    %p87 = por %p85, %p86
    %p89 = scmp.ne.s32.totalorder %s72, %s88
    %p90 = scmp.eq.s32.totalorder %s22, 0
    %p91 = por %p89, %p90
    %s92 = ssub.s32 %s16, %s23
    %p93 = scmp.eq.s32.totalorder %s92, 0
    %s95 = sadd.s32 %s94, 1
    %s96 = scalar_select %p93, %s94, %s95
    %p99 = pneg %p93
    %p100 = scmp.eq.s32.totalorder %s16, 1
    %p101 = por %p99, %p100
    %p102 = scmp.ne.s32.totalorder %s94, %s97
    %p103 = scmp.eq.s32.totalorder %s16, 0
    %p104 = por %p102, %p103
    %p105 = scmp.ne.s32.totalorder %s94, %s97
    %p106 = scmp.eq.s32.totalorder %s21, 1
    %p107 = por %p105, %p106
    %p108 = scmp.ne.s32.totalorder %s97, %s98
    %p109 = scmp.eq.s32.totalorder %s21, 0
    %p110 = por %p108, %p109
    %p111 = scmp.ne.s32.totalorder %s97, %s98
    %p112 = scmp.eq.s32.totalorder %s22, 1
    %p113 = por %p111, %p112
    %p115 = scmp.ne.s32.totalorder %s98, %s114
    %p116 = scmp.eq.s32.totalorder %s22, 0
    %p117 = por %p115, %p116
    %s119 = sadd.s32 %s118, 1
    %p122 = scmp.eq.s32.totalorder %s16, 1
    %p123 = scmp.ne.s32.totalorder %s118, %s120
    %p124 = scmp.eq.s32.totalorder %s16, 0
    %p125 = por %p123, %p124
    %p126 = scmp.ne.s32.totalorder %s118, %s120
    %p127 = scmp.eq.s32.totalorder %s21, 1
    %p128 = por %p126, %p127
    %p129 = scmp.ne.s32.totalorder %s120, %s121
    %p130 = scmp.eq.s32.totalorder %s21, 0
    %p131 = por %p129, %p130
    %p132 = scmp.ne.s32.totalorder %s120, %s121
    %p133 = scmp.eq.s32.totalorder %s22, 1
    %p134 = por %p132, %p133
    %p136 = scmp.ne.s32.totalorder %s121, %s135
    %p137 = scmp.eq.s32.totalorder %s22, 0
    %p138 = por %p136, %p137
    %s140 = sadd.s32 %s139, 1
    %p143 = scmp.eq.s32.totalorder %s16, 1
    %p144 = scmp.ne.s32.totalorder %s139, %s141
    %p145 = scmp.eq.s32.totalorder %s16, 0
    %p146 = por %p144, %p145
    %p147 = scmp.ne.s32.totalorder %s139, %s141
    %p148 = scmp.eq.s32.totalorder %s21, 1
    %p149 = por %p147, %p148
    %p150 = scmp.ne.s32.totalorder %s141, %s142
    %p151 = scmp.eq.s32.totalorder %s21, 0
    %p152 = por %p150, %p151
    %p153 = scmp.ne.s32.totalorder %s141, %s142
    %p154 = scmp.eq.s32.totalorder %s22, 1
    %p155 = por %p153, %p154
    %p157 = scmp.ne.s32.totalorder %s142, %s156
    %p158 = scmp.eq.s32.totalorder %s22, 0
    %p159 = por %p157, %p158
    %s161 = sadd.s32 %s160, 1
    %p164 = scmp.eq.s32.totalorder %s16, 1
    %p165 = scmp.ne.s32.totalorder %s160, %s162
    %p166 = scmp.eq.s32.totalorder %s16, 0
    %p167 = por %p165, %p166
    %p168 = scmp.ne.s32.totalorder %s160, %s162
    %p169 = scmp.eq.s32.totalorder %s21, 1
    %p170 = por %p168, %p169
    %p171 = scmp.ne.s32.totalorder %s162, %s163
    %p172 = scmp.eq.s32.totalorder %s21, 0
    %p173 = por %p171, %p172
    %p174 = scmp.ne.s32.totalorder %s162, %s163
    %p175 = scmp.eq.s32.totalorder %s22, 1
    %p176 = por %p174, %p175
    %p178 = scmp.ne.s32.totalorder %s163, %s177
    %p179 = scmp.eq.s32.totalorder %s22, 0
    %p180 = por %p178, %p179
    %s182 = sadd.s32 %s181, 1
    %p185 = scmp.eq.s32.totalorder %s16, 1
    %p186 = scmp.ne.s32.totalorder %s181, %s183
    %p187 = scmp.eq.s32.totalorder %s16, 0
    %p188 = por %p186, %p187
    %p189 = scmp.ne.s32.totalorder %s181, %s183
    %p190 = scmp.eq.s32.totalorder %s21, 1
    %p191 = por %p189, %p190
    %p192 = scmp.ne.s32.totalorder %s183, %s184
    %p193 = scmp.eq.s32.totalorder %s21, 0
    %p194 = por %p192, %p193
    %p195 = scmp.ne.s32.totalorder %s183, %s184
    %p196 = scmp.eq.s32.totalorder %s22, 1
    %p197 = por %p195, %p196
    %p199 = scmp.ne.s32.totalorder %s184, %s198
    %p200 = scmp.eq.s32.totalorder %s22, 0
    %p201 = por %p199, %p200
    %s202 = ssub.s32 %s16, %s23
    %p203 = scmp.eq.s32.totalorder %s202, 0
    %s205 = sadd.s32 %s204, 1
    %s206 = scalar_select %p203, %s204, %s205
    %p209 = pneg %p203
    %p210 = scmp.eq.s32.totalorder %s16, 1
    %p211 = por %p209, %p210
    %p212 = scmp.ne.s32.totalorder %s204, %s207
    %p213 = scmp.eq.s32.totalorder %s16, 0
    %p214 = por %p212, %p213
    %p215 = scmp.ne.s32.totalorder %s204, %s207
    %p216 = scmp.eq.s32.totalorder %s21, 1
    %p217 = por %p215, %p216
    %p218 = scmp.ne.s32.totalorder %s207, %s208
    %p219 = scmp.eq.s32.totalorder %s21, 0
    %p220 = por %p218, %p219
    %p221 = scmp.ne.s32.totalorder %s207, %s208
    %p222 = scmp.eq.s32.totalorder %s22, 1
    %p223 = por %p221, %p222
    %p225 = scmp.ne.s32.totalorder %s208, %s224
    %p226 = scmp.eq.s32.totalorder %s22, 0
    %p227 = por %p225, %p226
    %p228 = scmp.le.s32.totalorder 1, %s16
    %p229 = scmp.lt.s32.totalorder %s16, 3
    %p230 = pnand %p228, %p229
    %p231 = pneg %p230
    // Predicated region
    $region9: #{decoder_forward.7} parent=5 // pred_check
      _
    $region10: #{decoder_forward.7} parent=5 // pred_check_branch
      %233 = sbr.rel (%p230) target = $region12
    $region11: #{decoder_forward.7} parent=5 // pred_region
      %s234 = ssub.s32 %s16, 1
      // Predicated region
      $region13: #{decoder_forward.7} parent=11 // pred_check
        %p235 = pneg %p37
      $region14: #{decoder_forward.7} parent=11 // pred_check_branch
        %237 = sbr.rel (%p235) target = $region16
      $region15: #{decoder_forward.7} parent=11 // pred_region
        _
      $region16: #{decoder_forward.7} parent=11 // pred_fallthru
        _
      // Predicated region
      $region17: #{decoder_forward.7} parent=11 // pred_check
        %p238 = pneg %p58
      $region18: #{decoder_forward.7} parent=11 // pred_check_branch
        %240 = sbr.rel (%p238) target = $region20
      $region19: #{decoder_forward.7} parent=11 // pred_region
        _
      $region20: #{decoder_forward.7} parent=11 // pred_fallthru
        _
      // Predicated region
      $region21: #{decoder_forward.7} parent=11 // pred_check
        %p241 = pneg %p131
      $region22: #{decoder_forward.7} parent=11 // pred_check_branch
        %243 = sbr.rel (%p241) target = $region24
      $region23: #{decoder_forward.7} parent=11 // pred_region
        _
      $region24: #{decoder_forward.7} parent=11 // pred_fallthru
        _
      // Predicated region
      $region25: #{decoder_forward.7} parent=11 // pred_check
        %p244 = pneg %p152
      $region26: #{decoder_forward.7} parent=11 // pred_check_branch
        %246 = sbr.rel (%p244) target = $region28
      $region27: #{decoder_forward.7} parent=11 // pred_region
        _
      $region28: #{decoder_forward.7} parent=11 // pred_fallthru
        _
      // Predicated region
      $region29: #{decoder_forward.7} parent=11 // pred_check
        %p247 = pneg %p173
      $region30: #{decoder_forward.7} parent=11 // pred_check_branch
        %249 = sbr.rel (%p247) target = $region32
      $region31: #{decoder_forward.7} parent=11 // pred_region
        _
      $region32: #{decoder_forward.7} parent=11 // pred_fallthru
        _
      // Predicated region
      $region33: #{decoder_forward.7} parent=11 // pred_check
        %p250 = pneg %p194
      $region34: #{decoder_forward.7} parent=11 // pred_check_branch
        %252 = sbr.rel (%p250) target = $region36
      $region35: #{decoder_forward.7} parent=11 // pred_region
        _
      $region36: #{decoder_forward.7} parent=11 // pred_fallthru
        _
    $region12: #{decoder_forward.7} parent=5 // pred_fallthru
      _
    %p253 = scmp.lt.s32.totalorder %s16, 2
    // Predicated region
    $region37: #{decoder_forward.7} parent=5 // pred_check
      %p254 = pneg %p253
    $region38: #{decoder_forward.7} parent=5 // pred_check_branch
      %256 = sbr.rel (%p254) target = $region40
    $region39: #{decoder_forward.7} parent=5 // pred_region
      // Predicated region
      $region41: #{decoder_forward.7} parent=39 // pred_check
        %p257 = pneg %p78
      $region42: #{decoder_forward.7} parent=39 // pred_check_branch
        %259 = sbr.rel (%p257) target = $region44
      $region43: #{decoder_forward.7} parent=39 // pred_region
        %p260 = scmp.lt.s32.totalorder %s16, 1
        %s261 = scalar_select %p260, %s16, 1
        %s262 = smul.addr %s261, 8
        %s263 = scalar_lea.vmem %s2, %s262
      $region44: #{decoder_forward.7} parent=39 // pred_fallthru
        _
      // Predicated region
      $region45: #{decoder_forward.7} parent=39 // pred_check
        %p264 = pneg %p104
      $region46: #{decoder_forward.7} parent=39 // pred_check_branch
        %266 = sbr.rel (%p264) target = $region48
      $region47: #{decoder_forward.7} parent=39 // pred_region
        %p267 = scmp.lt.s32.totalorder %s16, 1
        %s268 = scalar_select %p267, %s16, 1
        %s269 = smul.addr %s268, 8
        %s270 = scalar_lea.vmem %s3, %s269
      $region48: #{decoder_forward.7} parent=39 // pred_fallthru
        _
    $region40: #{decoder_forward.7} parent=5 // pred_fallthru
      _
    %p271 = scmp.le.s32.totalorder 1, %s16
    %p272 = scmp.lt.s32.totalorder %s16, 3
    %p273 = pnand %p271, %p272
    %p274 = pneg %p273
    // Predicated region
    $region49: #{decoder_forward.7} parent=5 // pred_check
      _
    $region50: #{decoder_forward.7} parent=5 // pred_check_branch
      %276 = sbr.rel (%p273) target = $region52
    $region51: #{decoder_forward.7} parent=5 // pred_region
      %s277 = ssub.s32 %s16, 1
      %p278 = pneg %p37
      %p279 = pneg %p34
      %p280 = pneg %p58
      %p281 = pneg %p55
      %p282 = scmp.lt.s32.totalorder %s21, 1
      %s283 = scalar_select %p282, %s21, 1
      %s284 = smul.addr %s283, 8
      %s285 = scalar_lea.vmem %s2, %s284
      %p286 = pneg %p84
      %p287 = pneg %p81
      %p288 = scmp.lt.s32.totalorder %s21, 1
      %s289 = scalar_select %p288, %s21, 1
      %s290 = smul.addr %s289, 8
      %s291 = scalar_lea.vmem %s3, %s290
      %p292 = pneg %p110
      %p293 = pneg %p107
      %p294 = pneg %p131
      %p295 = pneg %p128
      %p296 = pneg %p152
      %p297 = pneg %p149
      %p298 = pneg %p173
      %p299 = pneg %p170
      %p300 = pneg %p194
      %p301 = pneg %p191
      %p302 = pneg %p220
      %p303 = pneg %p217
      %p304 = scmp.lt.s32.totalorder %s21, 1
      %s305 = scalar_select %p304, %s21, 1
      %s306 = smul.addr %s305, 8
      %s307 = scalar_lea.vmem %s8, %s306
      %p308 = scmp.lt.s32.totalorder %s21, 1
      %s309 = scalar_select %p308, %s21, 1
      %s310 = smul.addr %s309, 8
      %s311 = scalar_lea.vmem %s2, %s310
      %p312 = scmp.lt.s32.totalorder %s21, 1
      %s313 = scalar_select %p312, %s21, 1
      %s314 = smul.addr %s313, 8
      %s315 = scalar_lea.vmem %s3, %s314
      %p316 = scmp.lt.s32.totalorder %s21, 1
      %s317 = scalar_select %p316, %s21, 1
      %s318 = smul.addr %s317, 8
      %s319 = scalar_lea.vmem %s8, %s318
      %v320 = vld [vmem:[%s311] sm:$0xff]
      %s321 = sld [smem:[#allocation2]]
      %s322 = sld [smem:[#allocation3]]
      %vm323 = vcmask 261120
      %v324 = vsel %vm323, %v320, 0.0
      %325 = vadd.xlane.f32.xlu0 %v324
      %v326 = vpop.xlane.xlu0 %325
      %v327 = vrcp.pop 32.0
      %v328 = vmul.f32 %v326, %v327
      %v329 = vsub.f32 %v320, %v328
      %v330 = vmul.f32 %v329, %v329
      %v331 = vsel %vm323, %v330, 0.0
      %332 = vadd.xlane.f32.xlu0 %v331
      %v333 = vpop.xlane.xlu0 %332
      %v334 = vrcp.pop 31.0
      %v335 = vmul.f32 %v333, %v334
      %v336 = vrsqrt.pop %v335
      %v337 = vmul.f32 %v335, %v336
      %vm338 = vcmp.eq.f32.partialorder %v335, inf
      %v339 = vsel %vm338, %v335, %v337
      %vm340 = vcmp.eq.f32.partialorder %v335, 0.0
      %v341 = vand.u32 %v335, 2147483648
      %v342 = vsel %vm340, %v341, %v339
      %v343 = vstv %s321
      %v344 = vmul.f32 %v343, %v329
      %v345 = vadd.f32 %v342, 1e-06
      %v346 = vrcp.pop %v345
      %v347 = vmul.f32 %v344, %v346
      %v348 = vstv %s322
      %v349 = vadd.f32 %v347, %v348
      %v350 = vld [vmem:[%s4] sm:$0xff]
      %v351 = vld [vmem:[%s4 + $0x8] sm:$0xff]
      %v352 = vld [vmem:[%s4 + $0x10] sm:$0xff]
      %v353 = vld [vmem:[%s4 + $0x18] sm:$0xff]
      %v354 = vld [vmem:[%s5] sm:$0x1]
      %v356 = vlaneseq
      %v357 = vshrl.u32 %v356, 7
      %v358 = vsub.s32 0, %v357
      %v359 = vrot.slane %v354, %v358
      %v362 = vsel %vm323, %v349, 0
      %364 = vmatprep.subr.mxu0 0.0
      %365 = vmatpush1.msra.mxu0 %v350
      %366 = vmatprep.subr.mxu0 0.0
      %367 = vmatpush1.msra.mxu0 %v351
      %368 = vmatprep.subr.mxu0 0.0
      %369 = vmatpush1.msra.mxu0 %v352
      %370 = vmatprep.subr.mxu0 0.0
      %371 = vmatpush1.msra.mxu0 %v353
      %372 = vmatprep.subr.mxu0 0.0
      %373 = vmatpush1.msra.mxu0 0.0
      %374 = vmatprep.subr.mxu0 0.0
      %375 = vmatpush1.msra.mxu0 0.0
      %376 = vmatprep.subr.mxu0 0.0
      %377 = vmatpush1.msra.mxu0 0.0
      %378 = vmatprep.subr.mxu0 0.0
      %379 = vmatpush1.msra.mxu0 0.0
      %380 = vmatprep.subr.mxu0 0.0
      %381 = vmatpush1.msra.mxu0 0.0
      %382 = vmatprep.subr.mxu0 0.0
      %383 = vmatpush1.msra.mxu0 0.0
      %384 = vmatprep.subr.mxu0 0.0
      %385 = vmatpush1.msra.mxu0 0.0
      %386 = vmatprep.subr.mxu0 0.0
      %387 = vmatpush1.msra.mxu0 0.0
      %388 = vmatprep.subr.mxu0 0.0
      %389 = vmatpush1.msra.mxu0 0.0
      %390 = vmatprep.subr.mxu0 0.0
      %391 = vmatpush1.msra.mxu0 0.0
      %392 = vmatprep.subr.mxu0 0.0
      %393 = vmatpush1.msra.mxu0 0.0
      %394 = vmatprep.subr.mxu0 0.0
      %395 = vmatpush1.msra.mxu0 0.0
      %396 = vmatprep.subr.mxu0 0.0
      %397 = vmatpush1.msra.mxu0 0.0
      %398 = vmatprep.subr.mxu0 0.0
      %399 = vmatpush1.msra.mxu0 0.0
      %400 = vmatprep.subr.mxu0 0.0
      %401 = vmatpush1.msra.mxu0 0.0
      %402 = vmatprep.subr.mxu0 0.0
      %403 = vmatpush1.msra.mxu0 0.0
      %404 = vmatprep.subr.mxu0 0.0
      %405 = vmatpush1.msra.mxu0 0.0
      %406 = vmatprep.subr.mxu0 0.0
      %407 = vmatpush1.msra.mxu0 0.0
      %408 = vmatprep.subr.mxu0 0.0
      %409 = vmatpush1.msra.mxu0 0.0
      %410 = vmatprep.subr.mxu0 0.0
      %411 = vmatpush1.msra.mxu0 0.0
      %412 = vmatprep.subr.mxu0 0.0
      %413 = vmatpush1.msra.mxu0 0.0
      %414 = vmatprep.subr.mxu0 0.0
      %415 = vmatpush1.msra.mxu0 0.0
      %416 = vmatprep.subr.mxu0 0.0
      %417 = vmatpush1.msra.mxu0 0.0
      %418 = vmatprep.subr.mxu0 0.0
      %419 = vmatpush1.msra.mxu0 0.0
      %420 = vmatprep.subr.mxu0 0.0
      %421 = vmatpush1.msra.mxu0 0.0
      %422 = vmatprep.subr.mxu0 0.0
      %423 = vmatpush1.msra.mxu0 0.0
      %424 = vmatprep.subr.mxu0 0.0
      %425 = vmatpush1.msra.mxu0 0.0
      %426 = vmatprep.subr.mxu0 0.0
      %427 = vmatpush1.msra.mxu0 0.0
      %428 = vmatprep.mubr.f32.mxu0 0.0
      %429 = vmatmul.mubr.f32.gmra.mrb[0].mxu0 %v362
      %v430 = vpop.f32.mrb[0].mxu0
      %v431 = vadd.f32 %v359, %v430
      %v432 = vpop.f32.mrb[0].mxu0
      %433 = vdwg.mxu0
      %v434 = vld [vmem:[%s315] sm:$0xff]
      %vm435 = vcmp.gt.f32.partialorder %v434, 0.0
      %437 = vrot.lane.b32.xlu0 %v431, 96
      %v438 = vpop.permute.xlu0 %437
      %vm439 = vcmask 64512
      %v440 = vsel %vm439, %v431, 0
      %v442 = vsel %vm439, %v438, 0
      %444 = vmatprep.subr.mxu0 0.0
      %445 = vmatpush1.xpose.msra.mxu0 %v442
      %446 = vmatprep.subr.mxu0 0.0
      %447 = vmatpush1.xpose.msra.mxu0 0.0
      %448 = vmatprep.subr.mxu0 0.0
      %449 = vmatpush1.xpose.msra.mxu0 0.0
      %450 = vmatprep.subr.mxu0 0.0
      %451 = vmatpush1.xpose.msra.mxu0 0.0
      %452 = vmatprep.subr.mxu0 0.0
      %453 = vmatpush1.xpose.msra.mxu0 0.0
      %454 = vmatprep.subr.mxu0 0.0
      %455 = vmatpush1.xpose.msra.mxu0 0.0
      %456 = vmatprep.subr.mxu0 0.0
      %457 = vmatpush1.xpose.msra.mxu0 0.0
      %458 = vmatprep.subr.mxu0 0.0
      %459 = vmatpush1.xpose.msra.mxu0 0.0
      %460 = vmatprep.subr.mxu0 0.0
      %461 = vmatpush1.xpose.msra.mxu0 0.0
      %462 = vmatprep.subr.mxu0 0.0
      %463 = vmatpush1.xpose.msra.mxu0 0.0
      %464 = vmatprep.subr.mxu0 0.0
      %465 = vmatpush1.xpose.msra.mxu0 0.0
      %466 = vmatprep.subr.mxu0 0.0
      %467 = vmatpush1.xpose.msra.mxu0 0.0
      %468 = vmatprep.subr.mxu0 0.0
      %469 = vmatpush1.xpose.msra.mxu0 0.0
      %470 = vmatprep.subr.mxu0 0.0
      %471 = vmatpush1.xpose.msra.mxu0 0.0
      %472 = vmatprep.subr.mxu0 0.0
      %473 = vmatpush1.xpose.msra.mxu0 0.0
      %474 = vmatprep.subr.mxu0 0.0
      %475 = vmatpush1.xpose.msra.mxu0 0.0
      %476 = vmatprep.subr.mxu0 0.0
      %477 = vmatpush1.xpose.msra.mxu0 0.0
      %478 = vmatprep.subr.mxu0 0.0
      %479 = vmatpush1.xpose.msra.mxu0 0.0
      %480 = vmatprep.subr.mxu0 0.0
      %481 = vmatpush1.xpose.msra.mxu0 0.0
      %482 = vmatprep.subr.mxu0 0.0
      %483 = vmatpush1.xpose.msra.mxu0 0.0
      %484 = vmatprep.subr.mxu0 0.0
      %485 = vmatpush1.xpose.msra.mxu0 0.0
      %486 = vmatprep.subr.mxu0 0.0
      %487 = vmatpush1.xpose.msra.mxu0 0.0
      %488 = vmatprep.subr.mxu0 0.0
      %489 = vmatpush1.xpose.msra.mxu0 0.0
      %490 = vmatprep.subr.mxu0 0.0
      %491 = vmatpush1.xpose.msra.mxu0 0.0
      %492 = vmatprep.subr.mxu0 0.0
      %493 = vmatpush1.xpose.msra.mxu0 0.0
      %494 = vmatprep.subr.mxu0 0.0
      %495 = vmatpush1.xpose.msra.mxu0 0.0
      %496 = vmatprep.subr.mxu0 0.0
      %497 = vmatpush1.xpose.msra.mxu0 0.0
      %498 = vmatprep.subr.mxu0 0.0
      %499 = vmatpush1.xpose.msra.mxu0 0.0
      %500 = vmatprep.subr.mxu0 0.0
      %501 = vmatpush1.xpose.msra.mxu0 0.0
      %502 = vmatprep.subr.mxu0 0.0
      %503 = vmatpush1.xpose.msra.mxu0 0.0
      %504 = vmatprep.subr.mxu0 0.0
      %505 = vmatpush1.xpose.msra.mxu0 0.0
      %506 = vmatprep.subr.mxu0 0.0
      %507 = vmatpush1.xpose.msra.mxu0 0.0
      %508 = vmatprep.mubr.f32.mxu0 0.0
      %509 = vmatmul.mubr.f32.gmra.mrb[0].mxu0 %v440
      %v510 = vpop.f32.mrb[0].mxu0
      %v511 = vadd.f32 0.0, %v510
      %v512 = vpop.f32.mrb[0].mxu0
      %513 = vdwg.mxu0
      %v514 = vmul.f32 %v511, 0.35355338
      %v515 = vsel %vm435, %v514, -1e+09
      %v516 = vsel %vm439, %v515, -inf
      %517 = vmax.xlane.f32.xlu0 %v516
      %v518 = vpop.xlane.xlu0 %517
      %v519 = vsub.f32 %v515, %v518
      %v520 = vmul.f32 %v519, 1.442695
      %v521 = vpow.pop %v520
      %v522 = vsel %vm439, %v521, 0.0
      %523 = vadd.xlane.f32.xlu0 %v522
      %v524 = vpop.xlane.xlu0 %523
      %v525 = vrcp.pop %v524
      %v526 = vmul.f32 %v521, %v525
      %527 = vrot.lane.b32.xlu0 %v431, 64
      %v528 = vpop.permute.xlu0 %527
      %v531 = vsel %vm439, %v526, 0
      %533 = vmatprep.subr.mxu0 0.0
      %534 = vmatpush1.msra.mxu0 %v528
      %535 = vmatprep.subr.mxu0 0.0
      %536 = vmatpush1.msra.mxu0 0.0
      %537 = vmatprep.subr.mxu0 0.0
      %538 = vmatpush1.msra.mxu0 0.0
      %539 = vmatprep.subr.mxu0 0.0
      %540 = vmatpush1.msra.mxu0 0.0
      %541 = vmatprep.subr.mxu0 0.0
      %542 = vmatpush1.msra.mxu0 0.0
      %543 = vmatprep.subr.mxu0 0.0
      %544 = vmatpush1.msra.mxu0 0.0
      %545 = vmatprep.subr.mxu0 0.0
      %546 = vmatpush1.msra.mxu0 0.0
      %547 = vmatprep.subr.mxu0 0.0
      %548 = vmatpush1.msra.mxu0 0.0
      %549 = vmatprep.subr.mxu0 0.0
      %550 = vmatpush1.msra.mxu0 0.0
      %551 = vmatprep.subr.mxu0 0.0
      %552 = vmatpush1.msra.mxu0 0.0
      %553 = vmatprep.subr.mxu0 0.0
      %554 = vmatpush1.msra.mxu0 0.0
      %555 = vmatprep.subr.mxu0 0.0
      %556 = vmatpush1.msra.mxu0 0.0
      %557 = vmatprep.subr.mxu0 0.0
      %558 = vmatpush1.msra.mxu0 0.0
      %559 = vmatprep.subr.mxu0 0.0
      %560 = vmatpush1.msra.mxu0 0.0
      %561 = vmatprep.subr.mxu0 0.0
      %562 = vmatpush1.msra.mxu0 0.0
      %563 = vmatprep.subr.mxu0 0.0
      %564 = vmatpush1.msra.mxu0 0.0
      %565 = vmatprep.subr.mxu0 0.0
      %566 = vmatpush1.msra.mxu0 0.0
      %567 = vmatprep.subr.mxu0 0.0
      %568 = vmatpush1.msra.mxu0 0.0
      %569 = vmatprep.subr.mxu0 0.0
      %570 = vmatpush1.msra.mxu0 0.0
      %571 = vmatprep.subr.mxu0 0.0
      %572 = vmatpush1.msra.mxu0 0.0
      %573 = vmatprep.subr.mxu0 0.0
      %574 = vmatpush1.msra.mxu0 0.0
      %575 = vmatprep.subr.mxu0 0.0
      %576 = vmatpush1.msra.mxu0 0.0
      %577 = vmatprep.subr.mxu0 0.0
      %578 = vmatpush1.msra.mxu0 0.0
      %579 = vmatprep.subr.mxu0 0.0
      %580 = vmatpush1.msra.mxu0 0.0
      %581 = vmatprep.subr.mxu0 0.0
      %582 = vmatpush1.msra.mxu0 0.0
      %583 = vmatprep.subr.mxu0 0.0
      %584 = vmatpush1.msra.mxu0 0.0
      %585 = vmatprep.subr.mxu0 0.0
      %586 = vmatpush1.msra.mxu0 0.0
      %587 = vmatprep.subr.mxu0 0.0
      %588 = vmatpush1.msra.mxu0 0.0
      %589 = vmatprep.subr.mxu0 0.0
      %590 = vmatpush1.msra.mxu0 0.0
      %591 = vmatprep.subr.mxu0 0.0
      %592 = vmatpush1.msra.mxu0 0.0
      %593 = vmatprep.subr.mxu0 0.0
      %594 = vmatpush1.msra.mxu0 0.0
      %595 = vmatprep.subr.mxu0 0.0
      %596 = vmatpush1.msra.mxu0 0.0
      %597 = vmatprep.mubr.f32.mxu0 0.0
      %598 = vmatmul.mubr.f32.gmra.mrb[0].mxu0 %v531
      %v599 = vpop.f32.mrb[0].mxu0
      %v600 = vadd.f32 0.0, %v599
      %v601 = vpop.f32.mrb[0].mxu0
      %602 = vdwg.mxu0
      %603 = vrot.lane.b32.xlu0 %v431, 120
      %v604 = vpop.permute.xlu0 %603
      %605 = vrot.lane.b32.xlu0 %v431, 88
      %v606 = vpop.permute.xlu0 %605
      %v607 = vsel %vm439, %v604, 0
      %v609 = vsel %vm439, %v606, 0
      %611 = vmatprep.subr.mxu0 0.0
      %612 = vmatpush1.xpose.msra.mxu0 %v609
      %613 = vmatprep.subr.mxu0 0.0
      %614 = vmatpush1.xpose.msra.mxu0 0.0
      %615 = vmatprep.subr.mxu0 0.0
      %616 = vmatpush1.xpose.msra.mxu0 0.0
      %617 = vmatprep.subr.mxu0 0.0
      %618 = vmatpush1.xpose.msra.mxu0 0.0
      %619 = vmatprep.subr.mxu0 0.0
      %620 = vmatpush1.xpose.msra.mxu0 0.0
      %621 = vmatprep.subr.mxu0 0.0
      %622 = vmatpush1.xpose.msra.mxu0 0.0
      %623 = vmatprep.subr.mxu0 0.0
      %624 = vmatpush1.xpose.msra.mxu0 0.0
      %625 = vmatprep.subr.mxu0 0.0
      %626 = vmatpush1.xpose.msra.mxu0 0.0
      %627 = vmatprep.subr.mxu0 0.0
      %628 = vmatpush1.xpose.msra.mxu0 0.0
      %629 = vmatprep.subr.mxu0 0.0
      %630 = vmatpush1.xpose.msra.mxu0 0.0
      %631 = vmatprep.subr.mxu0 0.0
      %632 = vmatpush1.xpose.msra.mxu0 0.0
      %633 = vmatprep.subr.mxu0 0.0
      %634 = vmatpush1.xpose.msra.mxu0 0.0
      %635 = vmatprep.subr.mxu0 0.0
      %636 = vmatpush1.xpose.msra.mxu0 0.0
      %637 = vmatprep.subr.mxu0 0.0
      %638 = vmatpush1.xpose.msra.mxu0 0.0
      %639 = vmatprep.subr.mxu0 0.0
      %640 = vmatpush1.xpose.msra.mxu0 0.0
      %641 = vmatprep.subr.mxu0 0.0
      %642 = vmatpush1.xpose.msra.mxu0 0.0
      %643 = vmatprep.subr.mxu0 0.0
      %644 = vmatpush1.xpose.msra.mxu0 0.0
      %645 = vmatprep.subr.mxu0 0.0
      %646 = vmatpush1.xpose.msra.mxu0 0.0
      %647 = vmatprep.subr.mxu0 0.0
      %648 = vmatpush1.xpose.msra.mxu0 0.0
      %649 = vmatprep.subr.mxu0 0.0
      %650 = vmatpush1.xpose.msra.mxu0 0.0
      %651 = vmatprep.subr.mxu0 0.0
      %652 = vmatpush1.xpose.msra.mxu0 0.0
      %653 = vmatprep.subr.mxu0 0.0
      %654 = vmatpush1.xpose.msra.mxu0 0.0
      %655 = vmatprep.subr.mxu0 0.0
      %656 = vmatpush1.xpose.msra.mxu0 0.0
      %657 = vmatprep.subr.mxu0 0.0
      %658 = vmatpush1.xpose.msra.mxu0 0.0
      %659 = vmatprep.subr.mxu0 0.0
      %660 = vmatpush1.xpose.msra.mxu0 0.0
      %661 = vmatprep.subr.mxu0 0.0
      %662 = vmatpush1.xpose.msra.mxu0 0.0
      %663 = vmatprep.subr.mxu0 0.0
      %664 = vmatpush1.xpose.msra.mxu0 0.0
      %665 = vmatprep.subr.mxu0 0.0
      %666 = vmatpush1.xpose.msra.mxu0 0.0
      %667 = vmatprep.subr.mxu0 0.0
      %668 = vmatpush1.xpose.msra.mxu0 0.0
      %669 = vmatprep.subr.mxu0 0.0
      %670 = vmatpush1.xpose.msra.mxu0 0.0
      %671 = vmatprep.subr.mxu0 0.0
      %672 = vmatpush1.xpose.msra.mxu0 0.0
      %673 = vmatprep.subr.mxu0 0.0
      %674 = vmatpush1.xpose.msra.mxu0 0.0
      %675 = vmatprep.mubr.f32.mxu0 0.0
      %676 = vmatmul.mubr.f32.gmra.mrb[0].mxu0 %v607
      %v677 = vpop.f32.mrb[0].mxu0
      %v678 = vadd.f32 0.0, %v677
      %v679 = vpop.f32.mrb[0].mxu0
      %680 = vdwg.mxu0
      %v681 = vmul.f32 %v678, 0.35355338
      %v682 = vsel %vm435, %v681, -1e+09
      %v683 = vsel %vm439, %v682, -inf
      %684 = vmax.xlane.f32.xlu0 %v683
      %v685 = vpop.xlane.xlu0 %684
      %v686 = vsub.f32 %v682, %v685
      %v687 = vmul.f32 %v686, 1.442695
      %v688 = vpow.pop %v687
      %v689 = vsel %vm439, %v688, 0.0
      %690 = vadd.xlane.f32.xlu0 %v689
      %v691 = vpop.xlane.xlu0 %690
      %v692 = vrcp.pop %v691
      %v693 = vmul.f32 %v688, %v692
      %694 = vrot.lane.b32.xlu0 %v431, 56
      %v695 = vpop.permute.xlu0 %694
      %v698 = vsel %vm439, %v693, 0
      %700 = vmatprep.subr.mxu0 0.0
      %701 = vmatpush1.msra.mxu0 %v695
      %702 = vmatprep.subr.mxu0 0.0
      %703 = vmatpush1.msra.mxu0 0.0
      %704 = vmatprep.subr.mxu0 0.0
      %705 = vmatpush1.msra.mxu0 0.0
      %706 = vmatprep.subr.mxu0 0.0
      %707 = vmatpush1.msra.mxu0 0.0
      %708 = vmatprep.subr.mxu0 0.0
      %709 = vmatpush1.msra.mxu0 0.0
      %710 = vmatprep.subr.mxu0 0.0
      %711 = vmatpush1.msra.mxu0 0.0
      %712 = vmatprep.subr.mxu0 0.0
      %713 = vmatpush1.msra.mxu0 0.0
      %714 = vmatprep.subr.mxu0 0.0
      %715 = vmatpush1.msra.mxu0 0.0
      %716 = vmatprep.subr.mxu0 0.0
      %717 = vmatpush1.msra.mxu0 0.0
      %718 = vmatprep.subr.mxu0 0.0
      %719 = vmatpush1.msra.mxu0 0.0
      %720 = vmatprep.subr.mxu0 0.0
      %721 = vmatpush1.msra.mxu0 0.0
      %722 = vmatprep.subr.mxu0 0.0
      %723 = vmatpush1.msra.mxu0 0.0
      %724 = vmatprep.subr.mxu0 0.0
      %725 = vmatpush1.msra.mxu0 0.0
      %726 = vmatprep.subr.mxu0 0.0
      %727 = vmatpush1.msra.mxu0 0.0
      %728 = vmatprep.subr.mxu0 0.0
      %729 = vmatpush1.msra.mxu0 0.0
      %730 = vmatprep.subr.mxu0 0.0
      %731 = vmatpush1.msra.mxu0 0.0
      %732 = vmatprep.subr.mxu0 0.0
      %733 = vmatpush1.msra.mxu0 0.0
      %734 = vmatprep.subr.mxu0 0.0
      %735 = vmatpush1.msra.mxu0 0.0
      %736 = vmatprep.subr.mxu0 0.0
      %737 = vmatpush1.msra.mxu0 0.0
      %738 = vmatprep.subr.mxu0 0.0
      %739 = vmatpush1.msra.mxu0 0.0
      %740 = vmatprep.subr.mxu0 0.0
      %741 = vmatpush1.msra.mxu0 0.0
      %742 = vmatprep.subr.mxu0 0.0
      %743 = vmatpush1.msra.mxu0 0.0
      %744 = vmatprep.subr.mxu0 0.0
      %745 = vmatpush1.msra.mxu0 0.0
      %746 = vmatprep.subr.mxu0 0.0
      %747 = vmatpush1.msra.mxu0 0.0
      %748 = vmatprep.subr.mxu0 0.0
      %749 = vmatpush1.msra.mxu0 0.0
      %750 = vmatprep.subr.mxu0 0.0
      %751 = vmatpush1.msra.mxu0 0.0
      %752 = vmatprep.subr.mxu0 0.0
      %753 = vmatpush1.msra.mxu0 0.0
      %754 = vmatprep.subr.mxu0 0.0
      %755 = vmatpush1.msra.mxu0 0.0
      %756 = vmatprep.subr.mxu0 0.0
      %757 = vmatpush1.msra.mxu0 0.0
      %758 = vmatprep.subr.mxu0 0.0
      %759 = vmatpush1.msra.mxu0 0.0
      %760 = vmatprep.subr.mxu0 0.0
      %761 = vmatpush1.msra.mxu0 0.0
      %762 = vmatprep.subr.mxu0 0.0
      %763 = vmatpush1.msra.mxu0 0.0
      %764 = vmatprep.mubr.f32.mxu0 0.0
      %765 = vmatmul.mubr.f32.gmra.mrb[0].mxu0 %v698
      %v766 = vpop.f32.mrb[0].mxu0
      %v767 = vadd.f32 0.0, %v766
      %v768 = vpop.f32.mrb[0].mxu0
      %769 = vdwg.mxu0
      %770 = vrot.lane.b32.xlu0 %v431, 112
      %v771 = vpop.permute.xlu0 %770
      %772 = vrot.lane.b32.xlu0 %v431, 80
      %v773 = vpop.permute.xlu0 %772
      %v774 = vsel %vm439, %v771, 0
      %v776 = vsel %vm439, %v773, 0
      %778 = vmatprep.subr.mxu0 0.0
      %779 = vmatpush1.xpose.msra.mxu0 %v776
      %780 = vmatprep.subr.mxu0 0.0
      %781 = vmatpush1.xpose.msra.mxu0 0.0
      %782 = vmatprep.subr.mxu0 0.0
      %783 = vmatpush1.xpose.msra.mxu0 0.0
      %784 = vmatprep.subr.mxu0 0.0
      %785 = vmatpush1.xpose.msra.mxu0 0.0
      %786 = vmatprep.subr.mxu0 0.0
      %787 = vmatpush1.xpose.msra.mxu0 0.0
      %788 = vmatprep.subr.mxu0 0.0
      %789 = vmatpush1.xpose.msra.mxu0 0.0
      %790 = vmatprep.subr.mxu0 0.0
      %791 = vmatpush1.xpose.msra.mxu0 0.0
      %792 = vmatprep.subr.mxu0 0.0
      %793 = vmatpush1.xpose.msra.mxu0 0.0
      %794 = vmatprep.subr.mxu0 0.0
      %795 = vmatpush1.xpose.msra.mxu0 0.0
      %796 = vmatprep.subr.mxu0 0.0
      %797 = vmatpush1.xpose.msra.mxu0 0.0
      %798 = vmatprep.subr.mxu0 0.0
      %799 = vmatpush1.xpose.msra.mxu0 0.0
      %800 = vmatprep.subr.mxu0 0.0
      %801 = vmatpush1.xpose.msra.mxu0 0.0
      %802 = vmatprep.subr.mxu0 0.0
      %803 = vmatpush1.xpose.msra.mxu0 0.0
      %804 = vmatprep.subr.mxu0 0.0
      %805 = vmatpush1.xpose.msra.mxu0 0.0
      %806 = vmatprep.subr.mxu0 0.0
      %807 = vmatpush1.xpose.msra.mxu0 0.0
      %808 = vmatprep.subr.mxu0 0.0
      %809 = vmatpush1.xpose.msra.mxu0 0.0
      %810 = vmatprep.subr.mxu0 0.0
      %811 = vmatpush1.xpose.msra.mxu0 0.0
      %812 = vmatprep.subr.mxu0 0.0
      %813 = vmatpush1.xpose.msra.mxu0 0.0
      %814 = vmatprep.subr.mxu0 0.0
      %815 = vmatpush1.xpose.msra.mxu0 0.0
      %816 = vmatprep.subr.mxu0 0.0
      %817 = vmatpush1.xpose.msra.mxu0 0.0
      %818 = vmatprep.subr.mxu0 0.0
      %819 = vmatpush1.xpose.msra.mxu0 0.0
      %820 = vmatprep.subr.mxu0 0.0
      %821 = vmatpush1.xpose.msra.mxu0 0.0
      %822 = vmatprep.subr.mxu0 0.0
      %823 = vmatpush1.xpose.msra.mxu0 0.0
      %824 = vmatprep.subr.mxu0 0.0
      %825 = vmatpush1.xpose.msra.mxu0 0.0
      %826 = vmatprep.subr.mxu0 0.0
      %827 = vmatpush1.xpose.msra.mxu0 0.0
      %828 = vmatprep.subr.mxu0 0.0
      %829 = vmatpush1.xpose.msra.mxu0 0.0
      %830 = vmatprep.subr.mxu0 0.0
      %831 = vmatpush1.xpose.msra.mxu0 0.0
      %832 = vmatprep.subr.mxu0 0.0
      %833 = vmatpush1.xpose.msra.mxu0 0.0
      %834 = vmatprep.subr.mxu0 0.0
      %835 = vmatpush1.xpose.msra.mxu0 0.0
      %836 = vmatprep.subr.mxu0 0.0
      %837 = vmatpush1.xpose.msra.mxu0 0.0
      %838 = vmatprep.subr.mxu0 0.0
      %839 = vmatpush1.xpose.msra.mxu0 0.0
      %840 = vmatprep.subr.mxu0 0.0
      %841 = vmatpush1.xpose.msra.mxu0 0.0
      %842 = vmatprep.mubr.f32.mxu0 0.0
      %843 = vmatmul.mubr.f32.gmra.mrb[0].mxu0 %v774
      %v844 = vpop.f32.mrb[0].mxu0
      %v845 = vadd.f32 0.0, %v844
      %v846 = vpop.f32.mrb[0].mxu0
      %847 = vdwg.mxu0
      %v848 = vmul.f32 %v845, 0.35355338
      %v849 = vsel %vm435, %v848, -1e+09
      %v850 = vsel %vm439, %v849, -inf
      %851 = vmax.xlane.f32.xlu0 %v850
      %v852 = vpop.xlane.xlu0 %851
      %v853 = vsub.f32 %v849, %v852
      %v854 = vmul.f32 %v853, 1.442695
      %v855 = vpow.pop %v854
      %v856 = vsel %vm439, %v855, 0.0
      %857 = vadd.xlane.f32.xlu0 %v856
      %v858 = vpop.xlane.xlu0 %857
      %v859 = vrcp.pop %v858
      %v860 = vmul.f32 %v855, %v859
      %861 = vrot.lane.b32.xlu0 %v431, 48
      %v862 = vpop.permute.xlu0 %861
      %v865 = vsel %vm439, %v860, 0
      %867 = vmatprep.subr.mxu0 0.0
      %868 = vmatpush1.msra.mxu0 %v862
      %869 = vmatprep.subr.mxu0 0.0
      %870 = vmatpush1.msra.mxu0 0.0
      %871 = vmatprep.subr.mxu0 0.0
      %872 = vmatpush1.msra.mxu0 0.0
      %873 = vmatprep.subr.mxu0 0.0
      %874 = vmatpush1.msra.mxu0 0.0
      %875 = vmatprep.subr.mxu0 0.0
      %876 = vmatpush1.msra.mxu0 0.0
      %877 = vmatprep.subr.mxu0 0.0
      %878 = vmatpush1.msra.mxu0 0.0
      %879 = vmatprep.subr.mxu0 0.0
      %880 = vmatpush1.msra.mxu0 0.0
      %881 = vmatprep.subr.mxu0 0.0
      %882 = vmatpush1.msra.mxu0 0.0
      %883 = vmatprep.subr.mxu0 0.0
      %884 = vmatpush1.msra.mxu0 0.0
      %885 = vmatprep.subr.mxu0 0.0
      %886 = vmatpush1.msra.mxu0 0.0
      %887 = vmatprep.subr.mxu0 0.0
      %888 = vmatpush1.msra.mxu0 0.0
      %889 = vmatprep.subr.mxu0 0.0
      %890 = vmatpush1.msra.mxu0 0.0
      %891 = vmatprep.subr.mxu0 0.0
      %892 = vmatpush1.msra.mxu0 0.0
      %893 = vmatprep.subr.mxu0 0.0
      %894 = vmatpush1.msra.mxu0 0.0
      %895 = vmatprep.subr.mxu0 0.0
      %896 = vmatpush1.msra.mxu0 0.0
      %897 = vmatprep.subr.mxu0 0.0
      %898 = vmatpush1.msra.mxu0 0.0
      %899 = vmatprep.subr.mxu0 0.0
      %900 = vmatpush1.msra.mxu0 0.0
      %901 = vmatprep.subr.mxu0 0.0
      %902 = vmatpush1.msra.mxu0 0.0
      %903 = vmatprep.subr.mxu0 0.0
      %904 = vmatpush1.msra.mxu0 0.0
      %905 = vmatprep.subr.mxu0 0.0
      %906 = vmatpush1.msra.mxu0 0.0
      %907 = vmatprep.subr.mxu0 0.0
      %908 = vmatpush1.msra.mxu0 0.0
      %909 = vmatprep.subr.mxu0 0.0
      %910 = vmatpush1.msra.mxu0 0.0
      %911 = vmatprep.subr.mxu0 0.0
      %912 = vmatpush1.msra.mxu0 0.0
      %913 = vmatprep.subr.mxu0 0.0
      %914 = vmatpush1.msra.mxu0 0.0
      %915 = vmatprep.subr.mxu0 0.0
      %916 = vmatpush1.msra.mxu0 0.0
      %917 = vmatprep.subr.mxu0 0.0
      %918 = vmatpush1.msra.mxu0 0.0
      %919 = vmatprep.subr.mxu0 0.0
      %920 = vmatpush1.msra.mxu0 0.0
      %921 = vmatprep.subr.mxu0 0.0
      %922 = vmatpush1.msra.mxu0 0.0
      %923 = vmatprep.subr.mxu0 0.0
      %924 = vmatpush1.msra.mxu0 0.0
      %925 = vmatprep.subr.mxu0 0.0
      %926 = vmatpush1.msra.mxu0 0.0
      %927 = vmatprep.subr.mxu0 0.0
      %928 = vmatpush1.msra.mxu0 0.0
      %929 = vmatprep.subr.mxu0 0.0
      %930 = vmatpush1.msra.mxu0 0.0
      %931 = vmatprep.mubr.f32.mxu0 0.0
      %932 = vmatmul.mubr.f32.gmra.mrb[0].mxu0 %v865
      %v933 = vpop.f32.mrb[0].mxu0
      %v934 = vadd.f32 0.0, %v933
      %v935 = vpop.f32.mrb[0].mxu0
      %936 = vdwg.mxu0
      %937 = vrot.lane.b32.xlu0 %v431, 104
      %v938 = vpop.permute.xlu0 %937
      %939 = vrot.lane.b32.xlu0 %v431, 72
      %v940 = vpop.permute.xlu0 %939
      %v941 = vsel %vm439, %v938, 0
      %v943 = vsel %vm439, %v940, 0
      %945 = vmatprep.subr.mxu0 0.0
      %946 = vmatpush1.xpose.msra.mxu0 %v943
      %947 = vmatprep.subr.mxu0 0.0
      %948 = vmatpush1.xpose.msra.mxu0 0.0
      %949 = vmatprep.subr.mxu0 0.0
      %950 = vmatpush1.xpose.msra.mxu0 0.0
      %951 = vmatprep.subr.mxu0 0.0
      %952 = vmatpush1.xpose.msra.mxu0 0.0
      %953 = vmatprep.subr.mxu0 0.0
      %954 = vmatpush1.xpose.msra.mxu0 0.0
      %955 = vmatprep.subr.mxu0 0.0
      %956 = vmatpush1.xpose.msra.mxu0 0.0
      %957 = vmatprep.subr.mxu0 0.0
      %958 = vmatpush1.xpose.msra.mxu0 0.0
      %959 = vmatprep.subr.mxu0 0.0
      %960 = vmatpush1.xpose.msra.mxu0 0.0
      %961 = vmatprep.subr.mxu0 0.0
      %962 = vmatpush1.xpose.msra.mxu0 0.0
      %963 = vmatprep.subr.mxu0 0.0
      %964 = vmatpush1.xpose.msra.mxu0 0.0
      %965 = vmatprep.subr.mxu0 0.0
      %966 = vmatpush1.xpose.msra.mxu0 0.0
      %967 = vmatprep.subr.mxu0 0.0
      %968 = vmatpush1.xpose.msra.mxu0 0.0
      %969 = vmatprep.subr.mxu0 0.0
      %970 = vmatpush1.xpose.msra.mxu0 0.0
      %971 = vmatprep.subr.mxu0 0.0
      %972 = vmatpush1.xpose.msra.mxu0 0.0
      %973 = vmatprep.subr.mxu0 0.0
      %974 = vmatpush1.xpose.msra.mxu0 0.0
      %975 = vmatprep.subr.mxu0 0.0
      %976 = vmatpush1.xpose.msra.mxu0 0.0
      %977 = vmatprep.subr.mxu0 0.0
      %978 = vmatpush1.xpose.msra.mxu0 0.0
      %979 = vmatprep.subr.mxu0 0.0
      %980 = vmatpush1.xpose.msra.mxu0 0.0
      %981 = vmatprep.subr.mxu0 0.0
      %982 = vmatpush1.xpose.msra.mxu0 0.0
      %983 = vmatprep.subr.mxu0 0.0
      %984 = vmatpush1.xpose.msra.mxu0 0.0
      %985 = vmatprep.subr.mxu0 0.0
      %986 = vmatpush1.xpose.msra.mxu0 0.0
      %987 = vmatprep.subr.mxu0 0.0
      %988 = vmatpush1.xpose.msra.mxu0 0.0
      %989 = vmatprep.subr.mxu0 0.0
      %990 = vmatpush1.xpose.msra.mxu0 0.0
      %991 = vmatprep.subr.mxu0 0.0
      %992 = vmatpush1.xpose.msra.mxu0 0.0
      %993 = vmatprep.subr.mxu0 0.0
      %994 = vmatpush1.xpose.msra.mxu0 0.0
      %995 = vmatprep.subr.mxu0 0.0
      %996 = vmatpush1.xpose.msra.mxu0 0.0
      %997 = vmatprep.subr.mxu0 0.0
      %998 = vmatpush1.xpose.msra.mxu0 0.0
      %999 = vmatprep.subr.mxu0 0.0
      %1000 = vmatpush1.xpose.msra.mxu0 0.0
      %1001 = vmatprep.subr.mxu0 0.0
      %1002 = vmatpush1.xpose.msra.mxu0 0.0
      %1003 = vmatprep.subr.mxu0 0.0
      %1004 = vmatpush1.xpose.msra.mxu0 0.0
      %1005 = vmatprep.subr.mxu0 0.0
      %1006 = vmatpush1.xpose.msra.mxu0 0.0
      %1007 = vmatprep.subr.mxu0 0.0
      %1008 = vmatpush1.xpose.msra.mxu0 0.0
      %1009 = vmatprep.mubr.f32.mxu0 0.0
      %1010 = vmatmul.mubr.f32.gmra.mrb[0].mxu0 %v941
      %v1011 = vpop.f32.mrb[0].mxu0
      %v1012 = vadd.f32 0.0, %v1011
      %v1013 = vpop.f32.mrb[0].mxu0
      %1014 = vdwg.mxu0
      %v1015 = vmul.f32 %v1012, 0.35355338
      %v1016 = vsel %vm435, %v1015, -1e+09
      %v1017 = vsel %vm439, %v1016, -inf
      %1018 = vmax.xlane.f32.xlu0 %v1017
      %v1019 = vpop.xlane.xlu0 %1018
      %v1020 = vsub.f32 %v1016, %v1019
      %v1021 = vmul.f32 %v1020, 1.442695
      %v1022 = vpow.pop %v1021
      %v1023 = vsel %vm439, %v1022, 0.0
      %1024 = vadd.xlane.f32.xlu0 %v1023
      %v1025 = vpop.xlane.xlu0 %1024
      %v1026 = vrcp.pop %v1025
      %v1027 = vmul.f32 %v1022, %v1026
      %1028 = vrot.lane.b32.xlu0 %v431, 40
      %v1029 = vpop.permute.xlu0 %1028
      %v1032 = vsel %vm439, %v1027, 0
      %1034 = vmatprep.subr.mxu0 0.0
      %1035 = vmatpush1.msra.mxu0 %v1029
      %1036 = vmatprep.subr.mxu0 0.0
      %1037 = vmatpush1.msra.mxu0 0.0
      %1038 = vmatprep.subr.mxu0 0.0
      %1039 = vmatpush1.msra.mxu0 0.0
      %1040 = vmatprep.subr.mxu0 0.0
      %1041 = vmatpush1.msra.mxu0 0.0
      %1042 = vmatprep.subr.mxu0 0.0
      %1043 = vmatpush1.msra.mxu0 0.0
      %1044 = vmatprep.subr.mxu0 0.0
      %1045 = vmatpush1.msra.mxu0 0.0
      %1046 = vmatprep.subr.mxu0 0.0
      %1047 = vmatpush1.msra.mxu0 0.0
      %1048 = vmatprep.subr.mxu0 0.0
      %1049 = vmatpush1.msra.mxu0 0.0
      %1050 = vmatprep.subr.mxu0 0.0
      %1051 = vmatpush1.msra.mxu0 0.0
      %1052 = vmatprep.subr.mxu0 0.0
      %1053 = vmatpush1.msra.mxu0 0.0
      %1054 = vmatprep.subr.mxu0 0.0
      %1055 = vmatpush1.msra.mxu0 0.0
      %1056 = vmatprep.subr.mxu0 0.0
      %1057 = vmatpush1.msra.mxu0 0.0
      %1058 = vmatprep.subr.mxu0 0.0
      %1059 = vmatpush1.msra.mxu0 0.0
      %1060 = vmatprep.subr.mxu0 0.0
      %1061 = vmatpush1.msra.mxu0 0.0
      %1062 = vmatprep.subr.mxu0 0.0
      %1063 = vmatpush1.msra.mxu0 0.0
      %1064 = vmatprep.subr.mxu0 0.0
      %1065 = vmatpush1.msra.mxu0 0.0
      %1066 = vmatprep.subr.mxu0 0.0
      %1067 = vmatpush1.msra.mxu0 0.0
      %1068 = vmatprep.subr.mxu0 0.0
      %1069 = vmatpush1.msra.mxu0 0.0
      %1070 = vmatprep.subr.mxu0 0.0
      %1071 = vmatpush1.msra.mxu0 0.0
      %1072 = vmatprep.subr.mxu0 0.0
      %1073 = vmatpush1.msra.mxu0 0.0
      %1074 = vmatprep.subr.mxu0 0.0
      %1075 = vmatpush1.msra.mxu0 0.0
      %1076 = vmatprep.subr.mxu0 0.0
      %1077 = vmatpush1.msra.mxu0 0.0
      %1078 = vmatprep.subr.mxu0 0.0
      %1079 = vmatpush1.msra.mxu0 0.0
      %1080 = vmatprep.subr.mxu0 0.0
      %1081 = vmatpush1.msra.mxu0 0.0
      %1082 = vmatprep.subr.mxu0 0.0
      %1083 = vmatpush1.msra.mxu0 0.0
      %1084 = vmatprep.subr.mxu0 0.0
      %1085 = vmatpush1.msra.mxu0 0.0
      %1086 = vmatprep.subr.mxu0 0.0
      %1087 = vmatpush1.msra.mxu0 0.0
      %1088 = vmatprep.subr.mxu0 0.0
      %1089 = vmatpush1.msra.mxu0 0.0
      %1090 = vmatprep.subr.mxu0 0.0
      %1091 = vmatpush1.msra.mxu0 0.0
      %1092 = vmatprep.subr.mxu0 0.0
      %1093 = vmatpush1.msra.mxu0 0.0
      %1094 = vmatprep.subr.mxu0 0.0
      %1095 = vmatpush1.msra.mxu0 0.0
      %1096 = vmatprep.subr.mxu0 0.0
      %1097 = vmatpush1.msra.mxu0 0.0
      %1098 = vmatprep.mubr.f32.mxu0 0.0
      %1099 = vmatmul.mubr.f32.gmra.mrb[0].mxu0 %v1032
      %v1100 = vpop.f32.mrb[0].mxu0
      %v1101 = vadd.f32 0.0, %v1100
      %v1102 = vpop.f32.mrb[0].mxu0
      %1103 = vdwg.mxu0
      %1105 = vrot.lane.b32.xlu0 %v767, 8
      %v1106 = vpop.permute.xlu0 %1105
      %1109 = vrot.lane.b32.xlu0 %v934, 16
      %v1110 = vpop.permute.xlu0 %1109
      %1113 = vrot.lane.b32.xlu0 %v1101, 24
      %v1114 = vpop.permute.xlu0 %1113
      %v1116 = vsel %vm439, %v600, %v1106
      %vm1117 = vcmask 130048
      %v1118 = vsel %vm1117, %v1116, %v1110
      %vm1119 = vcmask 195584
      %v1120 = vsel %vm1119, %v1118, %v1114
      %v1121 = vld [vmem:[%s6] sm:$0xff]
      %v1122 = vld [vmem:[%s6 + $0x8] sm:$0xff]
      %v1123 = vld [vmem:[%s6 + $0x10] sm:$0xff]
      %v1124 = vld [vmem:[%s6 + $0x18] sm:$0xff]
      %v1125 = vld [vmem:[%s7] sm:$0x1]
      %v1127 = vlaneseq
      %v1128 = vshrl.u32 %v1127, 7
      %v1129 = vsub.s32 0, %v1128
      %v1130 = vrot.slane %v1125, %v1129
      %v1133 = vsel %vm323, %v1120, 0
      %1135 = vmatprep.subr.mxu0 0.0
      %1136 = vmatpush1.msra.mxu0 %v1121
      %1137 = vmatprep.subr.mxu0 0.0
      %1138 = vmatpush1.msra.mxu0 %v1122
      %1139 = vmatprep.subr.mxu0 0.0
      %1140 = vmatpush1.msra.mxu0 %v1123
      %1141 = vmatprep.subr.mxu0 0.0
      %1142 = vmatpush1.msra.mxu0 %v1124
      %1143 = vmatprep.subr.mxu0 0.0
      %1144 = vmatpush1.msra.mxu0 0.0
      %1145 = vmatprep.subr.mxu0 0.0
      %1146 = vmatpush1.msra.mxu0 0.0
      %1147 = vmatprep.subr.mxu0 0.0
      %1148 = vmatpush1.msra.mxu0 0.0
      %1149 = vmatprep.subr.mxu0 0.0
      %1150 = vmatpush1.msra.mxu0 0.0
      %1151 = vmatprep.subr.mxu0 0.0
      %1152 = vmatpush1.msra.mxu0 0.0
      %1153 = vmatprep.subr.mxu0 0.0
      %1154 = vmatpush1.msra.mxu0 0.0
      %1155 = vmatprep.subr.mxu0 0.0
      %1156 = vmatpush1.msra.mxu0 0.0
      %1157 = vmatprep.subr.mxu0 0.0
      %1158 = vmatpush1.msra.mxu0 0.0
      %1159 = vmatprep.subr.mxu0 0.0
      %1160 = vmatpush1.msra.mxu0 0.0
      %1161 = vmatprep.subr.mxu0 0.0
      %1162 = vmatpush1.msra.mxu0 0.0
      %1163 = vmatprep.subr.mxu0 0.0
      %1164 = vmatpush1.msra.mxu0 0.0
      %1165 = vmatprep.subr.mxu0 0.0
      %1166 = vmatpush1.msra.mxu0 0.0
      %1167 = vmatprep.subr.mxu0 0.0
      %1168 = vmatpush1.msra.mxu0 0.0
      %1169 = vmatprep.subr.mxu0 0.0
      %1170 = vmatpush1.msra.mxu0 0.0
      %1171 = vmatprep.subr.mxu0 0.0
      %1172 = vmatpush1.msra.mxu0 0.0
      %1173 = vmatprep.subr.mxu0 0.0
      %1174 = vmatpush1.msra.mxu0 0.0
      %1175 = vmatprep.subr.mxu0 0.0
      %1176 = vmatpush1.msra.mxu0 0.0
      %1177 = vmatprep.subr.mxu0 0.0
      %1178 = vmatpush1.msra.mxu0 0.0
      %1179 = vmatprep.subr.mxu0 0.0
      %1180 = vmatpush1.msra.mxu0 0.0
      %1181 = vmatprep.subr.mxu0 0.0
      %1182 = vmatpush1.msra.mxu0 0.0
      %1183 = vmatprep.subr.mxu0 0.0
      %1184 = vmatpush1.msra.mxu0 0.0
      %1185 = vmatprep.subr.mxu0 0.0
      %1186 = vmatpush1.msra.mxu0 0.0
      %1187 = vmatprep.subr.mxu0 0.0
      %1188 = vmatpush1.msra.mxu0 0.0
      %1189 = vmatprep.subr.mxu0 0.0
      %1190 = vmatpush1.msra.mxu0 0.0
      %1191 = vmatprep.subr.mxu0 0.0
      %1192 = vmatpush1.msra.mxu0 0.0
      %1193 = vmatprep.subr.mxu0 0.0
      %1194 = vmatpush1.msra.mxu0 0.0
      %1195 = vmatprep.subr.mxu0 0.0
      %1196 = vmatpush1.msra.mxu0 0.0
      %1197 = vmatprep.subr.mxu0 0.0
      %1198 = vmatpush1.msra.mxu0 0.0
      %1199 = vmatprep.mubr.f32.mxu0 0.0
      %1200 = vmatmul.mubr.f32.gmra.mrb[0].mxu0 %v1133
      %v1201 = vpop.f32.mrb[0].mxu0
      %v1202 = vadd.f32 %v1130, %v1201
      %v1203 = vpop.f32.mrb[0].mxu0
      %1204 = vdwg.mxu0
      %v1205 = vadd.f32 %v1202, %v320
      %1206 = vst.msk [vmem:[%s319] sm:$0xff] %vm323, %v1205
      %p1207 = scmp.lt.s32.totalorder %s21, 1
      %s1208 = scalar_select %p1207, %s21, 1
      %s1209 = smul.addr %s1208, 8
      %s1210 = scalar_lea.vmem %s8, %s1209
      // Predicated region
      $region53: #{decoder_forward.7} parent=51 // pred_check
        %p1211 = pneg %p217
      $region54: #{decoder_forward.7} parent=51 // pred_check_branch
        %1213 = sbr.rel (%p1211) target = $region56
      $region55: #{decoder_forward.7} parent=51 // pred_region
        _
      $region56: #{decoder_forward.7} parent=51 // pred_fallthru
        _
    $region52: #{decoder_forward.7} parent=5 // pred_fallthru
      _
    %p1214 = scmp.le.s32.totalorder 2, %s16
    // Predicated region
    $region57: #{decoder_forward.7} parent=5 // pred_check
      %p1215 = pneg %p1214
    $region58: #{decoder_forward.7} parent=5 // pred_check_branch
      %1217 = sbr.rel (%p1215) target = $region60
    $region59: #{decoder_forward.7} parent=5 // pred_region
      %s1218 = ssub.s32 %s16, 2
      // Predicated region
      $region61: #{decoder_forward.7} parent=59 // pred_check
        %p1219 = pneg %p223
      $region62: #{decoder_forward.7} parent=59 // pred_check_branch
        %1221 = sbr.rel (%p1219) target = $region64
      $region63: #{decoder_forward.7} parent=59 // pred_region
        %p1222 = scmp.lt.s32.totalorder %s22, 1
        %s1223 = scalar_select %p1222, %s22, 1
        %s1224 = smul.addr %s1223, 8
        %s1225 = scalar_lea.vmem %s8, %s1224
      $region64: #{decoder_forward.7} parent=59 // pred_fallthru
        _
    $region60: #{decoder_forward.7} parent=5 // pred_fallthru
      _
  $region6: #{decoder_forward.7} parent=0 // loop_footer
    %s20 = sadd.s32 1, %s16
  $region7: #{decoder_forward.7} parent=0 // loop_footer_branch
    %15 = sbr.rel target = $region3
  $region8: #{decoder_forward.7} parent=0 // loop_exit
    _

// kernel: decoder_forward.8
$region0: #{decoder_forward.8}
  #allocation0 [shape = 'u32[]', space=smem, size = 0x4, offset = 0x4, fixed_abs, tag = 'smem constant byte address 0x4 - core index']
  #allocation1 [shape = 'u32[144,128]{1,0:T(1,128)}', space=vmem, size = 0x12000, scoped, tag = 'internal scratch']
  #allocation2 [shape = 'f32[1]{0:T(128)S(6)}', space=smem, size = 0x200, scoped, tag = 'scoped memory for decoder_forward.8']
  #allocation3 [shape = 'f32[1]{0:T(128)S(6)}', space=smem, size = 0x200, scoped, tag = 'scoped memory for decoder_forward.8']
  %s0 = inlined_call_operand.<no memory space> [shape: f32[1], index: 0, kind: input, shape index: {}]
  %s1 = inlined_call_operand.<no memory space> [shape: f32[1], index: 1, kind: input, shape index: {}]
  %s2 = inlined_call_operand.vmem [shape: f32[2,8,32], index: 2, kind: input, shape index: {}]
  %s3 = inlined_call_operand.vmem [shape: f32[2,12,32], index: 3, kind: input, shape index: {}]
  %s4 = inlined_call_operand.vmem [shape: f32[2,8,12], index: 4, kind: input, shape index: {}]
  %s5 = inlined_call_operand.vmem [shape: f32[32,32], index: 5, kind: input, shape index: {}]
  %s6 = inlined_call_operand.vmem [shape: f32[1,32], index: 6, kind: input, shape index: {}]
  %s7 = inlined_call_operand.vmem [shape: f32[32,64], index: 7, kind: input, shape index: {}]
  %s8 = inlined_call_operand.vmem [shape: f32[1,64], index: 8, kind: input, shape index: {}]
  %s9 = inlined_call_operand.vmem [shape: f32[32,32], index: 9, kind: input, shape index: {}]
  %s10 = inlined_call_operand.vmem [shape: f32[1,32], index: 10, kind: input, shape index: {}]
  %s11 = inlined_call_operand.vmem [shape: f32[2,8,32], index: 11, kind: output, shape index: {}]
  %s12 = sld [smem:[#allocation0]]
  $region77: #{decoder_forward.8} parent=0
    _
  %s14 = ssub.s32 1, %s12
  %s15 = scalar_select 0, %s14, %s12
  %16 = sst [smem:[#allocation2]] %s0
  %17 = sst [smem:[#allocation3]] %s1
  loop: start=0, step=1, limit=4
  $region2: #{decoder_forward.8} parent=0 // loop_pre_header
    _
  $region3: #{decoder_forward.8} parent=0 // loop_header
    %s19 = sphi 0, %s23
    %p20 = scmp.ge.s32.totalorder %s19, 4
    %s27 = sphi 0, %s27
    %s29 = sphi 0, %s27
    %s30 = sphi 0, %s29
    %s44 = sphi 0, %s30
    %s48 = sphi 0, %s48
    %s50 = sphi 0, %s48
    %s51 = sphi 0, %s50
    %s65 = sphi 0, %s51
    %s71 = sphi 0, %s73
    %s74 = sphi 0, %s71
    %s75 = sphi 0, %s74
    %s91 = sphi 0, %s75
    %s97 = sphi 0, %s99
    %s100 = sphi 0, %s97
    %s101 = sphi 0, %s100
    %s117 = sphi 0, %s101
    %s123 = sphi 0, %s125
    %s126 = sphi 0, %s123
    %s127 = sphi 0, %s126
    %s143 = sphi 0, %s127
    %s147 = sphi 0, %s147
    %s149 = sphi 0, %s147
    %s150 = sphi 0, %s149
    %s164 = sphi 0, %s150
    %s168 = sphi 0, %s168
    %s170 = sphi 0, %s168
    %s171 = sphi 0, %s170
    %s185 = sphi 0, %s171
    %s189 = sphi 0, %s189
    %s191 = sphi 0, %s189
    %s192 = sphi 0, %s191
    %s206 = sphi 0, %s192
    %s210 = sphi 0, %s210
    %s212 = sphi 0, %s210
    %s213 = sphi 0, %s212
    %s227 = sphi 0, %s213
    %s231 = sphi 0, %s231
    %s233 = sphi 0, %s231
    %s234 = sphi 0, %s233
    %s248 = sphi 0, %s234
    %s252 = sphi 0, %s252
    %s254 = sphi 0, %s252
    %s255 = sphi 0, %s254
    %s269 = sphi 0, %s255
    %s275 = sphi 0, %s277
    %s278 = sphi 0, %s275
    %s279 = sphi 0, %s278
    %s295 = sphi 0, %s279
  $region4: #{decoder_forward.8} parent=0 // loop_header_branch
    %22 = sbr.rel (%p20) target = $region8
  $region5: #{decoder_forward.8} parent=0 // loop_body
    %s24 = ssub.s32 %s19, 1
    %s25 = ssub.s32 %s19, 2
    %s26 = sadd.s32 %s19, 1
    %s28 = sadd.s32 %s27, 1
    %p31 = scmp.eq.s32.totalorder %s19, 1
    %p32 = scmp.ne.s32.totalorder %s27, %s29
    %p33 = scmp.eq.s32.totalorder %s19, 0
    %p34 = por %p32, %p33
    %p35 = scmp.ne.s32.totalorder %s27, %s29
    %p36 = scmp.eq.s32.totalorder %s24, 1
    %p37 = por %p35, %p36
    %p38 = scmp.ne.s32.totalorder %s29, %s30
    %p39 = scmp.eq.s32.totalorder %s24, 0
    %p40 = por %p38, %p39
    %p41 = scmp.ne.s32.totalorder %s29, %s30
    %p42 = scmp.eq.s32.totalorder %s25, 1
    %p43 = por %p41, %p42
    %p45 = scmp.ne.s32.totalorder %s30, %s44
    %p46 = scmp.eq.s32.totalorder %s25, 0
    %p47 = por %p45, %p46
    %s49 = sadd.s32 %s48, 1
    %p52 = scmp.eq.s32.totalorder %s19, 1
    %p53 = scmp.ne.s32.totalorder %s48, %s50
    %p54 = scmp.eq.s32.totalorder %s19, 0
    %p55 = por %p53, %p54
    %p56 = scmp.ne.s32.totalorder %s48, %s50
    %p57 = scmp.eq.s32.totalorder %s24, 1
    %p58 = por %p56, %p57
    %p59 = scmp.ne.s32.totalorder %s50, %s51
    %p60 = scmp.eq.s32.totalorder %s24, 0
    %p61 = por %p59, %p60
    %p62 = scmp.ne.s32.totalorder %s50, %s51
    %p63 = scmp.eq.s32.totalorder %s25, 1
    %p64 = por %p62, %p63
    %p66 = scmp.ne.s32.totalorder %s51, %s65
    %p67 = scmp.eq.s32.totalorder %s25, 0
    %p68 = por %p66, %p67
    %s69 = ssub.s32 %s19, %s26
    %p70 = scmp.eq.s32.totalorder %s69, 0
    %s72 = sadd.s32 %s71, 1
    %s73 = scalar_select %p70, %s71, %s72
    %p76 = pneg %p70
    %p77 = scmp.eq.s32.totalorder %s19, 1
    %p78 = por %p76, %p77
    %p79 = scmp.ne.s32.totalorder %s71, %s74
    %p80 = scmp.eq.s32.totalorder %s19, 0
    %p81 = por %p79, %p80
    %p82 = scmp.ne.s32.totalorder %s71, %s74
    %p83 = scmp.eq.s32.totalorder %s24, 1
    %p84 = por %p82, %p83
    %p85 = scmp.ne.s32.totalorder %s74, %s75
    %p86 = scmp.eq.s32.totalorder %s24, 0
    %p87 = por %p85, %p86
    %p88 = scmp.ne.s32.totalorder %s74, %s75
    %p89 = scmp.eq.s32.totalorder %s25, 1
    %p90 = por %p88, %p89
    %p92 = scmp.ne.s32.totalorder %s75, %s91
    %p93 = scmp.eq.s32.totalorder %s25, 0
    %p94 = por %p92, %p93
    %s95 = ssub.s32 %s19, %s26
    %p96 = scmp.eq.s32.totalorder %s95, 0
    %s98 = sadd.s32 %s97, 1
    %s99 = scalar_select %p96, %s97, %s98
    %p102 = pneg %p96
    %p103 = scmp.eq.s32.totalorder %s19, 1
    %p104 = por %p102, %p103
    %p105 = scmp.ne.s32.totalorder %s97, %s100
    %p106 = scmp.eq.s32.totalorder %s19, 0
    %p107 = por %p105, %p106
    %p108 = scmp.ne.s32.totalorder %s97, %s100
    %p109 = scmp.eq.s32.totalorder %s24, 1
    %p110 = por %p108, %p109
    %p111 = scmp.ne.s32.totalorder %s100, %s101
    %p112 = scmp.eq.s32.totalorder %s24, 0
    %p113 = por %p111, %p112
    %p114 = scmp.ne.s32.totalorder %s100, %s101
    %p115 = scmp.eq.s32.totalorder %s25, 1
    %p116 = por %p114, %p115
    %p118 = scmp.ne.s32.totalorder %s101, %s117
    %p119 = scmp.eq.s32.totalorder %s25, 0
    %p120 = por %p118, %p119
    %s121 = ssub.s32 %s19, %s26
    %p122 = scmp.eq.s32.totalorder %s121, 0
    %s124 = sadd.s32 %s123, 1
    %s125 = scalar_select %p122, %s123, %s124
    %p128 = pneg %p122
    %p129 = scmp.eq.s32.totalorder %s19, 1
    %p130 = por %p128, %p129
    %p131 = scmp.ne.s32.totalorder %s123, %s126
    %p132 = scmp.eq.s32.totalorder %s19, 0
    %p133 = por %p131, %p132
    %p134 = scmp.ne.s32.totalorder %s123, %s126
    %p135 = scmp.eq.s32.totalorder %s24, 1
    %p136 = por %p134, %p135
    %p137 = scmp.ne.s32.totalorder %s126, %s127
    %p138 = scmp.eq.s32.totalorder %s24, 0
    %p139 = por %p137, %p138
    %p140 = scmp.ne.s32.totalorder %s126, %s127
    %p141 = scmp.eq.s32.totalorder %s25, 1
    %p142 = por %p140, %p141
    %p144 = scmp.ne.s32.totalorder %s127, %s143
    %p145 = scmp.eq.s32.totalorder %s25, 0
    %p146 = por %p144, %p145
    %s148 = sadd.s32 %s147, 1
    %p151 = scmp.eq.s32.totalorder %s19, 1
    %p152 = scmp.ne.s32.totalorder %s147, %s149
    %p153 = scmp.eq.s32.totalorder %s19, 0
    %p154 = por %p152, %p153
    %p155 = scmp.ne.s32.totalorder %s147, %s149
    %p156 = scmp.eq.s32.totalorder %s24, 1
    %p157 = por %p155, %p156
    %p158 = scmp.ne.s32.totalorder %s149, %s150
    %p159 = scmp.eq.s32.totalorder %s24, 0
    %p160 = por %p158, %p159
    %p161 = scmp.ne.s32.totalorder %s149, %s150
    %p162 = scmp.eq.s32.totalorder %s25, 1
    %p163 = por %p161, %p162
    %p165 = scmp.ne.s32.totalorder %s150, %s164
    %p166 = scmp.eq.s32.totalorder %s25, 0
    %p167 = por %p165, %p166
    %s169 = sadd.s32 %s168, 1
    %p172 = scmp.eq.s32.totalorder %s19, 1
    %p173 = scmp.ne.s32.totalorder %s168, %s170
    %p174 = scmp.eq.s32.totalorder %s19, 0
    %p175 = por %p173, %p174
    %p176 = scmp.ne.s32.totalorder %s168, %s170
    %p177 = scmp.eq.s32.totalorder %s24, 1
    %p178 = por %p176, %p177
    %p179 = scmp.ne.s32.totalorder %s170, %s171
    %p180 = scmp.eq.s32.totalorder %s24, 0
    %p181 = por %p179, %p180
    %p182 = scmp.ne.s32.totalorder %s170, %s171
    %p183 = scmp.eq.s32.totalorder %s25, 1
    %p184 = por %p182, %p183
    %p186 = scmp.ne.s32.totalorder %s171, %s185
    %p187 = scmp.eq.s32.totalorder %s25, 0
    %p188 = por %p186, %p187
    %s190 = sadd.s32 %s189, 1
    %p193 = scmp.eq.s32.totalorder %s19, 1
    %p194 = scmp.ne.s32.totalorder %s189, %s191
    %p195 = scmp.eq.s32.totalorder %s19, 0
    %p196 = por %p194, %p195
    %p197 = scmp.ne.s32.totalorder %s189, %s191
    %p198 = scmp.eq.s32.totalorder %s24, 1
    %p199 = por %p197, %p198
    %p200 = scmp.ne.s32.totalorder %s191, %s192
    %p201 = scmp.eq.s32.totalorder %s24, 0
    %p202 = por %p200, %p201
    %p203 = scmp.ne.s32.totalorder %s191, %s192
    %p204 = scmp.eq.s32.totalorder %s25, 1
    %p205 = por %p203, %p204
    %p207 = scmp.ne.s32.totalorder %s192, %s206
    %p208 = scmp.eq.s32.totalorder %s25, 0
    %p209 = por %p207, %p208
    %s211 = sadd.s32 %s210, 1
    %p214 = scmp.eq.s32.totalorder %s19, 1
    %p215 = scmp.ne.s32.totalorder %s210, %s212
    %p216 = scmp.eq.s32.totalorder %s19, 0
    %p217 = por %p215, %p216
    %p218 = scmp.ne.s32.totalorder %s210, %s212
    %p219 = scmp.eq.s32.totalorder %s24, 1
    %p220 = por %p218, %p219
    %p221 = scmp.ne.s32.totalorder %s212, %s213
    %p222 = scmp.eq.s32.totalorder %s24, 0
    %p223 = por %p221, %p222
    %p224 = scmp.ne.s32.totalorder %s212, %s213
    %p225 = scmp.eq.s32.totalorder %s25, 1
    %p226 = por %p224, %p225
    %p228 = scmp.ne.s32.totalorder %s213, %s227
    %p229 = scmp.eq.s32.totalorder %s25, 0
    %p230 = por %p228, %p229
    %s232 = sadd.s32 %s231, 1
    %p235 = scmp.eq.s32.totalorder %s19, 1
    %p236 = scmp.ne.s32.totalorder %s231, %s233
    %p237 = scmp.eq.s32.totalorder %s19, 0
    %p238 = por %p236, %p237
    %p239 = scmp.ne.s32.totalorder %s231, %s233
    %p240 = scmp.eq.s32.totalorder %s24, 1
    %p241 = por %p239, %p240
    %p242 = scmp.ne.s32.totalorder %s233, %s234
    %p243 = scmp.eq.s32.totalorder %s24, 0
    %p244 = por %p242, %p243
    %p245 = scmp.ne.s32.totalorder %s233, %s234
    %p246 = scmp.eq.s32.totalorder %s25, 1
    %p247 = por %p245, %p246
    %p249 = scmp.ne.s32.totalorder %s234, %s248
    %p250 = scmp.eq.s32.totalorder %s25, 0
    %p251 = por %p249, %p250
    %s253 = sadd.s32 %s252, 1
    %p256 = scmp.eq.s32.totalorder %s19, 1
    %p257 = scmp.ne.s32.totalorder %s252, %s254
    %p258 = scmp.eq.s32.totalorder %s19, 0
    %p259 = por %p257, %p258
    %p260 = scmp.ne.s32.totalorder %s252, %s254
    %p261 = scmp.eq.s32.totalorder %s24, 1
    %p262 = por %p260, %p261
    %p263 = scmp.ne.s32.totalorder %s254, %s255
    %p264 = scmp.eq.s32.totalorder %s24, 0
    %p265 = por %p263, %p264
    %p266 = scmp.ne.s32.totalorder %s254, %s255
    %p267 = scmp.eq.s32.totalorder %s25, 1
    %p268 = por %p266, %p267
    %p270 = scmp.ne.s32.totalorder %s255, %s269
    %p271 = scmp.eq.s32.totalorder %s25, 0
    %p272 = por %p270, %p271
    %s273 = ssub.s32 %s19, %s26
    %p274 = scmp.eq.s32.totalorder %s273, 0
    %s276 = sadd.s32 %s275, 1
    %s277 = scalar_select %p274, %s275, %s276
    %p280 = pneg %p274
    %p281 = scmp.eq.s32.totalorder %s19, 1
    %p282 = por %p280, %p281
    %p283 = scmp.ne.s32.totalorder %s275, %s278
    %p284 = scmp.eq.s32.totalorder %s19, 0
    %p285 = por %p283, %p284
    %p286 = scmp.ne.s32.totalorder %s275, %s278
    %p287 = scmp.eq.s32.totalorder %s24, 1
    %p288 = por %p286, %p287
    %p289 = scmp.ne.s32.totalorder %s278, %s279
    %p290 = scmp.eq.s32.totalorder %s24, 0
    %p291 = por %p289, %p290
    %p292 = scmp.ne.s32.totalorder %s278, %s279
    %p293 = scmp.eq.s32.totalorder %s25, 1
    %p294 = por %p292, %p293
    %p296 = scmp.ne.s32.totalorder %s279, %s295
    %p297 = scmp.eq.s32.totalorder %s25, 0
    %p298 = por %p296, %p297
    %p299 = scmp.le.s32.totalorder 1, %s19
    %p300 = scmp.lt.s32.totalorder %s19, 3
    %p301 = pnand %p299, %p300
    %p302 = pneg %p301
    // Predicated region
    $region9: #{decoder_forward.8} parent=5 // pred_check
      _
    $region10: #{decoder_forward.8} parent=5 // pred_check_branch
      %304 = sbr.rel (%p301) target = $region12
    $region11: #{decoder_forward.8} parent=5 // pred_region
      %s305 = ssub.s32 %s19, 1
      // Predicated region
      $region13: #{decoder_forward.8} parent=11 // pred_check
        %p306 = pneg %p40
      $region14: #{decoder_forward.8} parent=11 // pred_check_branch
        %308 = sbr.rel (%p306) target = $region16
      $region15: #{decoder_forward.8} parent=11 // pred_region
        _
      $region16: #{decoder_forward.8} parent=11 // pred_fallthru
        _
      // Predicated region
      $region17: #{decoder_forward.8} parent=11 // pred_check
        %p309 = pneg %p61
      $region18: #{decoder_forward.8} parent=11 // pred_check_branch
        %311 = sbr.rel (%p309) target = $region20
      $region19: #{decoder_forward.8} parent=11 // pred_region
        _
      $region20: #{decoder_forward.8} parent=11 // pred_fallthru
        _
      // Predicated region
      $region21: #{decoder_forward.8} parent=11 // pred_check
        %p312 = pneg %p160
      $region22: #{decoder_forward.8} parent=11 // pred_check_branch
        %314 = sbr.rel (%p312) target = $region24
      $region23: #{decoder_forward.8} parent=11 // pred_region
        _
      $region24: #{decoder_forward.8} parent=11 // pred_fallthru
        _
      // Predicated region
      $region25: #{decoder_forward.8} parent=11 // pred_check
        %p315 = pneg %p181
      $region26: #{decoder_forward.8} parent=11 // pred_check_branch
        %317 = sbr.rel (%p315) target = $region28
      $region27: #{decoder_forward.8} parent=11 // pred_region
        _
      $region28: #{decoder_forward.8} parent=11 // pred_fallthru
        _
      // Predicated region
      $region29: #{decoder_forward.8} parent=11 // pred_check
        %p318 = pneg %p202
      $region30: #{decoder_forward.8} parent=11 // pred_check_branch
        %320 = sbr.rel (%p318) target = $region32
      $region31: #{decoder_forward.8} parent=11 // pred_region
        _
      $region32: #{decoder_forward.8} parent=11 // pred_fallthru
        _
      // Predicated region
      $region33: #{decoder_forward.8} parent=11 // pred_check
        %p321 = pneg %p223
      $region34: #{decoder_forward.8} parent=11 // pred_check_branch
        %323 = sbr.rel (%p321) target = $region36
      $region35: #{decoder_forward.8} parent=11 // pred_region
        _
      $region36: #{decoder_forward.8} parent=11 // pred_fallthru
        _
      // Predicated region
      $region37: #{decoder_forward.8} parent=11 // pred_check
        %p324 = pneg %p244
      $region38: #{decoder_forward.8} parent=11 // pred_check_branch
        %326 = sbr.rel (%p324) target = $region40
      $region39: #{decoder_forward.8} parent=11 // pred_region
        _
      $region40: #{decoder_forward.8} parent=11 // pred_fallthru
        _
      // Predicated region
      $region41: #{decoder_forward.8} parent=11 // pred_check
        %p327 = pneg %p265
      $region42: #{decoder_forward.8} parent=11 // pred_check_branch
        %329 = sbr.rel (%p327) target = $region44
      $region43: #{decoder_forward.8} parent=11 // pred_region
        _
      $region44: #{decoder_forward.8} parent=11 // pred_fallthru
        _
    $region12: #{decoder_forward.8} parent=5 // pred_fallthru
      _
    %p330 = scmp.lt.s32.totalorder %s19, 2
    // Predicated region
    $region45: #{decoder_forward.8} parent=5 // pred_check
      %p331 = pneg %p330
    $region46: #{decoder_forward.8} parent=5 // pred_check_branch
      %333 = sbr.rel (%p331) target = $region48
    $region47: #{decoder_forward.8} parent=5 // pred_region
      // Predicated region
      $region49: #{decoder_forward.8} parent=47 // pred_check
        %p334 = pneg %p81
      $region50: #{decoder_forward.8} parent=47 // pred_check_branch
        %336 = sbr.rel (%p334) target = $region52
      $region51: #{decoder_forward.8} parent=47 // pred_region
        %p337 = scmp.lt.s32.totalorder %s19, 1
        %s338 = scalar_select %p337, %s19, 1
        %s339 = smul.addr %s338, 8
        %s340 = scalar_lea.vmem %s2, %s339
      $region52: #{decoder_forward.8} parent=47 // pred_fallthru
        _
      // Predicated region
      $region53: #{decoder_forward.8} parent=47 // pred_check
        %p341 = pneg %p107
      $region54: #{decoder_forward.8} parent=47 // pred_check_branch
        %343 = sbr.rel (%p341) target = $region56
      $region55: #{decoder_forward.8} parent=47 // pred_region
        %p344 = scmp.lt.s32.totalorder %s19, 1
        %s345 = scalar_select %p344, %s19, 1
        %s346 = smul.addr %s345, 2
        %s347 = smul.addr %s346, 8
        %s348 = scalar_lea.vmem %s3, %s347
      $region56: #{decoder_forward.8} parent=47 // pred_fallthru
        _
      // Predicated region
      $region57: #{decoder_forward.8} parent=47 // pred_check
        %p349 = pneg %p133
      $region58: #{decoder_forward.8} parent=47 // pred_check_branch
        %351 = sbr.rel (%p349) target = $region60
      $region59: #{decoder_forward.8} parent=47 // pred_region
        %p352 = scmp.lt.s32.totalorder %s19, 1
        %s353 = scalar_select %p352, %s19, 1
        %s354 = smul.addr %s353, 8
        %s355 = scalar_lea.vmem %s4, %s354
      $region60: #{decoder_forward.8} parent=47 // pred_fallthru
        _
    $region48: #{decoder_forward.8} parent=5 // pred_fallthru
      _
    %p356 = scmp.le.s32.totalorder 1, %s19
    %p357 = scmp.lt.s32.totalorder %s19, 3
    %p358 = pnand %p356, %p357
    %p359 = pneg %p358
    // Predicated region
    $region61: #{decoder_forward.8} parent=5 // pred_check
      _
    $region62: #{decoder_forward.8} parent=5 // pred_check_branch
      %361 = sbr.rel (%p358) target = $region64
    $region63: #{decoder_forward.8} parent=5 // pred_region
      %s362 = ssub.s32 %s19, 1
      %p363 = pneg %p40
      %p364 = pneg %p37
      %p365 = pneg %p61
      %p366 = pneg %p58
      %p367 = scmp.lt.s32.totalorder %s24, 1
      %s368 = scalar_select %p367, %s24, 1
      %s369 = smul.addr %s368, 8
      %s370 = scalar_lea.vmem %s2, %s369
      %p371 = pneg %p87
      %p372 = pneg %p84
      %p373 = scmp.lt.s32.totalorder %s24, 1
      %s374 = scalar_select %p373, %s24, 1
      %s375 = smul.addr %s374, 2
      %s376 = smul.addr %s375, 8
      %s377 = scalar_lea.vmem %s3, %s376
      %p378 = pneg %p113
      %p379 = pneg %p110
      %p380 = scmp.lt.s32.totalorder %s24, 1
      %s381 = scalar_select %p380, %s24, 1
      %s382 = smul.addr %s381, 8
      %s383 = scalar_lea.vmem %s4, %s382
      %p384 = pneg %p139
      %p385 = pneg %p136
      %p386 = pneg %p160
      %p387 = pneg %p157
      %p388 = pneg %p181
      %p389 = pneg %p178
      %p390 = pneg %p202
      %p391 = pneg %p199
      %p392 = pneg %p223
      %p393 = pneg %p220
      %p394 = pneg %p244
      %p395 = pneg %p241
      %p396 = pneg %p265
      %p397 = pneg %p262
      %p398 = pneg %p291
      %p399 = pneg %p288
      %p400 = scmp.lt.s32.totalorder %s24, 1
      %s401 = scalar_select %p400, %s24, 1
      %s402 = smul.addr %s401, 8
      %s403 = scalar_lea.vmem %s11, %s402
      %p404 = scmp.lt.s32.totalorder %s24, 1
      %s405 = scalar_select %p404, %s24, 1
      %s406 = smul.addr %s405, 8
      %s407 = scalar_lea.vmem %s2, %s406
      %p408 = scmp.lt.s32.totalorder %s24, 1
      %s409 = scalar_select %p408, %s24, 1
      %s410 = smul.addr %s409, 2
      %s411 = smul.addr %s410, 8
      %s412 = scalar_lea.vmem %s3, %s411
      %p413 = scmp.lt.s32.totalorder %s24, 1
      %s414 = scalar_select %p413, %s24, 1
      %s415 = smul.addr %s414, 8
      %s416 = scalar_lea.vmem %s4, %s415
      %p417 = scmp.lt.s32.totalorder %s24, 1
      %s418 = scalar_select %p417, %s24, 1
      %s419 = smul.addr %s418, 8
      %s420 = scalar_lea.vmem %s11, %s419
      %v421 = vld [vmem:[%s407] sm:$0xff]
      %v422 = vld [vmem:[%s412] sm:$0xff]
      %v423 = vld [vmem:[%s412 + $0x8] sm:$0xf]
      %s424 = sld [smem:[#allocation2]]
      %s425 = sld [smem:[#allocation3]]
      %vm426 = vcmask 261120
      %v427 = vsel %vm426, %v421, 0.0
      %428 = vadd.xlane.f32.xlu0 %v427
      %v429 = vpop.xlane.xlu0 %428
      %v430 = vrcp.pop 32.0
      %v431 = vmul.f32 %v429, %v430
      %v432 = vsub.f32 %v421, %v431
      %v433 = vmul.f32 %v432, %v432
      %v434 = vsel %vm426, %v433, 0.0
      %435 = vadd.xlane.f32.xlu0 %v434
      %v436 = vpop.xlane.xlu0 %435
      %v437 = vrcp.pop 31.0
      %v438 = vmul.f32 %v436, %v437
      %v439 = vrsqrt.pop %v438
      %v440 = vmul.f32 %v438, %v439
      %vm441 = vcmp.eq.f32.partialorder %v438, inf
      %v442 = vsel %vm441, %v438, %v440
      %vm443 = vcmp.eq.f32.partialorder %v438, 0.0
      %v444 = vand.u32 %v438, 2147483648
      %v445 = vsel %vm443, %v444, %v442
      %v446 = vstv %s424
      %v447 = vmul.f32 %v446, %v432
      %v448 = vadd.f32 %v445, 1e-06
      %v449 = vrcp.pop %v448
      %v450 = vmul.f32 %v447, %v449
      %v451 = vstv %s425
      %v452 = vadd.f32 %v450, %v451
      %v453 = vld [vmem:[%s5] sm:$0xff]
      %v454 = vld [vmem:[%s5 + $0x8] sm:$0xff]
      %v455 = vld [vmem:[%s5 + $0x10] sm:$0xff]
      %v456 = vld [vmem:[%s5 + $0x18] sm:$0xff]
      %v457 = vld [vmem:[%s6] sm:$0x1]
      %v459 = vlaneseq
      %v460 = vshrl.u32 %v459, 7
      %v461 = vsub.s32 0, %v460
      %v462 = vrot.slane %v457, %v461
      %v465 = vsel %vm426, %v452, 0
      %467 = vmatprep.subr.mxu0 0.0
      %468 = vmatpush1.msra.mxu0 %v453
      %469 = vmatprep.subr.mxu0 0.0
      %470 = vmatpush1.msra.mxu0 %v454
      %471 = vmatprep.subr.mxu0 0.0
      %472 = vmatpush1.msra.mxu0 %v455
      %473 = vmatprep.subr.mxu0 0.0
      %474 = vmatpush1.msra.mxu0 %v456
      %475 = vmatprep.subr.mxu0 0.0
      %476 = vmatpush1.msra.mxu0 0.0
      %477 = vmatprep.subr.mxu0 0.0
      %478 = vmatpush1.msra.mxu0 0.0
      %479 = vmatprep.subr.mxu0 0.0
      %480 = vmatpush1.msra.mxu0 0.0
      %481 = vmatprep.subr.mxu0 0.0
      %482 = vmatpush1.msra.mxu0 0.0
      %483 = vmatprep.subr.mxu0 0.0
      %484 = vmatpush1.msra.mxu0 0.0
      %485 = vmatprep.subr.mxu0 0.0
      %486 = vmatpush1.msra.mxu0 0.0
      %487 = vmatprep.subr.mxu0 0.0
      %488 = vmatpush1.msra.mxu0 0.0
      %489 = vmatprep.subr.mxu0 0.0
      %490 = vmatpush1.msra.mxu0 0.0
      %491 = vmatprep.subr.mxu0 0.0
      %492 = vmatpush1.msra.mxu0 0.0
      %493 = vmatprep.subr.mxu0 0.0
      %494 = vmatpush1.msra.mxu0 0.0
      %495 = vmatprep.subr.mxu0 0.0
      %496 = vmatpush1.msra.mxu0 0.0
      %497 = vmatprep.subr.mxu0 0.0
      %498 = vmatpush1.msra.mxu0 0.0
      %499 = vmatprep.subr.mxu0 0.0
      %500 = vmatpush1.msra.mxu0 0.0
      %501 = vmatprep.subr.mxu0 0.0
      %502 = vmatpush1.msra.mxu0 0.0
      %503 = vmatprep.subr.mxu0 0.0
      %504 = vmatpush1.msra.mxu0 0.0
      %505 = vmatprep.subr.mxu0 0.0
      %506 = vmatpush1.msra.mxu0 0.0
      %507 = vmatprep.subr.mxu0 0.0
      %508 = vmatpush1.msra.mxu0 0.0
      %509 = vmatprep.subr.mxu0 0.0
      %510 = vmatpush1.msra.mxu0 0.0
      %511 = vmatprep.subr.mxu0 0.0
      %512 = vmatpush1.msra.mxu0 0.0
      %513 = vmatprep.subr.mxu0 0.0
      %514 = vmatpush1.msra.mxu0 0.0
      %515 = vmatprep.subr.mxu0 0.0
      %516 = vmatpush1.msra.mxu0 0.0
      %517 = vmatprep.subr.mxu0 0.0
      %518 = vmatpush1.msra.mxu0 0.0
      %519 = vmatprep.subr.mxu0 0.0
      %520 = vmatpush1.msra.mxu0 0.0
      %521 = vmatprep.subr.mxu0 0.0
      %522 = vmatpush1.msra.mxu0 0.0
      %523 = vmatprep.subr.mxu0 0.0
      %524 = vmatpush1.msra.mxu0 0.0
      %525 = vmatprep.subr.mxu0 0.0
      %526 = vmatpush1.msra.mxu0 0.0
      %527 = vmatprep.subr.mxu0 0.0
      %528 = vmatpush1.msra.mxu0 0.0
      %529 = vmatprep.subr.mxu0 0.0
      %530 = vmatpush1.msra.mxu0 0.0
      %531 = vmatprep.mubr.f32.mxu0 0.0
      %532 = vmatmul.mubr.f32.gmra.mrb[0].mxu0 %v465
      %v533 = vpop.f32.mrb[0].mxu0
      %v534 = vadd.f32 %v462, %v533
      %v535 = vpop.f32.mrb[0].mxu0
      %536 = vdwg.mxu0
      %v537 = vld [vmem:[%s7] sm:$0xff]
      %v538 = vld [vmem:[%s7 + $0x8] sm:$0xff]
      %v539 = vld [vmem:[%s7 + $0x10] sm:$0xff]
      %v540 = vld [vmem:[%s7 + $0x18] sm:$0xff]
      %v541 = vld [vmem:[%s8] sm:$0x1]
      %v543 = vlaneseq
      %v544 = vshrl.u32 %v543, 7
      %v545 = vsub.s32 0, %v544
      %v546 = vrot.slane %v541, %v545
      %v549 = vsel %vm426, %v422, 0
      %v552 = vsel %vm426, %v423, 0
      %554 = vmatprep.subr.mxu0 0.0
      %555 = vmatpush1.msra.mxu0 %v537
      %556 = vmatprep.subr.mxu0 0.0
      %557 = vmatpush1.msra.mxu0 %v538
      %558 = vmatprep.subr.mxu0 0.0
      %559 = vmatpush1.msra.mxu0 %v539
      %560 = vmatprep.subr.mxu0 0.0
      %561 = vmatpush1.msra.mxu0 %v540
      %562 = vmatprep.subr.mxu0 0.0
      %563 = vmatpush1.msra.mxu0 0.0
      %564 = vmatprep.subr.mxu0 0.0
      %565 = vmatpush1.msra.mxu0 0.0
      %566 = vmatprep.subr.mxu0 0.0
      %567 = vmatpush1.msra.mxu0 0.0
      %568 = vmatprep.subr.mxu0 0.0
      %569 = vmatpush1.msra.mxu0 0.0
      %570 = vmatprep.subr.mxu0 0.0
      %571 = vmatpush1.msra.mxu0 0.0
      %572 = vmatprep.subr.mxu0 0.0
      %573 = vmatpush1.msra.mxu0 0.0
      %574 = vmatprep.subr.mxu0 0.0
      %575 = vmatpush1.msra.mxu0 0.0
      %576 = vmatprep.subr.mxu0 0.0
      %577 = vmatpush1.msra.mxu0 0.0
      %578 = vmatprep.subr.mxu0 0.0
      %579 = vmatpush1.msra.mxu0 0.0
      %580 = vmatprep.subr.mxu0 0.0
      %581 = vmatpush1.msra.mxu0 0.0
      %582 = vmatprep.subr.mxu0 0.0
      %583 = vmatpush1.msra.mxu0 0.0
      %584 = vmatprep.subr.mxu0 0.0
      %585 = vmatpush1.msra.mxu0 0.0
      %586 = vmatprep.subr.mxu0 0.0
      %587 = vmatpush1.msra.mxu0 0.0
      %588 = vmatprep.subr.mxu0 0.0
      %589 = vmatpush1.msra.mxu0 0.0
      %590 = vmatprep.subr.mxu0 0.0
      %591 = vmatpush1.msra.mxu0 0.0
      %592 = vmatprep.subr.mxu0 0.0
      %593 = vmatpush1.msra.mxu0 0.0
      %594 = vmatprep.subr.mxu0 0.0
      %595 = vmatpush1.msra.mxu0 0.0
      %596 = vmatprep.subr.mxu0 0.0
      %597 = vmatpush1.msra.mxu0 0.0
      %598 = vmatprep.subr.mxu0 0.0
      %599 = vmatpush1.msra.mxu0 0.0
      %600 = vmatprep.subr.mxu0 0.0
      %601 = vmatpush1.msra.mxu0 0.0
      %602 = vmatprep.subr.mxu0 0.0
      %603 = vmatpush1.msra.mxu0 0.0
      %604 = vmatprep.subr.mxu0 0.0
      %605 = vmatpush1.msra.mxu0 0.0
      %606 = vmatprep.subr.mxu0 0.0
      %607 = vmatpush1.msra.mxu0 0.0
      %608 = vmatprep.subr.mxu0 0.0
      %609 = vmatpush1.msra.mxu0 0.0
      %610 = vmatprep.subr.mxu0 0.0
      %611 = vmatpush1.msra.mxu0 0.0
      %612 = vmatprep.subr.mxu0 0.0
      %613 = vmatpush1.msra.mxu0 0.0
      %614 = vmatprep.subr.mxu0 0.0
      %615 = vmatpush1.msra.mxu0 0.0
      %616 = vmatprep.subr.mxu0 0.0
      %617 = vmatpush1.msra.mxu0 0.0
      %618 = vmatprep.mubr.f32.mxu0 0.0
      %619 = vmatmul.mubr.f32.gmra.mrb[0].mxu0 %v549
      %v620 = vpop.f32.mrb[0].mxu0
      %v621 = vadd.f32 %v546, %v620
      %v622 = vpop.f32.mrb[0].mxu0
      %623 = vmatprep.mubr.f32.mxu0 0.0
      %624 = vmatmul.mubr.f32.gmra.mrb[0].mxu0 %v552
      %v625 = vpop.f32.mrb[0].mxu0
      %v626 = vadd.f32 %v546, %v625
      %v627 = vpop.f32.mrb[0].mxu0
      %628 = vdwg.mxu0
      %v629 = vld [vmem:[%s416] sm:$0xff]
      %vm630 = vcmp.gt.f32.partialorder %v629, 0.0
      %vm631 = vcmask 64512
      %v633 = vsel %vm631, %v534, 0
      %v636 = vsel %vm631, %v621, 0
      %v639 = vsel %vm631, %v626, 0
      %641 = vmatprep.subr.mxu0 0.0
      %642 = vmatpush1.xpose.msra.mxu0 %v636
      %643 = vmatprep.subr.mxu0 0.0
      %644 = vmatpush1.xpose.msra.mxu0 %v639
      %645 = vmatprep.subr.mxu0 0.0
      %646 = vmatpush1.xpose.msra.mxu0 0.0
      %647 = vmatprep.subr.mxu0 0.0
      %648 = vmatpush1.xpose.msra.mxu0 0.0
      %649 = vmatprep.subr.mxu0 0.0
      %650 = vmatpush1.xpose.msra.mxu0 0.0
      %651 = vmatprep.subr.mxu0 0.0
      %652 = vmatpush1.xpose.msra.mxu0 0.0
      %653 = vmatprep.subr.mxu0 0.0
      %654 = vmatpush1.xpose.msra.mxu0 0.0
      %655 = vmatprep.subr.mxu0 0.0
      %656 = vmatpush1.xpose.msra.mxu0 0.0
      %657 = vmatprep.subr.mxu0 0.0
      %658 = vmatpush1.xpose.msra.mxu0 0.0
      %659 = vmatprep.subr.mxu0 0.0
      %660 = vmatpush1.xpose.msra.mxu0 0.0
      %661 = vmatprep.subr.mxu0 0.0
      %662 = vmatpush1.xpose.msra.mxu0 0.0
      %663 = vmatprep.subr.mxu0 0.0
      %664 = vmatpush1.xpose.msra.mxu0 0.0
      %665 = vmatprep.subr.mxu0 0.0
      %666 = vmatpush1.xpose.msra.mxu0 0.0
      %667 = vmatprep.subr.mxu0 0.0
      %668 = vmatpush1.xpose.msra.mxu0 0.0
      %669 = vmatprep.subr.mxu0 0.0
      %670 = vmatpush1.xpose.msra.mxu0 0.0
      %671 = vmatprep.subr.mxu0 0.0
      %672 = vmatpush1.xpose.msra.mxu0 0.0
      %673 = vmatprep.subr.mxu0 0.0
      %674 = vmatpush1.xpose.msra.mxu0 0.0
      %675 = vmatprep.subr.mxu0 0.0
      %676 = vmatpush1.xpose.msra.mxu0 0.0
      %677 = vmatprep.subr.mxu0 0.0
      %678 = vmatpush1.xpose.msra.mxu0 0.0
      %679 = vmatprep.subr.mxu0 0.0
      %680 = vmatpush1.xpose.msra.mxu0 0.0
      %681 = vmatprep.subr.mxu0 0.0
      %682 = vmatpush1.xpose.msra.mxu0 0.0
      %683 = vmatprep.subr.mxu0 0.0
      %684 = vmatpush1.xpose.msra.mxu0 0.0
      %685 = vmatprep.subr.mxu0 0.0
      %686 = vmatpush1.xpose.msra.mxu0 0.0
      %687 = vmatprep.subr.mxu0 0.0
      %688 = vmatpush1.xpose.msra.mxu0 0.0
      %689 = vmatprep.subr.mxu0 0.0
      %690 = vmatpush1.xpose.msra.mxu0 0.0
      %691 = vmatprep.subr.mxu0 0.0
      %692 = vmatpush1.xpose.msra.mxu0 0.0
      %693 = vmatprep.subr.mxu0 0.0
      %694 = vmatpush1.xpose.msra.mxu0 0.0
      %695 = vmatprep.subr.mxu0 0.0
      %696 = vmatpush1.xpose.msra.mxu0 0.0
      %697 = vmatprep.subr.mxu0 0.0
      %698 = vmatpush1.xpose.msra.mxu0 0.0
      %699 = vmatprep.subr.mxu0 0.0
      %700 = vmatpush1.xpose.msra.mxu0 0.0
      %701 = vmatprep.subr.mxu0 0.0
      %702 = vmatpush1.xpose.msra.mxu0 0.0
      %703 = vmatprep.subr.mxu0 0.0
      %704 = vmatpush1.xpose.msra.mxu0 0.0
      %705 = vmatprep.mubr.f32.mxu0 0.0
      %706 = vmatmul.mubr.f32.gmra.mrb[0].mxu0 %v633
      %v707 = vpop.f32.mrb[0].mxu0
      %v708 = vadd.f32 0.0, %v707
      %v709 = vpop.f32.mrb[0].mxu0
      %710 = vdwg.mxu0
      %v711 = vmul.f32 %v708, 0.35355338
      %v712 = vsel %vm630, %v711, -1e+09
      %vm713 = vcmask 97280
      %v714 = vsel %vm713, %v712, -inf
      %715 = vmax.xlane.f32.xlu0 %v714
      %v716 = vpop.xlane.xlu0 %715
      %v717 = vsub.f32 %v712, %v716
      %v718 = vmul.f32 %v717, 1.442695
      %v719 = vpow.pop %v718
      %v720 = vsel %vm713, %v719, 0.0
      %721 = vadd.xlane.f32.xlu0 %v720
      %v722 = vpop.xlane.xlu0 %721
      %v723 = vrcp.pop %v722
      %v724 = vmul.f32 %v719, %v723
      %725 = vrot.lane.b32.xlu0 %v621, 96
      %v726 = vpop.permute.xlu0 %725
      %727 = vrot.lane.b32.xlu0 %v626, 96
      %v728 = vpop.permute.xlu0 %727
      %v731 = vsel %vm713, %v724, 0
      %vm733 = vcmask 1043456
      %v734 = vsel %vm733, %v728, 0
      %736 = vmatprep.subr.mxu0 0.0
      %737 = vmatpush1.msra.mxu0 %v726
      %738 = vmatprep.subr.mxu0 0.0
      %739 = vmatpush1.msra.mxu0 %v734
      %740 = vmatprep.subr.mxu0 0.0
      %741 = vmatpush1.msra.mxu0 0.0
      %742 = vmatprep.subr.mxu0 0.0
      %743 = vmatpush1.msra.mxu0 0.0
      %744 = vmatprep.subr.mxu0 0.0
      %745 = vmatpush1.msra.mxu0 0.0
      %746 = vmatprep.subr.mxu0 0.0
      %747 = vmatpush1.msra.mxu0 0.0
      %748 = vmatprep.subr.mxu0 0.0
      %749 = vmatpush1.msra.mxu0 0.0
      %750 = vmatprep.subr.mxu0 0.0
      %751 = vmatpush1.msra.mxu0 0.0
      %752 = vmatprep.subr.mxu0 0.0
      %753 = vmatpush1.msra.mxu0 0.0
      %754 = vmatprep.subr.mxu0 0.0
      %755 = vmatpush1.msra.mxu0 0.0
      %756 = vmatprep.subr.mxu0 0.0
      %757 = vmatpush1.msra.mxu0 0.0
      %758 = vmatprep.subr.mxu0 0.0
      %759 = vmatpush1.msra.mxu0 0.0
      %760 = vmatprep.subr.mxu0 0.0
      %761 = vmatpush1.msra.mxu0 0.0
      %762 = vmatprep.subr.mxu0 0.0
      %763 = vmatpush1.msra.mxu0 0.0
      %764 = vmatprep.subr.mxu0 0.0
      %765 = vmatpush1.msra.mxu0 0.0
      %766 = vmatprep.subr.mxu0 0.0
      %767 = vmatpush1.msra.mxu0 0.0
      %768 = vmatprep.subr.mxu0 0.0
      %769 = vmatpush1.msra.mxu0 0.0
      %770 = vmatprep.subr.mxu0 0.0
      %771 = vmatpush1.msra.mxu0 0.0
      %772 = vmatprep.subr.mxu0 0.0
      %773 = vmatpush1.msra.mxu0 0.0
      %774 = vmatprep.subr.mxu0 0.0
      %775 = vmatpush1.msra.mxu0 0.0
      %776 = vmatprep.subr.mxu0 0.0
      %777 = vmatpush1.msra.mxu0 0.0
      %778 = vmatprep.subr.mxu0 0.0
      %779 = vmatpush1.msra.mxu0 0.0
      %780 = vmatprep.subr.mxu0 0.0
      %781 = vmatpush1.msra.mxu0 0.0
      %782 = vmatprep.subr.mxu0 0.0
      %783 = vmatpush1.msra.mxu0 0.0
      %784 = vmatprep.subr.mxu0 0.0
      %785 = vmatpush1.msra.mxu0 0.0
      %786 = vmatprep.subr.mxu0 0.0
      %787 = vmatpush1.msra.mxu0 0.0
      %788 = vmatprep.subr.mxu0 0.0
      %789 = vmatpush1.msra.mxu0 0.0
      %790 = vmatprep.subr.mxu0 0.0
      %791 = vmatpush1.msra.mxu0 0.0
      %792 = vmatprep.subr.mxu0 0.0
      %793 = vmatpush1.msra.mxu0 0.0
      %794 = vmatprep.subr.mxu0 0.0
      %795 = vmatpush1.msra.mxu0 0.0
      %796 = vmatprep.subr.mxu0 0.0
      %797 = vmatpush1.msra.mxu0 0.0
      %798 = vmatprep.subr.mxu0 0.0
      %799 = vmatpush1.msra.mxu0 0.0
      %800 = vmatprep.mubr.f32.mxu0 0.0
      %801 = vmatmul.mubr.f32.gmra.mrb[0].mxu0 %v731
      %v802 = vpop.f32.mrb[0].mxu0
      %v803 = vadd.f32 0.0, %v802
      %v804 = vpop.f32.mrb[0].mxu0
      %805 = vdwg.mxu0
      %806 = vrot.lane.b32.xlu0 %v534, 120
      %v807 = vpop.permute.xlu0 %806
      %808 = vrot.lane.b32.xlu0 %v621, 120
      %v809 = vpop.permute.xlu0 %808
      %810 = vrot.lane.b32.xlu0 %v626, 120
      %v811 = vpop.permute.xlu0 %810
      %v812 = vsel %vm631, %v807, 0
      %v814 = vsel %vm631, %v809, 0
      %v816 = vsel %vm631, %v811, 0
      %818 = vmatprep.subr.mxu0 0.0
      %819 = vmatpush1.xpose.msra.mxu0 %v814
      %820 = vmatprep.subr.mxu0 0.0
      %821 = vmatpush1.xpose.msra.mxu0 %v816
      %822 = vmatprep.subr.mxu0 0.0
      %823 = vmatpush1.xpose.msra.mxu0 0.0
      %824 = vmatprep.subr.mxu0 0.0
      %825 = vmatpush1.xpose.msra.mxu0 0.0
      %826 = vmatprep.subr.mxu0 0.0
      %827 = vmatpush1.xpose.msra.mxu0 0.0
      %828 = vmatprep.subr.mxu0 0.0
      %829 = vmatpush1.xpose.msra.mxu0 0.0
      %830 = vmatprep.subr.mxu0 0.0
      %831 = vmatpush1.xpose.msra.mxu0 0.0
      %832 = vmatprep.subr.mxu0 0.0
      %833 = vmatpush1.xpose.msra.mxu0 0.0
      %834 = vmatprep.subr.mxu0 0.0
      %835 = vmatpush1.xpose.msra.mxu0 0.0
      %836 = vmatprep.subr.mxu0 0.0
      %837 = vmatpush1.xpose.msra.mxu0 0.0
      %838 = vmatprep.subr.mxu0 0.0
      %839 = vmatpush1.xpose.msra.mxu0 0.0
      %840 = vmatprep.subr.mxu0 0.0
      %841 = vmatpush1.xpose.msra.mxu0 0.0
      %842 = vmatprep.subr.mxu0 0.0
      %843 = vmatpush1.xpose.msra.mxu0 0.0
      %844 = vmatprep.subr.mxu0 0.0
      %845 = vmatpush1.xpose.msra.mxu0 0.0
      %846 = vmatprep.subr.mxu0 0.0
      %847 = vmatpush1.xpose.msra.mxu0 0.0
      %848 = vmatprep.subr.mxu0 0.0
      %849 = vmatpush1.xpose.msra.mxu0 0.0
      %850 = vmatprep.subr.mxu0 0.0
      %851 = vmatpush1.xpose.msra.mxu0 0.0
      %852 = vmatprep.subr.mxu0 0.0
      %853 = vmatpush1.xpose.msra.mxu0 0.0
      %854 = vmatprep.subr.mxu0 0.0
      %855 = vmatpush1.xpose.msra.mxu0 0.0
      %856 = vmatprep.subr.mxu0 0.0
      %857 = vmatpush1.xpose.msra.mxu0 0.0
      %858 = vmatprep.subr.mxu0 0.0
      %859 = vmatpush1.xpose.msra.mxu0 0.0
      %860 = vmatprep.subr.mxu0 0.0
      %861 = vmatpush1.xpose.msra.mxu0 0.0
      %862 = vmatprep.subr.mxu0 0.0
      %863 = vmatpush1.xpose.msra.mxu0 0.0
      %864 = vmatprep.subr.mxu0 0.0
      %865 = vmatpush1.xpose.msra.mxu0 0.0
      %866 = vmatprep.subr.mxu0 0.0
      %867 = vmatpush1.xpose.msra.mxu0 0.0
      %868 = vmatprep.subr.mxu0 0.0
      %869 = vmatpush1.xpose.msra.mxu0 0.0
      %870 = vmatprep.subr.mxu0 0.0
      %871 = vmatpush1.xpose.msra.mxu0 0.0
      %872 = vmatprep.subr.mxu0 0.0
      %873 = vmatpush1.xpose.msra.mxu0 0.0
      %874 = vmatprep.subr.mxu0 0.0
      %875 = vmatpush1.xpose.msra.mxu0 0.0
      %876 = vmatprep.subr.mxu0 0.0
      %877 = vmatpush1.xpose.msra.mxu0 0.0
      %878 = vmatprep.subr.mxu0 0.0
      %879 = vmatpush1.xpose.msra.mxu0 0.0
      %880 = vmatprep.subr.mxu0 0.0
      %881 = vmatpush1.xpose.msra.mxu0 0.0
      %882 = vmatprep.mubr.f32.mxu0 0.0
      %883 = vmatmul.mubr.f32.gmra.mrb[0].mxu0 %v812
      %v884 = vpop.f32.mrb[0].mxu0
      %v885 = vadd.f32 0.0, %v884
      %v886 = vpop.f32.mrb[0].mxu0
      %887 = vdwg.mxu0
      %v888 = vmul.f32 %v885, 0.35355338
      %v889 = vsel %vm630, %v888, -1e+09
      %v890 = vsel %vm713, %v889, -inf
      %891 = vmax.xlane.f32.xlu0 %v890
      %v892 = vpop.xlane.xlu0 %891
      %v893 = vsub.f32 %v889, %v892
      %v894 = vmul.f32 %v893, 1.442695
      %v895 = vpow.pop %v894
      %v896 = vsel %vm713, %v895, 0.0
      %897 = vadd.xlane.f32.xlu0 %v896
      %v898 = vpop.xlane.xlu0 %897
      %v899 = vrcp.pop %v898
      %v900 = vmul.f32 %v895, %v899
      %901 = vrot.lane.b32.xlu0 %v621, 88
      %v902 = vpop.permute.xlu0 %901
      %903 = vrot.lane.b32.xlu0 %v626, 88
      %v904 = vpop.permute.xlu0 %903
      %v907 = vsel %vm713, %v900, 0
      %v909 = vsel %vm733, %v904, 0
      %911 = vmatprep.subr.mxu0 0.0
      %912 = vmatpush1.msra.mxu0 %v902
      %913 = vmatprep.subr.mxu0 0.0
      %914 = vmatpush1.msra.mxu0 %v909
      %915 = vmatprep.subr.mxu0 0.0
      %916 = vmatpush1.msra.mxu0 0.0
      %917 = vmatprep.subr.mxu0 0.0
      %918 = vmatpush1.msra.mxu0 0.0
      %919 = vmatprep.subr.mxu0 0.0
      %920 = vmatpush1.msra.mxu0 0.0
      %921 = vmatprep.subr.mxu0 0.0
      %922 = vmatpush1.msra.mxu0 0.0
      %923 = vmatprep.subr.mxu0 0.0
      %924 = vmatpush1.msra.mxu0 0.0
      %925 = vmatprep.subr.mxu0 0.0
      %926 = vmatpush1.msra.mxu0 0.0
      %927 = vmatprep.subr.mxu0 0.0
      %928 = vmatpush1.msra.mxu0 0.0
      %929 = vmatprep.subr.mxu0 0.0
      %930 = vmatpush1.msra.mxu0 0.0
      %931 = vmatprep.subr.mxu0 0.0
      %932 = vmatpush1.msra.mxu0 0.0
      %933 = vmatprep.subr.mxu0 0.0
      %934 = vmatpush1.msra.mxu0 0.0
      %935 = vmatprep.subr.mxu0 0.0
      %936 = vmatpush1.msra.mxu0 0.0
      %937 = vmatprep.subr.mxu0 0.0
      %938 = vmatpush1.msra.mxu0 0.0
      %939 = vmatprep.subr.mxu0 0.0
      %940 = vmatpush1.msra.mxu0 0.0
      %941 = vmatprep.subr.mxu0 0.0
      %942 = vmatpush1.msra.mxu0 0.0
      %943 = vmatprep.subr.mxu0 0.0
      %944 = vmatpush1.msra.mxu0 0.0
      %945 = vmatprep.subr.mxu0 0.0
      %946 = vmatpush1.msra.mxu0 0.0
      %947 = vmatprep.subr.mxu0 0.0
      %948 = vmatpush1.msra.mxu0 0.0
      %949 = vmatprep.subr.mxu0 0.0
      %950 = vmatpush1.msra.mxu0 0.0
      %951 = vmatprep.subr.mxu0 0.0
      %952 = vmatpush1.msra.mxu0 0.0
      %953 = vmatprep.subr.mxu0 0.0
      %954 = vmatpush1.msra.mxu0 0.0
      %955 = vmatprep.subr.mxu0 0.0
      %956 = vmatpush1.msra.mxu0 0.0
      %957 = vmatprep.subr.mxu0 0.0
      %958 = vmatpush1.msra.mxu0 0.0
      %959 = vmatprep.subr.mxu0 0.0
      %960 = vmatpush1.msra.mxu0 0.0
      %961 = vmatprep.subr.mxu0 0.0
      %962 = vmatpush1.msra.mxu0 0.0
      %963 = vmatprep.subr.mxu0 0.0
      %964 = vmatpush1.msra.mxu0 0.0
      %965 = vmatprep.subr.mxu0 0.0
      %966 = vmatpush1.msra.mxu0 0.0
      %967 = vmatprep.subr.mxu0 0.0
      %968 = vmatpush1.msra.mxu0 0.0
      %969 = vmatprep.subr.mxu0 0.0
      %970 = vmatpush1.msra.mxu0 0.0
      %971 = vmatprep.subr.mxu0 0.0
      %972 = vmatpush1.msra.mxu0 0.0
      %973 = vmatprep.subr.mxu0 0.0
      %974 = vmatpush1.msra.mxu0 0.0
      %975 = vmatprep.mubr.f32.mxu0 0.0
      %976 = vmatmul.mubr.f32.gmra.mrb[0].mxu0 %v907
      %v977 = vpop.f32.mrb[0].mxu0
      %v978 = vadd.f32 0.0, %v977
      %v979 = vpop.f32.mrb[0].mxu0
      %980 = vdwg.mxu0
      %981 = vrot.lane.b32.xlu0 %v534, 112
      %v982 = vpop.permute.xlu0 %981
      %983 = vrot.lane.b32.xlu0 %v621, 112
      %v984 = vpop.permute.xlu0 %983
      %985 = vrot.lane.b32.xlu0 %v626, 112
      %v986 = vpop.permute.xlu0 %985
      %v987 = vsel %vm631, %v982, 0
      %v989 = vsel %vm631, %v984, 0
      %v991 = vsel %vm631, %v986, 0
      %993 = vmatprep.subr.mxu0 0.0
      %994 = vmatpush1.xpose.msra.mxu0 %v989
      %995 = vmatprep.subr.mxu0 0.0
      %996 = vmatpush1.xpose.msra.mxu0 %v991
      %997 = vmatprep.subr.mxu0 0.0
      %998 = vmatpush1.xpose.msra.mxu0 0.0
      %999 = vmatprep.subr.mxu0 0.0
      %1000 = vmatpush1.xpose.msra.mxu0 0.0
      %1001 = vmatprep.subr.mxu0 0.0
      %1002 = vmatpush1.xpose.msra.mxu0 0.0
      %1003 = vmatprep.subr.mxu0 0.0
      %1004 = vmatpush1.xpose.msra.mxu0 0.0
      %1005 = vmatprep.subr.mxu0 0.0
      %1006 = vmatpush1.xpose.msra.mxu0 0.0
      %1007 = vmatprep.subr.mxu0 0.0
      %1008 = vmatpush1.xpose.msra.mxu0 0.0
      %1009 = vmatprep.subr.mxu0 0.0
      %1010 = vmatpush1.xpose.msra.mxu0 0.0
      %1011 = vmatprep.subr.mxu0 0.0
      %1012 = vmatpush1.xpose.msra.mxu0 0.0
      %1013 = vmatprep.subr.mxu0 0.0
      %1014 = vmatpush1.xpose.msra.mxu0 0.0
      %1015 = vmatprep.subr.mxu0 0.0
      %1016 = vmatpush1.xpose.msra.mxu0 0.0
      %1017 = vmatprep.subr.mxu0 0.0
      %1018 = vmatpush1.xpose.msra.mxu0 0.0
      %1019 = vmatprep.subr.mxu0 0.0
      %1020 = vmatpush1.xpose.msra.mxu0 0.0
      %1021 = vmatprep.subr.mxu0 0.0
      %1022 = vmatpush1.xpose.msra.mxu0 0.0
      %1023 = vmatprep.subr.mxu0 0.0
      %1024 = vmatpush1.xpose.msra.mxu0 0.0
      %1025 = vmatprep.subr.mxu0 0.0
      %1026 = vmatpush1.xpose.msra.mxu0 0.0
      %1027 = vmatprep.subr.mxu0 0.0
      %1028 = vmatpush1.xpose.msra.mxu0 0.0
      %1029 = vmatprep.subr.mxu0 0.0
      %1030 = vmatpush1.xpose.msra.mxu0 0.0
      %1031 = vmatprep.subr.mxu0 0.0
      %1032 = vmatpush1.xpose.msra.mxu0 0.0
      %1033 = vmatprep.subr.mxu0 0.0
      %1034 = vmatpush1.xpose.msra.mxu0 0.0
      %1035 = vmatprep.subr.mxu0 0.0
      %1036 = vmatpush1.xpose.msra.mxu0 0.0
      %1037 = vmatprep.subr.mxu0 0.0
      %1038 = vmatpush1.xpose.msra.mxu0 0.0
      %1039 = vmatprep.subr.mxu0 0.0
      %1040 = vmatpush1.xpose.msra.mxu0 0.0
      %1041 = vmatprep.subr.mxu0 0.0
      %1042 = vmatpush1.xpose.msra.mxu0 0.0
      %1043 = vmatprep.subr.mxu0 0.0
      %1044 = vmatpush1.xpose.msra.mxu0 0.0
      %1045 = vmatprep.subr.mxu0 0.0
      %1046 = vmatpush1.xpose.msra.mxu0 0.0
      %1047 = vmatprep.subr.mxu0 0.0
      %1048 = vmatpush1.xpose.msra.mxu0 0.0
      %1049 = vmatprep.subr.mxu0 0.0
      %1050 = vmatpush1.xpose.msra.mxu0 0.0
      %1051 = vmatprep.subr.mxu0 0.0
      %1052 = vmatpush1.xpose.msra.mxu0 0.0
      %1053 = vmatprep.subr.mxu0 0.0
      %1054 = vmatpush1.xpose.msra.mxu0 0.0
      %1055 = vmatprep.subr.mxu0 0.0
      %1056 = vmatpush1.xpose.msra.mxu0 0.0
      %1057 = vmatprep.mubr.f32.mxu0 0.0
      %1058 = vmatmul.mubr.f32.gmra.mrb[0].mxu0 %v987
      %v1059 = vpop.f32.mrb[0].mxu0
      %v1060 = vadd.f32 0.0, %v1059
      %v1061 = vpop.f32.mrb[0].mxu0
      %1062 = vdwg.mxu0
      %v1063 = vmul.f32 %v1060, 0.35355338
      %v1064 = vsel %vm630, %v1063, -1e+09
      %v1065 = vsel %vm713, %v1064, -inf
      %1066 = vmax.xlane.f32.xlu0 %v1065
      %v1067 = vpop.xlane.xlu0 %1066
      %v1068 = vsub.f32 %v1064, %v1067
      %v1069 = vmul.f32 %v1068, 1.442695
      %v1070 = vpow.pop %v1069
      %v1071 = vsel %vm713, %v1070, 0.0
      %1072 = vadd.xlane.f32.xlu0 %v1071
      %v1073 = vpop.xlane.xlu0 %1072
      %v1074 = vrcp.pop %v1073
      %v1075 = vmul.f32 %v1070, %v1074
      %1076 = vrot.lane.b32.xlu0 %v621, 80
      %v1077 = vpop.permute.xlu0 %1076
      %1078 = vrot.lane.b32.xlu0 %v626, 80
      %v1079 = vpop.permute.xlu0 %1078
      %v1082 = vsel %vm713, %v1075, 0
      %v1084 = vsel %vm733, %v1079, 0
      %1086 = vmatprep.subr.mxu0 0.0
      %1087 = vmatpush1.msra.mxu0 %v1077
      %1088 = vmatprep.subr.mxu0 0.0
      %1089 = vmatpush1.msra.mxu0 %v1084
      %1090 = vmatprep.subr.mxu0 0.0
      %1091 = vmatpush1.msra.mxu0 0.0
      %1092 = vmatprep.subr.mxu0 0.0
      %1093 = vmatpush1.msra.mxu0 0.0
      %1094 = vmatprep.subr.mxu0 0.0
      %1095 = vmatpush1.msra.mxu0 0.0
      %1096 = vmatprep.subr.mxu0 0.0
      %1097 = vmatpush1.msra.mxu0 0.0
      %1098 = vmatprep.subr.mxu0 0.0
      %1099 = vmatpush1.msra.mxu0 0.0
      %1100 = vmatprep.subr.mxu0 0.0
      %1101 = vmatpush1.msra.mxu0 0.0
      %1102 = vmatprep.subr.mxu0 0.0
      %1103 = vmatpush1.msra.mxu0 0.0
      %1104 = vmatprep.subr.mxu0 0.0
      %1105 = vmatpush1.msra.mxu0 0.0
      %1106 = vmatprep.subr.mxu0 0.0
      %1107 = vmatpush1.msra.mxu0 0.0
      %1108 = vmatprep.subr.mxu0 0.0
      %1109 = vmatpush1.msra.mxu0 0.0
      %1110 = vmatprep.subr.mxu0 0.0
      %1111 = vmatpush1.msra.mxu0 0.0
      %1112 = vmatprep.subr.mxu0 0.0
      %1113 = vmatpush1.msra.mxu0 0.0
      %1114 = vmatprep.subr.mxu0 0.0
      %1115 = vmatpush1.msra.mxu0 0.0
      %1116 = vmatprep.subr.mxu0 0.0
      %1117 = vmatpush1.msra.mxu0 0.0
      %1118 = vmatprep.subr.mxu0 0.0
      %1119 = vmatpush1.msra.mxu0 0.0
      %1120 = vmatprep.subr.mxu0 0.0
      %1121 = vmatpush1.msra.mxu0 0.0
      %1122 = vmatprep.subr.mxu0 0.0
      %1123 = vmatpush1.msra.mxu0 0.0
      %1124 = vmatprep.subr.mxu0 0.0
      %1125 = vmatpush1.msra.mxu0 0.0
      %1126 = vmatprep.subr.mxu0 0.0
      %1127 = vmatpush1.msra.mxu0 0.0
      %1128 = vmatprep.subr.mxu0 0.0
      %1129 = vmatpush1.msra.mxu0 0.0
      %1130 = vmatprep.subr.mxu0 0.0
      %1131 = vmatpush1.msra.mxu0 0.0
      %1132 = vmatprep.subr.mxu0 0.0
      %1133 = vmatpush1.msra.mxu0 0.0
      %1134 = vmatprep.subr.mxu0 0.0
      %1135 = vmatpush1.msra.mxu0 0.0
      %1136 = vmatprep.subr.mxu0 0.0
      %1137 = vmatpush1.msra.mxu0 0.0
      %1138 = vmatprep.subr.mxu0 0.0
      %1139 = vmatpush1.msra.mxu0 0.0
      %1140 = vmatprep.subr.mxu0 0.0
      %1141 = vmatpush1.msra.mxu0 0.0
      %1142 = vmatprep.subr.mxu0 0.0
      %1143 = vmatpush1.msra.mxu0 0.0
      %1144 = vmatprep.subr.mxu0 0.0
      %1145 = vmatpush1.msra.mxu0 0.0
      %1146 = vmatprep.subr.mxu0 0.0
      %1147 = vmatpush1.msra.mxu0 0.0
      %1148 = vmatprep.subr.mxu0 0.0
      %1149 = vmatpush1.msra.mxu0 0.0
      %1150 = vmatprep.mubr.f32.mxu0 0.0
      %1151 = vmatmul.mubr.f32.gmra.mrb[0].mxu0 %v1082
      %v1152 = vpop.f32.mrb[0].mxu0
      %v1153 = vadd.f32 0.0, %v1152
      %v1154 = vpop.f32.mrb[0].mxu0
      %1155 = vdwg.mxu0
      %1156 = vrot.lane.b32.xlu0 %v534, 104
      %v1157 = vpop.permute.xlu0 %1156
      %1158 = vrot.lane.b32.xlu0 %v621, 104
      %v1159 = vpop.permute.xlu0 %1158
      %1160 = vrot.lane.b32.xlu0 %v626, 104
      %v1161 = vpop.permute.xlu0 %1160
      %v1162 = vsel %vm631, %v1157, 0
      %v1164 = vsel %vm631, %v1159, 0
      %v1166 = vsel %vm631, %v1161, 0
      %1168 = vmatprep.subr.mxu0 0.0
      %1169 = vmatpush1.xpose.msra.mxu0 %v1164
      %1170 = vmatprep.subr.mxu0 0.0
      %1171 = vmatpush1.xpose.msra.mxu0 %v1166
      %1172 = vmatprep.subr.mxu0 0.0
      %1173 = vmatpush1.xpose.msra.mxu0 0.0
      %1174 = vmatprep.subr.mxu0 0.0
      %1175 = vmatpush1.xpose.msra.mxu0 0.0
      %1176 = vmatprep.subr.mxu0 0.0
      %1177 = vmatpush1.xpose.msra.mxu0 0.0
      %1178 = vmatprep.subr.mxu0 0.0
      %1179 = vmatpush1.xpose.msra.mxu0 0.0
      %1180 = vmatprep.subr.mxu0 0.0
      %1181 = vmatpush1.xpose.msra.mxu0 0.0
      %1182 = vmatprep.subr.mxu0 0.0
      %1183 = vmatpush1.xpose.msra.mxu0 0.0
      %1184 = vmatprep.subr.mxu0 0.0
      %1185 = vmatpush1.xpose.msra.mxu0 0.0
      %1186 = vmatprep.subr.mxu0 0.0
      %1187 = vmatpush1.xpose.msra.mxu0 0.0
      %1188 = vmatprep.subr.mxu0 0.0
      %1189 = vmatpush1.xpose.msra.mxu0 0.0
      %1190 = vmatprep.subr.mxu0 0.0
      %1191 = vmatpush1.xpose.msra.mxu0 0.0
      %1192 = vmatprep.subr.mxu0 0.0
      %1193 = vmatpush1.xpose.msra.mxu0 0.0
      %1194 = vmatprep.subr.mxu0 0.0
      %1195 = vmatpush1.xpose.msra.mxu0 0.0
      %1196 = vmatprep.subr.mxu0 0.0
      %1197 = vmatpush1.xpose.msra.mxu0 0.0
      %1198 = vmatprep.subr.mxu0 0.0
      %1199 = vmatpush1.xpose.msra.mxu0 0.0
      %1200 = vmatprep.subr.mxu0 0.0
      %1201 = vmatpush1.xpose.msra.mxu0 0.0
      %1202 = vmatprep.subr.mxu0 0.0
      %1203 = vmatpush1.xpose.msra.mxu0 0.0
      %1204 = vmatprep.subr.mxu0 0.0
      %1205 = vmatpush1.xpose.msra.mxu0 0.0
      %1206 = vmatprep.subr.mxu0 0.0
      %1207 = vmatpush1.xpose.msra.mxu0 0.0
      %1208 = vmatprep.subr.mxu0 0.0
      %1209 = vmatpush1.xpose.msra.mxu0 0.0
      %1210 = vmatprep.subr.mxu0 0.0
      %1211 = vmatpush1.xpose.msra.mxu0 0.0
      %1212 = vmatprep.subr.mxu0 0.0
      %1213 = vmatpush1.xpose.msra.mxu0 0.0
      %1214 = vmatprep.subr.mxu0 0.0
      %1215 = vmatpush1.xpose.msra.mxu0 0.0
      %1216 = vmatprep.subr.mxu0 0.0
      %1217 = vmatpush1.xpose.msra.mxu0 0.0
      %1218 = vmatprep.subr.mxu0 0.0
      %1219 = vmatpush1.xpose.msra.mxu0 0.0
      %1220 = vmatprep.subr.mxu0 0.0
      %1221 = vmatpush1.xpose.msra.mxu0 0.0
      %1222 = vmatprep.subr.mxu0 0.0
      %1223 = vmatpush1.xpose.msra.mxu0 0.0
      %1224 = vmatprep.subr.mxu0 0.0
      %1225 = vmatpush1.xpose.msra.mxu0 0.0
      %1226 = vmatprep.subr.mxu0 0.0
      %1227 = vmatpush1.xpose.msra.mxu0 0.0
      %1228 = vmatprep.subr.mxu0 0.0
      %1229 = vmatpush1.xpose.msra.mxu0 0.0
      %1230 = vmatprep.subr.mxu0 0.0
      %1231 = vmatpush1.xpose.msra.mxu0 0.0
      %1232 = vmatprep.mubr.f32.mxu0 0.0
      %1233 = vmatmul.mubr.f32.gmra.mrb[0].mxu0 %v1162
      %v1234 = vpop.f32.mrb[0].mxu0
      %v1235 = vadd.f32 0.0, %v1234
      %v1236 = vpop.f32.mrb[0].mxu0
      %1237 = vdwg.mxu0
      %v1238 = vmul.f32 %v1235, 0.35355338
      %v1239 = vsel %vm630, %v1238, -1e+09
      %v1240 = vsel %vm713, %v1239, -inf
      %1241 = vmax.xlane.f32.xlu0 %v1240
      %v1242 = vpop.xlane.xlu0 %1241
      %v1243 = vsub.f32 %v1239, %v1242
      %v1244 = vmul.f32 %v1243, 1.442695
      %v1245 = vpow.pop %v1244
      %v1246 = vsel %vm713, %v1245, 0.0
      %1247 = vadd.xlane.f32.xlu0 %v1246
      %v1248 = vpop.xlane.xlu0 %1247
      %v1249 = vrcp.pop %v1248
      %v1250 = vmul.f32 %v1245, %v1249
      %1251 = vrot.lane.b32.xlu0 %v621, 72
      %v1252 = vpop.permute.xlu0 %1251
      %1253 = vrot.lane.b32.xlu0 %v626, 72
      %v1254 = vpop.permute.xlu0 %1253
      %v1257 = vsel %vm713, %v1250, 0
      %v1259 = vsel %vm733, %v1254, 0
      %1261 = vmatprep.subr.mxu0 0.0
      %1262 = vmatpush1.msra.mxu0 %v1252
      %1263 = vmatprep.subr.mxu0 0.0
      %1264 = vmatpush1.msra.mxu0 %v1259
      %1265 = vmatprep.subr.mxu0 0.0
      %1266 = vmatpush1.msra.mxu0 0.0
      %1267 = vmatprep.subr.mxu0 0.0
      %1268 = vmatpush1.msra.mxu0 0.0
      %1269 = vmatprep.subr.mxu0 0.0
      %1270 = vmatpush1.msra.mxu0 0.0
      %1271 = vmatprep.subr.mxu0 0.0
      %1272 = vmatpush1.msra.mxu0 0.0
      %1273 = vmatprep.subr.mxu0 0.0
      %1274 = vmatpush1.msra.mxu0 0.0
      %1275 = vmatprep.subr.mxu0 0.0
      %1276 = vmatpush1.msra.mxu0 0.0
      %1277 = vmatprep.subr.mxu0 0.0
      %1278 = vmatpush1.msra.mxu0 0.0
      %1279 = vmatprep.subr.mxu0 0.0
      %1280 = vmatpush1.msra.mxu0 0.0
      %1281 = vmatprep.subr.mxu0 0.0
      %1282 = vmatpush1.msra.mxu0 0.0
      %1283 = vmatprep.subr.mxu0 0.0
      %1284 = vmatpush1.msra.mxu0 0.0
      %1285 = vmatprep.subr.mxu0 0.0
      %1286 = vmatpush1.msra.mxu0 0.0
      %1287 = vmatprep.subr.mxu0 0.0
      %1288 = vmatpush1.msra.mxu0 0.0
      %1289 = vmatprep.subr.mxu0 0.0
      %1290 = vmatpush1.msra.mxu0 0.0
      %1291 = vmatprep.subr.mxu0 0.0
      %1292 = vmatpush1.msra.mxu0 0.0
      %1293 = vmatprep.subr.mxu0 0.0
      %1294 = vmatpush1.msra.mxu0 0.0
      %1295 = vmatprep.subr.mxu0 0.0
      %1296 = vmatpush1.msra.mxu0 0.0
      %1297 = vmatprep.subr.mxu0 0.0
      %1298 = vmatpush1.msra.mxu0 0.0
      %1299 = vmatprep.subr.mxu0 0.0
      %1300 = vmatpush1.msra.mxu0 0.0
      %1301 = vmatprep.subr.mxu0 0.0
      %1302 = vmatpush1.msra.mxu0 0.0
      %1303 = vmatprep.subr.mxu0 0.0
      %1304 = vmatpush1.msra.mxu0 0.0
      %1305 = vmatprep.subr.mxu0 0.0
      %1306 = vmatpush1.msra.mxu0 0.0
      %1307 = vmatprep.subr.mxu0 0.0
      %1308 = vmatpush1.msra.mxu0 0.0
      %1309 = vmatprep.subr.mxu0 0.0
      %1310 = vmatpush1.msra.mxu0 0.0
      %1311 = vmatprep.subr.mxu0 0.0
      %1312 = vmatpush1.msra.mxu0 0.0
      %1313 = vmatprep.subr.mxu0 0.0
      %1314 = vmatpush1.msra.mxu0 0.0
      %1315 = vmatprep.subr.mxu0 0.0
      %1316 = vmatpush1.msra.mxu0 0.0
      %1317 = vmatprep.subr.mxu0 0.0
      %1318 = vmatpush1.msra.mxu0 0.0
      %1319 = vmatprep.subr.mxu0 0.0
      %1320 = vmatpush1.msra.mxu0 0.0
      %1321 = vmatprep.subr.mxu0 0.0
      %1322 = vmatpush1.msra.mxu0 0.0
      %1323 = vmatprep.subr.mxu0 0.0
      %1324 = vmatpush1.msra.mxu0 0.0
      %1325 = vmatprep.mubr.f32.mxu0 0.0
      %1326 = vmatmul.mubr.f32.gmra.mrb[0].mxu0 %v1257
      %v1327 = vpop.f32.mrb[0].mxu0
      %v1328 = vadd.f32 0.0, %v1327
      %v1329 = vpop.f32.mrb[0].mxu0
      %1330 = vdwg.mxu0
      %1332 = vrot.lane.b32.xlu0 %v978, 8
      %v1333 = vpop.permute.xlu0 %1332
      %1336 = vrot.lane.b32.xlu0 %v1153, 16
      %v1337 = vpop.permute.xlu0 %1336
      %1340 = vrot.lane.b32.xlu0 %v1328, 24
      %v1341 = vpop.permute.xlu0 %1340
      %v1343 = vsel %vm631, %v803, %v1333
      %vm1344 = vcmask 130048
      %v1345 = vsel %vm1344, %v1343, %v1337
      %vm1346 = vcmask 195584
      %v1347 = vsel %vm1346, %v1345, %v1341
      %v1348 = vld [vmem:[%s9] sm:$0xff]
      %v1349 = vld [vmem:[%s9 + $0x8] sm:$0xff]
      %v1350 = vld [vmem:[%s9 + $0x10] sm:$0xff]
      %v1351 = vld [vmem:[%s9 + $0x18] sm:$0xff]
      %v1352 = vld [vmem:[%s10] sm:$0x1]
      %v1354 = vlaneseq
      %v1355 = vshrl.u32 %v1354, 7
      %v1356 = vsub.s32 0, %v1355
      %v1357 = vrot.slane %v1352, %v1356
      %v1360 = vsel %vm426, %v1347, 0
      %1362 = vmatprep.subr.mxu0 0.0
      %1363 = vmatpush1.msra.mxu0 %v1348
      %1364 = vmatprep.subr.mxu0 0.0
      %1365 = vmatpush1.msra.mxu0 %v1349
      %1366 = vmatprep.subr.mxu0 0.0
      %1367 = vmatpush1.msra.mxu0 %v1350
      %1368 = vmatprep.subr.mxu0 0.0
      %1369 = vmatpush1.msra.mxu0 %v1351
      %1370 = vmatprep.subr.mxu0 0.0
      %1371 = vmatpush1.msra.mxu0 0.0
      %1372 = vmatprep.subr.mxu0 0.0
      %1373 = vmatpush1.msra.mxu0 0.0
      %1374 = vmatprep.subr.mxu0 0.0
      %1375 = vmatpush1.msra.mxu0 0.0
      %1376 = vmatprep.subr.mxu0 0.0
      %1377 = vmatpush1.msra.mxu0 0.0
      %1378 = vmatprep.subr.mxu0 0.0
      %1379 = vmatpush1.msra.mxu0 0.0
      %1380 = vmatprep.subr.mxu0 0.0
      %1381 = vmatpush1.msra.mxu0 0.0
      %1382 = vmatprep.subr.mxu0 0.0
      %1383 = vmatpush1.msra.mxu0 0.0
      %1384 = vmatprep.subr.mxu0 0.0
      %1385 = vmatpush1.msra.mxu0 0.0
      %1386 = vmatprep.subr.mxu0 0.0
      %1387 = vmatpush1.msra.mxu0 0.0
      %1388 = vmatprep.subr.mxu0 0.0
      %1389 = vmatpush1.msra.mxu0 0.0
      %1390 = vmatprep.subr.mxu0 0.0
      %1391 = vmatpush1.msra.mxu0 0.0
      %1392 = vmatprep.subr.mxu0 0.0
      %1393 = vmatpush1.msra.mxu0 0.0
      %1394 = vmatprep.subr.mxu0 0.0
      %1395 = vmatpush1.msra.mxu0 0.0
      %1396 = vmatprep.subr.mxu0 0.0
      %1397 = vmatpush1.msra.mxu0 0.0
      %1398 = vmatprep.subr.mxu0 0.0
      %1399 = vmatpush1.msra.mxu0 0.0
      %1400 = vmatprep.subr.mxu0 0.0
      %1401 = vmatpush1.msra.mxu0 0.0
      %1402 = vmatprep.subr.mxu0 0.0
      %1403 = vmatpush1.msra.mxu0 0.0
      %1404 = vmatprep.subr.mxu0 0.0
      %1405 = vmatpush1.msra.mxu0 0.0
      %1406 = vmatprep.subr.mxu0 0.0
      %1407 = vmatpush1.msra.mxu0 0.0
      %1408 = vmatprep.subr.mxu0 0.0
      %1409 = vmatpush1.msra.mxu0 0.0
      %1410 = vmatprep.subr.mxu0 0.0
      %1411 = vmatpush1.msra.mxu0 0.0
      %1412 = vmatprep.subr.mxu0 0.0
      %1413 = vmatpush1.msra.mxu0 0.0
      %1414 = vmatprep.subr.mxu0 0.0
      %1415 = vmatpush1.msra.mxu0 0.0
      %1416 = vmatprep.subr.mxu0 0.0
      %1417 = vmatpush1.msra.mxu0 0.0
      %1418 = vmatprep.subr.mxu0 0.0
      %1419 = vmatpush1.msra.mxu0 0.0
      %1420 = vmatprep.subr.mxu0 0.0
      %1421 = vmatpush1.msra.mxu0 0.0
      %1422 = vmatprep.subr.mxu0 0.0
      %1423 = vmatpush1.msra.mxu0 0.0
      %1424 = vmatprep.subr.mxu0 0.0
      %1425 = vmatpush1.msra.mxu0 0.0
      %1426 = vmatprep.mubr.f32.mxu0 0.0
      %1427 = vmatmul.mubr.f32.gmra.mrb[0].mxu0 %v1360
      %v1428 = vpop.f32.mrb[0].mxu0
      %v1429 = vadd.f32 %v1357, %v1428
      %v1430 = vpop.f32.mrb[0].mxu0
      %1431 = vdwg.mxu0
      %v1432 = vadd.f32 %v1429, %v421
      %1433 = vst.msk [vmem:[%s420] sm:$0xff] %vm426, %v1432
      %p1434 = scmp.lt.s32.totalorder %s24, 1
      %s1435 = scalar_select %p1434, %s24, 1
      %s1436 = smul.addr %s1435, 8
      %s1437 = scalar_lea.vmem %s11, %s1436
      // Predicated region
      $region65: #{decoder_forward.8} parent=63 // pred_check
        %p1438 = pneg %p288
      $region66: #{decoder_forward.8} parent=63 // pred_check_branch
        %1440 = sbr.rel (%p1438) target = $region68
      $region67: #{decoder_forward.8} parent=63 // pred_region
        _
      $region68: #{decoder_forward.8} parent=63 // pred_fallthru
        _
    $region64: #{decoder_forward.8} parent=5 // pred_fallthru
      _
    %p1441 = scmp.le.s32.totalorder 2, %s19
    // Predicated region
    $region69: #{decoder_forward.8} parent=5 // pred_check
      %p1442 = pneg %p1441
    $region70: #{decoder_forward.8} parent=5 // pred_check_branch
      %1444 = sbr.rel (%p1442) target = $region72
    $region71: #{decoder_forward.8} parent=5 // pred_region
      %s1445 = ssub.s32 %s19, 2
      // Predicated region
      $region73: #{decoder_forward.8} parent=71 // pred_check
        %p1446 = pneg %p294
      $region74: #{decoder_forward.8} parent=71 // pred_check_branch
        %1448 = sbr.rel (%p1446) target = $region76
      $region75: #{decoder_forward.8} parent=71 // pred_region
        %p1449 = scmp.lt.s32.totalorder %s25, 1
        %s1450 = scalar_select %p1449, %s25, 1
        %s1451 = smul.addr %s1450, 8
        %s1452 = scalar_lea.vmem %s11, %s1451
      $region76: #{decoder_forward.8} parent=71 // pred_fallthru
        _
    $region72: #{decoder_forward.8} parent=5 // pred_fallthru
      _
  $region6: #{decoder_forward.8} parent=0 // loop_footer
    %s23 = sadd.s32 1, %s19
  $region7: #{decoder_forward.8} parent=0 // loop_footer_branch
    %18 = sbr.rel target = $region3
  $region8: #{decoder_forward.8} parent=0 // loop_exit
    _

</llo_original>
